<compile_context>
chip_gen: v7x
topology: tpu7x:2x2x1
jax: 0.10.0
libtpu: 0.0.40
codegen_flags: <defaults>
</compile_context>

<pallas_src>
import functools

import jax
import jax.numpy as jnp
from jax.experimental import pallas as pl
from jax.experimental.pallas import tpu as pltpu


def _out_hw(H, W, stride):
    return (H - 1) // stride + 1, (W - 1) // stride + 1


def _make_kernel(Nb, H, W, Cin, hidden, Cout, stride, expand, use_res, mm_dtype):
    """Build the per-grid-step kernel (static shapes baked in)."""
    Hp = H + 2
    Hout, Wout = _out_hw(H, W, stride)
    Hspan = (Hout - 1) * stride + 1
    WC, WH, WoC = W * Cin, W * hidden, Wout * Cout

    def kernel(*refs):
        if expand:
            x_ref, w1k_ref, b1k_ref, wdk_ref, b2k_ref, p3k_ref, b3k_ref, o_ref = refs
        else:
            x_ref, wdk_ref, b2k_ref, p3k_ref, b3k_ref, o_ref = refs

        x = x_ref[...]                                       # (Nb, H, W*Cin) f32

        # ---- expand 1x1 conv (kron-lifted, BN scale pre-folded) + ReLU6 ------
        if expand:
            xm = x.reshape(Nb * H, WC).astype(mm_dtype)      # cheap reshape (minor dim kept)
            h = jnp.dot(xm, w1k_ref[...],
                        preferred_element_type=jnp.float32)  # (Nb*H, W*hidden)
            h = jnp.clip(h + b1k_ref[...], 0.0, 6.0).reshape(Nb, H, WH)
        else:
            h = x                                            # hidden == Cin, already packed

        # ---- zero halo (W on lanes, H on sublanes) built as a value ----------
        zc = jnp.zeros((Nb, H, hidden), jnp.float32)
        hp = jnp.concatenate([zc, h, zc], axis=-1)           # (Nb, H,  (W+2)*hidden)
        zr = jnp.zeros((Nb, 1, (W + 2) * hidden), jnp.float32)
        hp = jnp.concatenate([zr, hp, zr], axis=1)           # (Nb, Hp, (W+2)*hidden)

        # ---- depthwise 3x3 (BN scale pre-folded) + bias + ReLU6 --------------
        # 3 lane-window slices (dj) + 9 cheap sublane row slices (di); all tap
        # math in f32 at full lane density (weights tiled to W*hidden host-side).
        wdk = wdk_ref[...]                                   # (9, W*hidden)
        acc = None
        for dj in range(3):
            cols = jax.lax.slice(hp, (0, 0, dj * hidden),
                                 (Nb, Hp, dj * hidden + WH))       # (Nb, Hp, W*hidden)
            for di in range(3):
                tap = jax.lax.slice(cols, (0, di, 0),
                                    (Nb, di + Hspan, WH),
                                    (1, stride, 1))                # (Nb, Hout, W*hidden)
                term = tap * wdk[3 * di + dj]
                acc = term if acc is None else acc + term
        acc = jnp.clip(acc + b2k_ref[...], 0.0, 6.0)               # (Nb, Hout, W*hidden)

        # ---- project 1x1 conv (kron-lifted, W-stride folded in) + bias -------
        am = acc.reshape(Nb * Hout, WH).astype(mm_dtype)
        y = jnp.dot(am, p3k_ref[...],
                    preferred_element_type=jnp.float32)            # (Nb*Hout, Wout*Cout)
        y = (y + b3k_ref[...]).reshape(Nb, Hout, WoC)

        if use_res:
            y = y + x                                              # same packed layout

        o_ref[...] = y.astype(o_ref.dtype)                         # lane-dense store

    return kernel


def _pick_batch_block(N, H, W, Cin, hidden, Cout, stride,
                      max_nb=8, vmem_budget_bytes=12 << 20):
    """Images per grid step: largest divisor of N whose estimated per-step
    working set fits the budget.  Prefers an even step count (or a single
    step) so the 'parallel' axis splits evenly across v7x's two TensorCores;
    on single-TC v5e/v6e bigger blocks just amortize per-step overhead."""
    Hp = H + 2
    Hout, Wout = _out_hw(H, W, stride)
    lane = lambda c: -(-c // 128) * 128
    WC, WH, WpH, WoC = W * Cin, W * hidden, (W + 2) * hidden, Wout * Cout
    per_img = 4 * (2 * H * lane(WC)              # x block (double-buffered)
                   + H * lane(WH)                # expand output h
                   + Hp * lane(WpH)              # zero-halo padded activation
                   + 2 * Hp * lane(WH)           # lane-window slice + shift temp
                   + 3 * Hout * lane(WH)         # tap / term / acc
                   + Hout * lane(WoC)            # project output
                   + 2 * Hout * lane(WoC))       # out block (double-buffered)
    cap = max(1, min(max_nb, int(vmem_budget_bytes // max(per_img, 1))))
    divisors = [d for d in range(1, min(N, cap) + 1) if N % d == 0]
    best = max(divisors)
    good = [d for d in divisors if (N // d) == 1 or (N // d) % 2 == 0]
    if good:
        best = max(good)
    return best


def inverted_residual_pallas(x_nchw, params, *, stride, expand_ratio,
                             matmul_dtype=jnp.bfloat16, batch_block=None):
    """Pallas forward of InvertedResidual.  x_nchw: (N, Cin, H, W) float32."""
    assert stride in (1, 2)
    N, Cin, H, W = x_nchw.shape
    hidden = int(round(Cin * expand_ratio))
    Cout = params["w3"].shape[1]
    expand = expand_ratio != 1
    use_res = (stride == 1) and (Cin == Cout)
    Hout, Wout = _out_hw(H, W, stride)
    WC, WH, WoC = W * Cin, W * hidden, Wout * Cout

    Nb = batch_block if batch_block is not None else _pick_batch_block(
        N, H, W, Cin, hidden, Cout, stride)
    assert N % Nb == 0, (N, Nb)

    # ---- host-side glue: packed layout + BN folding + kron weight lift -------
    x_packed = jnp.transpose(x_nchw, (0, 2, 3, 1)).reshape(N, H, WC)

    # W-downsample selection folded into the project weight (identity at s=1).
    sel = (jnp.arange(W)[:, None] ==
           stride * jnp.arange(Wout)[None, :]).astype(jnp.float32)      # (W, Wout)

    wdk = jnp.tile(params["wd"].reshape(9, hidden) * params["s2"], (1, W))   # (9, W*hidden)
    b2k = jnp.tile(params["b2"], (1, W))                                     # (1, W*hidden)
    p3k = jnp.kron(sel, params["w3"] * params["s3"]).astype(matmul_dtype)    # (W*hidden, Wout*Cout)
    b3k = jnp.tile(params["b3"], (1, Wout))                                  # (1, Wout*Cout)

    fixed2 = lambda n: (0, 0)
    args = [x_packed]
    in_specs = [pl.BlockSpec((Nb, H, WC), lambda n: (n, 0, 0))]
    if expand:
        eyeW = jnp.eye(W, dtype=jnp.float32)
        w1k = jnp.kron(eyeW, params["w1"] * params["s1"]).astype(matmul_dtype)  # (W*Cin, W*hidden)
        b1k = jnp.tile(params["b1"], (1, W))                                    # (1, W*hidden)
        args += [w1k, b1k]
        in_specs += [pl.BlockSpec((WC, WH), fixed2),
                     pl.BlockSpec((1, WH), fixed2)]
    args += [wdk, b2k, p3k, b3k]
    in_specs += [pl.BlockSpec((9, WH), fixed2),
                 pl.BlockSpec((1, WH), fixed2),
                 pl.BlockSpec((WH, WoC), fixed2),
                 pl.BlockSpec((1, WoC), fixed2)]

    kernel = _make_kernel(Nb, H, W, Cin, hidden, Cout, stride, expand,
                          use_res, matmul_dtype)

    grid_spec = pltpu.PrefetchScalarGridSpec(
        num_scalar_prefetch=0,
        grid=(N // Nb,),
        in_specs=in_specs,
        out_specs=pl.BlockSpec((Nb, Hout, WoC), lambda n: (n, 0, 0)),
    )

    flops = ((2 * N * H * WC * WH if expand else 0)
             + 2 * 9 * N * Hout * WH
             + 2 * N * Hout * WH * WoC)
    bytes_accessed = int(4 * (x_packed.size + N * Hout * WoC)
                         + sum(int(a.size) * a.dtype.itemsize for a in args[1:]))
    cost = pl.CostEstimate(flops=int(flops), transcendentals=0,
                           bytes_accessed=bytes_accessed)

    out_packed = pl.pallas_call(
        kernel,
        out_shape=jax.ShapeDtypeStruct((N, Hout, WoC), jnp.float32),
        grid_spec=grid_spec,
        compiler_params=pltpu.CompilerParams(
            dimension_semantics=("parallel",),
            vmem_limit_bytes=32 * 1024 * 1024),
        cost_estimate=cost,
    )(*args)

    return jnp.transpose(out_packed.reshape(N, Hout, Wout, Cout), (0, 3, 1, 2))


# ------------------------------ pure-JAX reference ----------------------------
def inverted_residual_ref(x_nchw, params, *, stride, expand_ratio,
                          matmul_dtype=jnp.float32):
    """PyTorch-faithful reference.  When matmul_dtype is bf16 it emulates the
    kernel's bf16 MXU path (fold scales, cast matmul operands, f32 accumulate)
    so the comparison stays tight."""
    Cin = x_nchw.shape[1]
    Cout = params["w3"].shape[1]
    expand = expand_ratio != 1
    use_res = (stride == 1) and (Cin == Cout)
    hi = jax.lax.Precision.HIGHEST
    emulate = jnp.dtype(matmul_dtype) != jnp.dtype(jnp.float32)

    x = jnp.transpose(x_nchw, (0, 2, 3, 1))                        # NHWC
    h = x
    if expand:
        if emulate:
            w1 = (params["w1"] * params["s1"]).astype(matmul_dtype)
            h = jnp.einsum("nhwc,cd->nhwd", h.astype(matmul_dtype), w1,
                           precision=hi, preferred_element_type=jnp.float32)
            h = h + params["b1"]
        else:
            h = jnp.einsum("nhwc,cd->nhwd", h, params["w1"], precision=hi)
            h = h * params["s1"] + params["b1"]
        h = jnp.clip(h, 0.0, 6.0)
    dw = params["wd"][:, :, None, :]                               # HWIO, I=1
    h = jax.lax.conv_general_dilated(
        h, dw, window_strides=(stride, stride), padding=((1, 1), (1, 1)),
        dimension_numbers=("NHWC", "HWIO", "NHWC"),
        feature_group_count=h.shape[-1], precision=hi)
    h = jnp.clip(h * params["s2"] + params["b2"], 0.0, 6.0)
    if emulate:
        w3 = (params["w3"] * params["s3"]).astype(matmul_dtype)
        y = jnp.einsum("nhwc,cd->nhwd", h.astype(matmul_dtype), w3,
                       precision=hi, preferred_element_type=jnp.float32)
        y = y + params["b3"]
    else:
        y = jnp.einsum("nhwc,cd->nhwd", h, params["w3"], precision=hi)
        y = y * params["s3"] + params["b3"]
    if use_res:
        y = y + x
    return jnp.transpose(y, (0, 3, 1, 2))


# ------------------------------- parameter setup -------------------------------
def make_params(key, inp, oup, expand_ratio, eps=1e-5):
    hidden = int(round(inp * expand_ratio))
    ks = jax.random.split(key, 12)

    def bn_fold(kg, kb, km, kv, c):
        gamma = 0.5 + jax.random.uniform(kg, (1, c), jnp.float32)
        beta = 0.1 * jax.random.normal(kb, (1, c), jnp.float32)
        mean = 0.1 * jax.random.normal(km, (1, c), jnp.float32)
        var = 0.5 + jax.random.uniform(kv, (1, c), jnp.float32)
        scale = gamma / jnp.sqrt(var + eps)
        bias = beta - mean * scale
        return scale, bias

    w1 = 0.2 * jax.random.normal(ks[0], (inp, hidden), jnp.float32)
    s1, b1 = bn_fold(ks[1], ks[2], ks[3], ks[4], hidden)
    # PyTorch depthwise weight is (hidden, 1, 3, 3); stored here as (3, 3, hidden).
    wd = 0.2 * jax.random.normal(ks[5], (3, 3, hidden), jnp.float32)
    s2, b2 = bn_fold(ks[6], ks[7], ks[8], ks[9], hidden)
    w3 = 0.2 * jax.random.normal(ks[10], (hidden, oup), jnp.float32)
    s3, b3 = bn_fold(ks[11], ks[0], ks[5], ks[10], oup)
    return dict(w1=w1, s1=s1, b1=b1, wd=wd, s2=s2, b2=b2, w3=w3, s3=s3, b3=b3)


# ------------------------------------ tests ------------------------------------
def _run_one(key, *, N, inp, oup, stride, expand_ratio, H=16, W=16,
             matmul_dtype=jnp.float32, rtol=1e-3, atol=1e-3):
    kx, kp = jax.random.split(key)
    x = jax.random.normal(kx, (N, inp, H, W), jnp.float32)
    params = make_params(kp, inp, oup, expand_ratio)

    run = jax.jit(functools.partial(inverted_residual_pallas, stride=stride,
                                    expand_ratio=expand_ratio,
                                    matmul_dtype=matmul_dtype))
    out = jax.block_until_ready(run(x, params))
    ref = jax.block_until_ready(
        inverted_residual_ref(x, params, stride=stride,
                              expand_ratio=expand_ratio,
                              matmul_dtype=matmul_dtype))

    Hout, Wout = _out_hw(H, W, stride)
    assert out.shape == (N, oup, Hout, Wout), out.shape
    max_err = float(jnp.max(jnp.abs(out - ref)))
    assert jnp.allclose(out, ref, rtol=rtol, atol=atol), (out.shape, max_err)


if __name__ == "__main__":
    key = jax.random.PRNGKey(0)
    k = jax.random.split(key, 4)

    # Residual path, expand, stride 1 (f32 matmuls, strict 1e-3 check).
    _run_one(k[0], N=8, inp=8, oup=8, stride=1, expand_ratio=2)
    # No residual, stride 2, larger expansion (strided depthwise folded into
    # the project weight).
    _run_one(k[1], N=4, inp=8, oup=16, stride=2, expand_ratio=6)
    # expand_ratio == 1 branch (no expand conv), residual.
    _run_one(k[2], N=2, inp=16, oup=16, stride=1, expand_ratio=1)
    # bf16 MXU path (default for v5e/v6e/v7x), checked against the
    # bf16-emulating reference; slightly looser tolerance for cast rounding.
    # TODO(synk): also cross-check the bf16 path against the true f32 block at
    # a looser tolerance once an accuracy budget for it is agreed.
    _run_one(k[3], N=8, inp=8, oup=8, stride=1, expand_ratio=2,
             matmul_dtype=jnp.bfloat16, rtol=5e-3, atol=5e-3)

    print("KERNEL_OK")
</pallas_src>

<mosaic_0001>
module attributes {stable_mosaic.version = 11 : i64} {
  func.func @kernel(%arg0: i32, %arg1: memref<8x16x128xf32, #tpu.memory_space<vmem>>, %arg2: memref<128x256xf32, #tpu.memory_space<vmem>>, %arg3: memref<1x256xf32, #tpu.memory_space<vmem>>, %arg4: memref<9x256xf32, #tpu.memory_space<vmem>>, %arg5: memref<1x256xf32, #tpu.memory_space<vmem>>, %arg6: memref<256x128xf32, #tpu.memory_space<vmem>>, %arg7: memref<1x128xf32, #tpu.memory_space<vmem>>, %arg8: memref<8x16x128xf32, #tpu.memory_space<vmem>>) attributes {dimension_semantics = [#tpu.dimension_semantics<parallel>], iteration_bounds = array<i64: 1>, scalar_prefetch = 0 : i64, scratch_operands = 0 : i64, tpu.core_type = #tpu.core_type<tc>, window_params = [{transform_indices = @transform_0, window_bounds = array<i64: 8, 16, 128>}, {pipeline_mode = #tpu.pipeline_mode<synchronous>, transform_indices = @transform_1, window_bounds = array<i64: 128, 256>}, {pipeline_mode = #tpu.pipeline_mode<synchronous>, transform_indices = @transform_2, window_bounds = array<i64: 1, 256>}, {pipeline_mode = #tpu.pipeline_mode<synchronous>, transform_indices = @transform_3, window_bounds = array<i64: 9, 256>}, {pipeline_mode = #tpu.pipeline_mode<synchronous>, transform_indices = @transform_4, window_bounds = array<i64: 1, 256>}, {pipeline_mode = #tpu.pipeline_mode<synchronous>, transform_indices = @transform_5, window_bounds = array<i64: 256, 128>}, {pipeline_mode = #tpu.pipeline_mode<synchronous>, transform_indices = @transform_6, window_bounds = array<i64: 1, 128>}, {transform_indices = @transform_7, window_bounds = array<i64: 8, 16, 128>}]} {
    %c0 = arith.constant 0 : index
    %c0_0 = arith.constant 0 : index
    %c0_1 = arith.constant 0 : index
    %0 = vector.load %arg1[%c0, %c0_0, %c0_1] : memref<8x16x128xf32, #tpu.memory_space<vmem>>, vector<8x16x128xf32>
    %1 = vector.shape_cast %0 : vector<8x16x128xf32> to vector<128x128xf32>
    %c0_2 = arith.constant 0 : index
    %c0_3 = arith.constant 0 : index
    %2 = vector.load %arg2[%c0_2, %c0_3] : memref<128x256xf32, #tpu.memory_space<vmem>>, vector<128x256xf32>
    %cst = arith.constant dense<0.000000e+00> : vector<128x256xf32>
    %3 = tpu.matmul %1, %2, %cst {dimension_numbers = #tpu.dot_dimension_numbers<[1], [0], [0], [1], [0, 0, 1, 1], [], []>} : vector<128x128xf32>, vector<128x256xf32>, vector<128x256xf32> -> vector<128x256xf32>
    %c0_4 = arith.constant 0 : index
    %c0_5 = arith.constant 0 : index
    %4 = vector.load %arg3[%c0_4, %c0_5] : memref<1x256xf32, #tpu.memory_space<vmem>>, vector<1x256xf32>
    %5 = vector.broadcast %4 : vector<1x256xf32> to vector<128x256xf32>
    %6 = arith.addf %3, %5 : vector<128x256xf32>
    %cst_6 = arith.constant 0.000000e+00 : f32
    %cst_7 = arith.constant 6.000000e+00 : f32
    %7 = vector.broadcast %cst_6 : f32 to vector<128x256xf32>
    %8 = arith.maximumf %7, %6 : vector<128x256xf32>
    %9 = vector.broadcast %cst_7 : f32 to vector<128x256xf32>
    %10 = arith.minimumf %9, %8 : vector<128x256xf32>
    %11 = vector.shape_cast %10 : vector<128x256xf32> to vector<8x16x256xf32>
    %cst_8 = arith.constant 0.000000e+00 : f32
    %12 = vector.broadcast %cst_8 : f32 to vector<8x16x16xf32>
    %13 = tpu.concatenate %12, %11, %12 in 2 : vector<8x16x16xf32>, vector<8x16x256xf32>, vector<8x16x16xf32> -> vector<8x16x288xf32>
    %cst_9 = arith.constant 0.000000e+00 : f32
    %14 = vector.broadcast %cst_9 : f32 to vector<8x1x288xf32>
    %15 = tpu.concatenate %14, %13, %14 in 1 : vector<8x1x288xf32>, vector<8x16x288xf32>, vector<8x1x288xf32> -> vector<8x18x288xf32>
    %c0_10 = arith.constant 0 : index
    %c0_11 = arith.constant 0 : index
    %16 = vector.load %arg4[%c0_10, %c0_11] : memref<9x256xf32, #tpu.memory_space<vmem>>, vector<9x256xf32>
    %17 = vector.extract_strided_slice %15 {offsets = [0, 0, 0], sizes = [8, 18, 256], strides = [1, 1, 1]} : vector<8x18x288xf32> to vector<8x18x256xf32>
    %18 = vector.extract_strided_slice %17 {offsets = [0, 0, 0], sizes = [8, 16, 256], strides = [1, 1, 1]} : vector<8x18x256xf32> to vector<8x16x256xf32>
    %19 = vector.extract_strided_slice %16 {offsets = [0, 0], sizes = [1, 256], strides = [1, 1]} : vector<9x256xf32> to vector<1x256xf32>
    %20 = vector.shape_cast %19 : vector<1x256xf32> to vector<256xf32>
    %21 = vector.shape_cast %20 : vector<256xf32> to vector<1x1x256xf32>
    %22 = vector.broadcast %21 : vector<1x1x256xf32> to vector<8x16x256xf32>
    %23 = arith.mulf %18, %22 : vector<8x16x256xf32>
    %24 = vector.extract_strided_slice %17 {offsets = [0, 1, 0], sizes = [8, 16, 256], strides = [1, 1, 1]} : vector<8x18x256xf32> to vector<8x16x256xf32>
    %25 = vector.extract_strided_slice %16 {offsets = [3, 0], sizes = [1, 256], strides = [1, 1]} : vector<9x256xf32> to vector<1x256xf32>
    %26 = vector.shape_cast %25 : vector<1x256xf32> to vector<256xf32>
    %27 = vector.shape_cast %26 : vector<256xf32> to vector<1x1x256xf32>
    %28 = vector.broadcast %27 : vector<1x1x256xf32> to vector<8x16x256xf32>
    %29 = arith.mulf %24, %28 : vector<8x16x256xf32>
    %30 = arith.addf %23, %29 : vector<8x16x256xf32>
    %31 = vector.extract_strided_slice %17 {offsets = [0, 2, 0], sizes = [8, 16, 256], strides = [1, 1, 1]} : vector<8x18x256xf32> to vector<8x16x256xf32>
    %32 = vector.extract_strided_slice %16 {offsets = [6, 0], sizes = [1, 256], strides = [1, 1]} : vector<9x256xf32> to vector<1x256xf32>
    %33 = vector.shape_cast %32 : vector<1x256xf32> to vector<256xf32>
    %34 = vector.shape_cast %33 : vector<256xf32> to vector<1x1x256xf32>
    %35 = vector.broadcast %34 : vector<1x1x256xf32> to vector<8x16x256xf32>
    %36 = arith.mulf %31, %35 : vector<8x16x256xf32>
    %37 = arith.addf %30, %36 : vector<8x16x256xf32>
    %38 = vector.extract_strided_slice %15 {offsets = [0, 0, 16], sizes = [8, 18, 256], strides = [1, 1, 1]} : vector<8x18x288xf32> to vector<8x18x256xf32>
    %39 = vector.extract_strided_slice %38 {offsets = [0, 0, 0], sizes = [8, 16, 256], strides = [1, 1, 1]} : vector<8x18x256xf32> to vector<8x16x256xf32>
    %40 = vector.extract_strided_slice %16 {offsets = [1, 0], sizes = [1, 256], strides = [1, 1]} : vector<9x256xf32> to vector<1x256xf32>
    %41 = vector.shape_cast %40 : vector<1x256xf32> to vector<256xf32>
    %42 = vector.shape_cast %41 : vector<256xf32> to vector<1x1x256xf32>
    %43 = vector.broadcast %42 : vector<1x1x256xf32> to vector<8x16x256xf32>
    %44 = arith.mulf %39, %43 : vector<8x16x256xf32>
    %45 = arith.addf %37, %44 : vector<8x16x256xf32>
    %46 = vector.extract_strided_slice %38 {offsets = [0, 1, 0], sizes = [8, 16, 256], strides = [1, 1, 1]} : vector<8x18x256xf32> to vector<8x16x256xf32>
    %47 = vector.extract_strided_slice %16 {offsets = [4, 0], sizes = [1, 256], strides = [1, 1]} : vector<9x256xf32> to vector<1x256xf32>
    %48 = vector.shape_cast %47 : vector<1x256xf32> to vector<256xf32>
    %49 = vector.shape_cast %48 : vector<256xf32> to vector<1x1x256xf32>
    %50 = vector.broadcast %49 : vector<1x1x256xf32> to vector<8x16x256xf32>
    %51 = arith.mulf %46, %50 : vector<8x16x256xf32>
    %52 = arith.addf %45, %51 : vector<8x16x256xf32>
    %53 = vector.extract_strided_slice %38 {offsets = [0, 2, 0], sizes = [8, 16, 256], strides = [1, 1, 1]} : vector<8x18x256xf32> to vector<8x16x256xf32>
    %54 = vector.extract_strided_slice %16 {offsets = [7, 0], sizes = [1, 256], strides = [1, 1]} : vector<9x256xf32> to vector<1x256xf32>
    %55 = vector.shape_cast %54 : vector<1x256xf32> to vector<256xf32>
    %56 = vector.shape_cast %55 : vector<256xf32> to vector<1x1x256xf32>
    %57 = vector.broadcast %56 : vector<1x1x256xf32> to vector<8x16x256xf32>
    %58 = arith.mulf %53, %57 : vector<8x16x256xf32>
    %59 = arith.addf %52, %58 : vector<8x16x256xf32>
    %60 = vector.extract_strided_slice %15 {offsets = [0, 0, 32], sizes = [8, 18, 256], strides = [1, 1, 1]} : vector<8x18x288xf32> to vector<8x18x256xf32>
    %61 = vector.extract_strided_slice %60 {offsets = [0, 0, 0], sizes = [8, 16, 256], strides = [1, 1, 1]} : vector<8x18x256xf32> to vector<8x16x256xf32>
    %62 = vector.extract_strided_slice %16 {offsets = [2, 0], sizes = [1, 256], strides = [1, 1]} : vector<9x256xf32> to vector<1x256xf32>
    %63 = vector.shape_cast %62 : vector<1x256xf32> to vector<256xf32>
    %64 = vector.shape_cast %63 : vector<256xf32> to vector<1x1x256xf32>
    %65 = vector.broadcast %64 : vector<1x1x256xf32> to vector<8x16x256xf32>
    %66 = arith.mulf %61, %65 : vector<8x16x256xf32>
    %67 = arith.addf %59, %66 : vector<8x16x256xf32>
    %68 = vector.extract_strided_slice %60 {offsets = [0, 1, 0], sizes = [8, 16, 256], strides = [1, 1, 1]} : vector<8x18x256xf32> to vector<8x16x256xf32>
    %69 = vector.extract_strided_slice %16 {offsets = [5, 0], sizes = [1, 256], strides = [1, 1]} : vector<9x256xf32> to vector<1x256xf32>
    %70 = vector.shape_cast %69 : vector<1x256xf32> to vector<256xf32>
    %71 = vector.shape_cast %70 : vector<256xf32> to vector<1x1x256xf32>
    %72 = vector.broadcast %71 : vector<1x1x256xf32> to vector<8x16x256xf32>
    %73 = arith.mulf %68, %72 : vector<8x16x256xf32>
    %74 = arith.addf %67, %73 : vector<8x16x256xf32>
    %75 = vector.extract_strided_slice %60 {offsets = [0, 2, 0], sizes = [8, 16, 256], strides = [1, 1, 1]} : vector<8x18x256xf32> to vector<8x16x256xf32>
    %76 = vector.extract_strided_slice %16 {offsets = [8, 0], sizes = [1, 256], strides = [1, 1]} : vector<9x256xf32> to vector<1x256xf32>
    %77 = vector.shape_cast %76 : vector<1x256xf32> to vector<256xf32>
    %78 = vector.shape_cast %77 : vector<256xf32> to vector<1x1x256xf32>
    %79 = vector.broadcast %78 : vector<1x1x256xf32> to vector<8x16x256xf32>
    %80 = arith.mulf %75, %79 : vector<8x16x256xf32>
    %81 = arith.addf %74, %80 : vector<8x16x256xf32>
    %c0_12 = arith.constant 0 : index
    %c0_13 = arith.constant 0 : index
    %82 = vector.load %arg5[%c0_12, %c0_13] : memref<1x256xf32, #tpu.memory_space<vmem>>, vector<1x256xf32>
    %83 = vector.shape_cast %82 : vector<1x256xf32> to vector<1x1x256xf32>
    %84 = vector.broadcast %83 : vector<1x1x256xf32> to vector<8x16x256xf32>
    %85 = arith.addf %81, %84 : vector<8x16x256xf32>
    %cst_14 = arith.constant 0.000000e+00 : f32
    %cst_15 = arith.constant 6.000000e+00 : f32
    %86 = vector.broadcast %cst_14 : f32 to vector<8x16x256xf32>
    %87 = arith.maximumf %86, %85 : vector<8x16x256xf32>
    %88 = vector.broadcast %cst_15 : f32 to vector<8x16x256xf32>
    %89 = arith.minimumf %88, %87 : vector<8x16x256xf32>
    %90 = vector.shape_cast %89 : vector<8x16x256xf32> to vector<128x256xf32>
    %c0_16 = arith.constant 0 : index
    %c0_17 = arith.constant 0 : index
    %91 = vector.load %arg6[%c0_16, %c0_17] : memref<256x128xf32, #tpu.memory_space<vmem>>, vector<256x128xf32>
    %cst_18 = arith.constant dense<0.000000e+00> : vector<128x128xf32>
    %92 = tpu.matmul %90, %91, %cst_18 {dimension_numbers = #tpu.dot_dimension_numbers<[1], [0], [0], [1], [0, 0, 1, 1], [], []>} : vector<128x256xf32>, vector<256x128xf32>, vector<128x128xf32> -> vector<128x128xf32>
    %c0_19 = arith.constant 0 : index
    %c0_20 = arith.constant 0 : index
    %93 = vector.load %arg7[%c0_19, %c0_20] : memref<1x128xf32, #tpu.memory_space<vmem>>, vector<1x128xf32>
    %94 = vector.broadcast %93 : vector<1x128xf32> to vector<128x128xf32>
    %95 = arith.addf %92, %94 : vector<128x128xf32>
    %96 = vector.shape_cast %95 : vector<128x128xf32> to vector<8x16x128xf32>
    %97 = arith.addf %96, %0 : vector<8x16x128xf32>
    %c0_21 = arith.constant 0 : index
    %c0_22 = arith.constant 0 : index
    %c0_23 = arith.constant 0 : index
    %98 = vector.load %arg8[%c0_21, %c0_22, %c0_23] : memref<8x16x128xf32, #tpu.memory_space<vmem>>, vector<8x16x128xf32>
    tpu.vector_store %arg8[%c0_21, %c0_22, %c0_23], %97 {strides = array<i32>} : memref<8x16x128xf32, #tpu.memory_space<vmem>>, vector<8x16x128xf32>,
    return
  }
  func.func @transform_0(%arg0: i32) -> (i32, i32, i32) {
    %c0_i32 = arith.constant 0 : i32
    %c0_i32_0 = arith.constant 0 : i32
    %c0_i32_1 = arith.constant 0 : i32
    return %arg0, %c0_i32, %c0_i32_0 : i32, i32, i32
  }
  func.func @transform_1(%arg0: i32) -> (i32, i32) {
    %c0_i32 = arith.constant 0 : i32
    %c0_i32_0 = arith.constant 0 : i32
    %c0_i32_1 = arith.constant 0 : i32
    return %c0_i32, %c0_i32_0 : i32, i32
  }
  func.func @transform_2(%arg0: i32) -> (i32, i32) {
    %c0_i32 = arith.constant 0 : i32
    %c0_i32_0 = arith.constant 0 : i32
    %c0_i32_1 = arith.constant 0 : i32
    return %c0_i32, %c0_i32_0 : i32, i32
  }
  func.func @transform_3(%arg0: i32) -> (i32, i32) {
    %c0_i32 = arith.constant 0 : i32
    %c0_i32_0 = arith.constant 0 : i32
    %c0_i32_1 = arith.constant 0 : i32
    return %c0_i32, %c0_i32_0 : i32, i32
  }
  func.func @transform_4(%arg0: i32) -> (i32, i32) {
    %c0_i32 = arith.constant 0 : i32
    %c0_i32_0 = arith.constant 0 : i32
    %c0_i32_1 = arith.constant 0 : i32
    return %c0_i32, %c0_i32_0 : i32, i32
  }
  func.func @transform_5(%arg0: i32) -> (i32, i32) {
    %c0_i32 = arith.constant 0 : i32
    %c0_i32_0 = arith.constant 0 : i32
    %c0_i32_1 = arith.constant 0 : i32
    return %c0_i32, %c0_i32_0 : i32, i32
  }
  func.func @transform_6(%arg0: i32) -> (i32, i32) {
    %c0_i32 = arith.constant 0 : i32
    %c0_i32_0 = arith.constant 0 : i32
    %c0_i32_1 = arith.constant 0 : i32
    return %c0_i32, %c0_i32_0 : i32, i32
  }
  func.func @transform_7(%arg0: i32) -> (i32, i32, i32) {
    %c0_i32 = arith.constant 0 : i32
    %c0_i32_0 = arith.constant 0 : i32
    %c0_i32_1 = arith.constant 0 : i32
    return %arg0, %c0_i32, %c0_i32_0 : i32, i32, i32
  }
}

</mosaic_0001>

<llo_original>
// kernel: tile.24
$region0: #{tile.24}
  %s0 = inlined_call_operand.vmem [shape: f32[9,16,16], index: 0, kind: input, shape index: {}]
  %s1 = inlined_call_operand.vmem [shape: f32[9,256], index: 1, kind: output, shape index: {}]
  %v2 = vld [vmem:[%s0] ss:$8 sm:$0xf]
  %v3 = vld [vmem:[%s0] ss:$8 sm:$0xf0]
  %vm4 = vcmask 1047556
  %v5 = vsel %vm4, %v3, %v2
  %vm6 = vcmask 130048
  %7 = vst.msk [vmem:[%s1] ss:$8 sm:$0x3] %vm6, %v5
  %s8 = scalar_lea.vmem %s1, 4294967281
  %9 = vst.msk [vmem:[%s8] ss:$8 sm:$0xc] %vm6, %v5
  %s10 = scalar_lea.vmem %s1, 4294967266
  %11 = vst.msk [vmem:[%s10] ss:$8 sm:$0x30] %vm6, %v5
  %s12 = scalar_lea.vmem %s1, 4294967251
  %13 = vst.msk [vmem:[%s12] ss:$8 sm:$0xc0] %vm6, %v5
  %s14 = scalar_lea.vmem %s0, 64
  %v15 = vld [vmem:[%s14] ss:$8 sm:$0xf]
  %s16 = scalar_lea.vmem %s0, 64
  %v17 = vld [vmem:[%s16] ss:$8 sm:$0xf0]
  %vm18 = vcmask 1047556
  %v19 = vsel %vm18, %v17, %v15
  %vm20 = vcmask 130048
  %s21 = scalar_lea.vmem %s1, 4
  %22 = vst.msk [vmem:[%s21] ss:$8 sm:$0x3] %vm20, %v19
  %s23 = scalar_lea.vmem %s1, 4294967285
  %24 = vst.msk [vmem:[%s23] ss:$8 sm:$0xc] %vm20, %v19
  %s25 = scalar_lea.vmem %s1, 4294967270
  %26 = vst.msk [vmem:[%s25] ss:$8 sm:$0x30] %vm20, %v19
  %s27 = scalar_lea.vmem %s1, 4294967255
  %28 = vst.msk [vmem:[%s27] ss:$8 sm:$0xc0] %vm20, %v19
  %s29 = scalar_lea.vmem %s0, 128
  %s30 = smov 3
  %v31 = vld [vmem:[%s29] ss:$8 sm:%s30]
  %vm32 = vcmask 130048
  %s33 = scalar_lea.vmem %s1, 16
  %34 = vst.msk [vmem:[%s33] ss:$8 sm:$0x3] %vm32, %v31
  %s35 = scalar_lea.vmem %s0, 7
  %s36 = smov 3
  %v37 = vld [vmem:[%s35] ss:$16 sm:%s36]
  %s38 = scalar_lea.vmem %s0, 7
  %s39 = smov 12
  %v40 = vld [vmem:[%s38] ss:$16 sm:%s39]
  %vm41 = vcmask 1043458
  %v42 = vsel %vm41, %v40, %v37
  %s43 = scalar_lea.vmem %s0, 7
  %s44 = smov 48
  %v45 = vld [vmem:[%s43] ss:$16 sm:%s44]
  %vm46 = vcmask 1045508
  %v47 = vsel %vm46, %v45, %v42
  %s48 = scalar_lea.vmem %s0, 7
  %s49 = smov 192
  %v50 = vld [vmem:[%s48] ss:$16 sm:%s49]
  %vm51 = vcmask 1047558
  %v52 = vsel %vm51, %v50, %v47
  %53 = vrot.lane.b32.xlu0 %v52, 112
  %v54 = vpop.permute.xlu0 %53
  %vm55 = vcmask 1048448
  %56 = vst.msk [vmem:[%s1] sm:$0xff] %vm55, %v54
  %s57 = scalar_lea.vmem %s0, 15
  %s58 = smov 3
  %v59 = vld [vmem:[%s57] ss:$16 sm:%s58]
  %s60 = scalar_lea.vmem %s0, 15
  %s61 = smov 12
  %v62 = vld [vmem:[%s60] ss:$16 sm:%s61]
  %vm63 = vcmask 1043458
  %v64 = vsel %vm63, %v62, %v59
  %s65 = scalar_lea.vmem %s0, 15
  %s66 = smov 48
  %v67 = vld [vmem:[%s65] ss:$16 sm:%s66]
  %vm68 = vcmask 1045508
  %v69 = vsel %vm68, %v67, %v64
  %s70 = scalar_lea.vmem %s0, 15
  %s71 = smov 192
  %v72 = vld [vmem:[%s70] ss:$16 sm:%s71]
  %vm73 = vcmask 1047558
  %v74 = vsel %vm73, %v72, %v69
  %75 = vrot.lane.b32.xlu0 %v74, 112
  %v76 = vpop.permute.xlu0 %75
  %vm77 = vcmask 1048448
  %s78 = scalar_lea.vmem %s1, 8
  %79 = vst.msk [vmem:[%s78] sm:$0xff] %vm77, %v76
  %s80 = scalar_lea.vmem %s0, 135
  %s81 = smov 3
  %v82 = vld [vmem:[%s80] ss:$8 sm:%s81]
  %83 = vrot.lane.b32.xlu0 %v82, 112
  %v84 = vpop.permute.xlu0 %83
  %vm85 = vcmask 1048448
  %s86 = scalar_lea.vmem %s1, 16
  %87 = vst.msk [vmem:[%s86] ss:$8 sm:$0x3] %vm85, %v84
  %s88 = scalar_lea.vmem %s0, 6
  %s89 = smov 3
  %v90 = vld [vmem:[%s88] ss:$16 sm:%s89]
  %s91 = scalar_lea.vmem %s0, 6
  %s92 = smov 12
  %v93 = vld [vmem:[%s91] ss:$16 sm:%s92]
  %vm94 = vcmask 1043458
  %v95 = vsel %vm94, %v93, %v90
  %s96 = scalar_lea.vmem %s0, 6
  %s97 = smov 48
  %v98 = vld [vmem:[%s96] ss:$16 sm:%s97]
  %vm99 = vcmask 1045508
  %v100 = vsel %vm99, %v98, %v95
  %s101 = scalar_lea.vmem %s0, 6
  %s102 = smov 192
  %v103 = vld [vmem:[%s101] ss:$16 sm:%s102]
  %vm104 = vcmask 1047558
  %v105 = vsel %vm104, %v103, %v100
  %106 = vrot.lane.b32.xlu0 %v105, 96
  %v107 = vpop.permute.xlu0 %106
  %vm108 = vcmask 917248
  %109 = vst.msk [vmem:[%s1] sm:$0xff] %vm108, %v107
  %s110 = scalar_lea.vmem %s0, 14
  %s111 = smov 3
  %v112 = vld [vmem:[%s110] ss:$16 sm:%s111]
  %s113 = scalar_lea.vmem %s0, 14
  %s114 = smov 12
  %v115 = vld [vmem:[%s113] ss:$16 sm:%s114]
  %vm116 = vcmask 1043458
  %v117 = vsel %vm116, %v115, %v112
  %s118 = scalar_lea.vmem %s0, 14
  %s119 = smov 48
  %v120 = vld [vmem:[%s118] ss:$16 sm:%s119]
  %vm121 = vcmask 1045508
  %v122 = vsel %vm121, %v120, %v117
  %s123 = scalar_lea.vmem %s0, 14
  %s124 = smov 192
  %v125 = vld [vmem:[%s123] ss:$16 sm:%s124]
  %vm126 = vcmask 1047558
  %v127 = vsel %vm126, %v125, %v122
  %128 = vrot.lane.b32.xlu0 %v127, 96
  %v129 = vpop.permute.xlu0 %128
  %vm130 = vcmask 917248
  %s131 = scalar_lea.vmem %s1, 8
  %132 = vst.msk [vmem:[%s131] sm:$0xff] %vm130, %v129
  %s133 = scalar_lea.vmem %s0, 134
  %s134 = smov 3
  %v135 = vld [vmem:[%s133] ss:$8 sm:%s134]
  %136 = vrot.lane.b32.xlu0 %v135, 96
  %v137 = vpop.permute.xlu0 %136
  %vm138 = vcmask 917248
  %s139 = scalar_lea.vmem %s1, 16
  %140 = vst.msk [vmem:[%s139] ss:$8 sm:$0x3] %vm138, %v137
  %s141 = scalar_lea.vmem %s0, 5
  %s142 = smov 3
  %v143 = vld [vmem:[%s141] ss:$16 sm:%s142]
  %s144 = scalar_lea.vmem %s0, 5
  %s145 = smov 12
  %v146 = vld [vmem:[%s144] ss:$16 sm:%s145]
  %vm147 = vcmask 1043458
  %v148 = vsel %vm147, %v146, %v143
  %s149 = scalar_lea.vmem %s0, 5
  %s150 = smov 48
  %v151 = vld [vmem:[%s149] ss:$16 sm:%s150]
  %vm152 = vcmask 1045508
  %v153 = vsel %vm152, %v151, %v148
  %s154 = scalar_lea.vmem %s0, 5
  %s155 = smov 192
  %v156 = vld [vmem:[%s154] ss:$16 sm:%s155]
  %vm157 = vcmask 1047558
  %v158 = vsel %vm157, %v156, %v153
  %159 = vrot.lane.b32.xlu0 %v158, 80
  %v160 = vpop.permute.xlu0 %159
  %vm161 = vcmask 786048
  %162 = vst.msk [vmem:[%s1] sm:$0xff] %vm161, %v160
  %s163 = scalar_lea.vmem %s0, 13
  %s164 = smov 3
  %v165 = vld [vmem:[%s163] ss:$16 sm:%s164]
  %s166 = scalar_lea.vmem %s0, 13
  %s167 = smov 12
  %v168 = vld [vmem:[%s166] ss:$16 sm:%s167]
  %vm169 = vcmask 1043458
  %v170 = vsel %vm169, %v168, %v165
  %s171 = scalar_lea.vmem %s0, 13
  %s172 = smov 48
  %v173 = vld [vmem:[%s171] ss:$16 sm:%s172]
  %vm174 = vcmask 1045508
  %v175 = vsel %vm174, %v173, %v170
  %s176 = scalar_lea.vmem %s0, 13
  %s177 = smov 192
  %v178 = vld [vmem:[%s176] ss:$16 sm:%s177]
  %vm179 = vcmask 1047558
  %v180 = vsel %vm179, %v178, %v175
  %181 = vrot.lane.b32.xlu0 %v180, 80
  %v182 = vpop.permute.xlu0 %181
  %vm183 = vcmask 786048
  %s184 = scalar_lea.vmem %s1, 8
  %185 = vst.msk [vmem:[%s184] sm:$0xff] %vm183, %v182
  %s186 = scalar_lea.vmem %s0, 133
  %s187 = smov 3
  %v188 = vld [vmem:[%s186] ss:$8 sm:%s187]
  %189 = vrot.lane.b32.xlu0 %v188, 80
  %v190 = vpop.permute.xlu0 %189
  %vm191 = vcmask 786048
  %s192 = scalar_lea.vmem %s1, 16
  %193 = vst.msk [vmem:[%s192] ss:$8 sm:$0x3] %vm191, %v190
  %s194 = scalar_lea.vmem %s0, 4
  %s195 = smov 3
  %v196 = vld [vmem:[%s194] ss:$16 sm:%s195]
  %s197 = scalar_lea.vmem %s0, 4
  %s198 = smov 12
  %v199 = vld [vmem:[%s197] ss:$16 sm:%s198]
  %vm200 = vcmask 1043458
  %v201 = vsel %vm200, %v199, %v196
  %s202 = scalar_lea.vmem %s0, 4
  %s203 = smov 48
  %v204 = vld [vmem:[%s202] ss:$16 sm:%s203]
  %vm205 = vcmask 1045508
  %v206 = vsel %vm205, %v204, %v201
  %s207 = scalar_lea.vmem %s0, 4
  %s208 = smov 192
  %v209 = vld [vmem:[%s207] ss:$16 sm:%s208]
  %vm210 = vcmask 1047558
  %v211 = vsel %vm210, %v209, %v206
  %212 = vrot.lane.b32.xlu0 %v211, 64
  %v213 = vpop.permute.xlu0 %212
  %vm214 = vcmask 654848
  %215 = vst.msk [vmem:[%s1] sm:$0xff] %vm214, %v213
  %s216 = scalar_lea.vmem %s0, 12
  %s217 = smov 3
  %v218 = vld [vmem:[%s216] ss:$16 sm:%s217]
  %s219 = scalar_lea.vmem %s0, 12
  %s220 = smov 12
  %v221 = vld [vmem:[%s219] ss:$16 sm:%s220]
  %vm222 = vcmask 1043458
  %v223 = vsel %vm222, %v221, %v218
  %s224 = scalar_lea.vmem %s0, 12
  %s225 = smov 48
  %v226 = vld [vmem:[%s224] ss:$16 sm:%s225]
  %vm227 = vcmask 1045508
  %v228 = vsel %vm227, %v226, %v223
  %s229 = scalar_lea.vmem %s0, 12
  %s230 = smov 192
  %v231 = vld [vmem:[%s229] ss:$16 sm:%s230]
  %vm232 = vcmask 1047558
  %v233 = vsel %vm232, %v231, %v228
  %234 = vrot.lane.b32.xlu0 %v233, 64
  %v235 = vpop.permute.xlu0 %234
  %vm236 = vcmask 654848
  %s237 = scalar_lea.vmem %s1, 8
  %238 = vst.msk [vmem:[%s237] sm:$0xff] %vm236, %v235
  %s239 = scalar_lea.vmem %s0, 132
  %s240 = smov 3
  %v241 = vld [vmem:[%s239] ss:$8 sm:%s240]
  %242 = vrot.lane.b32.xlu0 %v241, 64
  %v243 = vpop.permute.xlu0 %242
  %vm244 = vcmask 654848
  %s245 = scalar_lea.vmem %s1, 16
  %246 = vst.msk [vmem:[%s245] ss:$8 sm:$0x3] %vm244, %v243
  %s247 = scalar_lea.vmem %s0, 3
  %s248 = smov 3
  %v249 = vld [vmem:[%s247] ss:$16 sm:%s248]
  %s250 = scalar_lea.vmem %s0, 3
  %s251 = smov 12
  %v252 = vld [vmem:[%s250] ss:$16 sm:%s251]
  %vm253 = vcmask 1043458
  %v254 = vsel %vm253, %v252, %v249
  %s255 = scalar_lea.vmem %s0, 3
  %s256 = smov 48
  %v257 = vld [vmem:[%s255] ss:$16 sm:%s256]
  %vm258 = vcmask 1045508
  %v259 = vsel %vm258, %v257, %v254
  %s260 = scalar_lea.vmem %s0, 3
  %s261 = smov 192
  %v262 = vld [vmem:[%s260] ss:$16 sm:%s261]
  %vm263 = vcmask 1047558
  %v264 = vsel %vm263, %v262, %v259
  %265 = vrot.lane.b32.xlu0 %v264, 48
  %v266 = vpop.permute.xlu0 %265
  %vm267 = vcmask 523648
  %268 = vst.msk [vmem:[%s1] sm:$0xff] %vm267, %v266
  %s269 = scalar_lea.vmem %s0, 11
  %s270 = smov 3
  %v271 = vld [vmem:[%s269] ss:$16 sm:%s270]
  %s272 = scalar_lea.vmem %s0, 11
  %s273 = smov 12
  %v274 = vld [vmem:[%s272] ss:$16 sm:%s273]
  %vm275 = vcmask 1043458
  %v276 = vsel %vm275, %v274, %v271
  %s277 = scalar_lea.vmem %s0, 11
  %s278 = smov 48
  %v279 = vld [vmem:[%s277] ss:$16 sm:%s278]
  %vm280 = vcmask 1045508
  %v281 = vsel %vm280, %v279, %v276
  %s282 = scalar_lea.vmem %s0, 11
  %s283 = smov 192
  %v284 = vld [vmem:[%s282] ss:$16 sm:%s283]
  %vm285 = vcmask 1047558
  %v286 = vsel %vm285, %v284, %v281
  %287 = vrot.lane.b32.xlu0 %v286, 48
  %v288 = vpop.permute.xlu0 %287
  %vm289 = vcmask 523648
  %s290 = scalar_lea.vmem %s1, 8
  %291 = vst.msk [vmem:[%s290] sm:$0xff] %vm289, %v288
  %s292 = scalar_lea.vmem %s0, 131
  %s293 = smov 3
  %v294 = vld [vmem:[%s292] ss:$8 sm:%s293]
  %295 = vrot.lane.b32.xlu0 %v294, 48
  %v296 = vpop.permute.xlu0 %295
  %vm297 = vcmask 523648
  %s298 = scalar_lea.vmem %s1, 16
  %299 = vst.msk [vmem:[%s298] ss:$8 sm:$0x3] %vm297, %v296
  %s300 = scalar_lea.vmem %s0, 2
  %s301 = smov 3
  %v302 = vld [vmem:[%s300] ss:$16 sm:%s301]
  %s303 = scalar_lea.vmem %s0, 2
  %s304 = smov 12
  %v305 = vld [vmem:[%s303] ss:$16 sm:%s304]
  %vm306 = vcmask 1043458
  %v307 = vsel %vm306, %v305, %v302
  %s308 = scalar_lea.vmem %s0, 2
  %s309 = smov 48
  %v310 = vld [vmem:[%s308] ss:$16 sm:%s309]
  %vm311 = vcmask 1045508
  %v312 = vsel %vm311, %v310, %v307
  %s313 = scalar_lea.vmem %s0, 2
  %s314 = smov 192
  %v315 = vld [vmem:[%s313] ss:$16 sm:%s314]
  %vm316 = vcmask 1047558
  %v317 = vsel %vm316, %v315, %v312
  %318 = vrot.lane.b32.xlu0 %v317, 32
  %v319 = vpop.permute.xlu0 %318
  %vm320 = vcmask 392448
  %321 = vst.msk [vmem:[%s1] sm:$0xff] %vm320, %v319
  %s322 = scalar_lea.vmem %s0, 10
  %s323 = smov 3
  %v324 = vld [vmem:[%s322] ss:$16 sm:%s323]
  %s325 = scalar_lea.vmem %s0, 10
  %s326 = smov 12
  %v327 = vld [vmem:[%s325] ss:$16 sm:%s326]
  %vm328 = vcmask 1043458
  %v329 = vsel %vm328, %v327, %v324
  %s330 = scalar_lea.vmem %s0, 10
  %s331 = smov 48
  %v332 = vld [vmem:[%s330] ss:$16 sm:%s331]
  %vm333 = vcmask 1045508
  %v334 = vsel %vm333, %v332, %v329
  %s335 = scalar_lea.vmem %s0, 10
  %s336 = smov 192
  %v337 = vld [vmem:[%s335] ss:$16 sm:%s336]
  %vm338 = vcmask 1047558
  %v339 = vsel %vm338, %v337, %v334
  %340 = vrot.lane.b32.xlu0 %v339, 32
  %v341 = vpop.permute.xlu0 %340
  %vm342 = vcmask 392448
  %s343 = scalar_lea.vmem %s1, 8
  %344 = vst.msk [vmem:[%s343] sm:$0xff] %vm342, %v341
  %s345 = scalar_lea.vmem %s0, 130
  %s346 = smov 3
  %v347 = vld [vmem:[%s345] ss:$8 sm:%s346]
  %348 = vrot.lane.b32.xlu0 %v347, 32
  %v349 = vpop.permute.xlu0 %348
  %vm350 = vcmask 392448
  %s351 = scalar_lea.vmem %s1, 16
  %352 = vst.msk [vmem:[%s351] ss:$8 sm:$0x3] %vm350, %v349
  %s353 = scalar_lea.vmem %s0, 1
  %s354 = smov 3
  %v355 = vld [vmem:[%s353] ss:$16 sm:%s354]
  %s356 = scalar_lea.vmem %s0, 1
  %s357 = smov 12
  %v358 = vld [vmem:[%s356] ss:$16 sm:%s357]
  %vm359 = vcmask 1043458
  %v360 = vsel %vm359, %v358, %v355
  %s361 = scalar_lea.vmem %s0, 1
  %s362 = smov 48
  %v363 = vld [vmem:[%s361] ss:$16 sm:%s362]
  %vm364 = vcmask 1045508
  %v365 = vsel %vm364, %v363, %v360
  %s366 = scalar_lea.vmem %s0, 1
  %s367 = smov 192
  %v368 = vld [vmem:[%s366] ss:$16 sm:%s367]
  %vm369 = vcmask 1047558
  %v370 = vsel %vm369, %v368, %v365
  %371 = vrot.lane.b32.xlu0 %v370, 16
  %v372 = vpop.permute.xlu0 %371
  %vm373 = vcmask 261248
  %374 = vst.msk [vmem:[%s1] sm:$0xff] %vm373, %v372
  %s375 = scalar_lea.vmem %s0, 9
  %s376 = smov 3
  %v377 = vld [vmem:[%s375] ss:$16 sm:%s376]
  %s378 = scalar_lea.vmem %s0, 9
  %s379 = smov 12
  %v380 = vld [vmem:[%s378] ss:$16 sm:%s379]
  %vm381 = vcmask 1043458
  %v382 = vsel %vm381, %v380, %v377
  %s383 = scalar_lea.vmem %s0, 9
  %s384 = smov 48
  %v385 = vld [vmem:[%s383] ss:$16 sm:%s384]
  %vm386 = vcmask 1045508
  %v387 = vsel %vm386, %v385, %v382
  %s388 = scalar_lea.vmem %s0, 9
  %s389 = smov 192
  %v390 = vld [vmem:[%s388] ss:$16 sm:%s389]
  %vm391 = vcmask 1047558
  %v392 = vsel %vm391, %v390, %v387
  %393 = vrot.lane.b32.xlu0 %v392, 16
  %v394 = vpop.permute.xlu0 %393
  %vm395 = vcmask 261248
  %s396 = scalar_lea.vmem %s1, 8
  %397 = vst.msk [vmem:[%s396] sm:$0xff] %vm395, %v394
  %s398 = scalar_lea.vmem %s0, 129
  %s399 = smov 3
  %v400 = vld [vmem:[%s398] ss:$8 sm:%s399]
  %401 = vrot.lane.b32.xlu0 %v400, 16
  %v402 = vpop.permute.xlu0 %401
  %vm403 = vcmask 261248
  %s404 = scalar_lea.vmem %s1, 16
  %405 = vst.msk [vmem:[%s404] ss:$8 sm:$0x3] %vm403, %v402

// kernel: inverted_residual_pallas.1
$region0: #{inverted_residual_pallas.1}
  #allocation0 [shape = 'u32[]', space=smem, size = 0x4, offset = 0x4, fixed_abs, tag = 'smem constant byte address 0x4 - core index']
  #allocation1 [shape = 'u32[144,128]{1,0:T(1,128)}', space=vmem, size = 0x12000, scoped, tag = 'internal scratch']
  %s0 = inlined_call_operand.vmem [shape: f32[8,16,128], index: 0, kind: input, shape index: {}]
  %s1 = inlined_call_operand.vmem [shape: f32[128,256], index: 1, kind: input, shape index: {}]
  %s2 = inlined_call_operand.vmem [shape: f32[1,256], index: 2, kind: input, shape index: {}]
  %s3 = inlined_call_operand.vmem [shape: f32[9,256], index: 3, kind: input, shape index: {}]
  %s4 = inlined_call_operand.vmem [shape: f32[1,256], index: 4, kind: input, shape index: {}]
  %s5 = inlined_call_operand.vmem [shape: f32[256,128], index: 5, kind: input, shape index: {}]
  %s6 = inlined_call_operand.vmem [shape: f32[1,128], index: 6, kind: input, shape index: {}]
  %s7 = inlined_call_operand.vmem [shape: f32[8,16,128], index: 7, kind: output, shape index: {}]
  %s8 = sld [smem:[#allocation0]]
  $region38: #{inverted_residual_pallas.1} parent=0
    _
  %s10 = ssub.s32 1, %s8
  %s11 = scalar_select 0, %s10, %s8
  // Predicated region
  $region2: #{inverted_residual_pallas.1} parent=0 // pred_check
    _
  $region3: #{inverted_residual_pallas.1} parent=0 // pred_check_branch
    %13 = sbr.rel (0) target = $region5
  $region4: #{inverted_residual_pallas.1} parent=0 // pred_region
    _
  $region5: #{inverted_residual_pallas.1} parent=0 // pred_fallthru
    _
  // Predicated region
  $region6: #{inverted_residual_pallas.1} parent=0 // pred_check
    _
  $region7: #{inverted_residual_pallas.1} parent=0 // pred_check_branch
    %15 = sbr.rel (0) target = $region9
  $region8: #{inverted_residual_pallas.1} parent=0 // pred_region
    _
  $region9: #{inverted_residual_pallas.1} parent=0 // pred_fallthru
    _
  // Predicated region
  $region10: #{inverted_residual_pallas.1} parent=0 // pred_check
    _
  $region11: #{inverted_residual_pallas.1} parent=0 // pred_check_branch
    %17 = sbr.rel (0) target = $region13
  $region12: #{inverted_residual_pallas.1} parent=0 // pred_region
    _
  $region13: #{inverted_residual_pallas.1} parent=0 // pred_fallthru
    _
  // Predicated region
  $region14: #{inverted_residual_pallas.1} parent=0 // pred_check
    _
  $region15: #{inverted_residual_pallas.1} parent=0 // pred_check_branch
    %19 = sbr.rel (0) target = $region17
  $region16: #{inverted_residual_pallas.1} parent=0 // pred_region
    _
  $region17: #{inverted_residual_pallas.1} parent=0 // pred_fallthru
    _
  // Predicated region
  $region18: #{inverted_residual_pallas.1} parent=0 // pred_check
    _
  $region19: #{inverted_residual_pallas.1} parent=0 // pred_check_branch
    %21 = sbr.rel (0) target = $region21
  $region20: #{inverted_residual_pallas.1} parent=0 // pred_region
    _
  $region21: #{inverted_residual_pallas.1} parent=0 // pred_fallthru
    _
  // Predicated region
  $region22: #{inverted_residual_pallas.1} parent=0 // pred_check
    _
  $region23: #{inverted_residual_pallas.1} parent=0 // pred_check_branch
    %23 = sbr.rel (0) target = $region25
  $region24: #{inverted_residual_pallas.1} parent=0 // pred_region
    _
  $region25: #{inverted_residual_pallas.1} parent=0 // pred_fallthru
    _
  // Predicated region
  $region26: #{inverted_residual_pallas.1} parent=0 // pred_check
    _
  $region27: #{inverted_residual_pallas.1} parent=0 // pred_check_branch
    %25 = sbr.rel (0) target = $region29
  $region28: #{inverted_residual_pallas.1} parent=0 // pred_region
    _
  $region29: #{inverted_residual_pallas.1} parent=0 // pred_fallthru
    _
  %v26 = vld [vmem:[%s0] sm:$0xff]
  %v27 = vld [vmem:[%s0 + $0x8] sm:$0xff]
  %v28 = vld [vmem:[%s0 + $0x10] sm:$0xff]
  %v29 = vld [vmem:[%s0 + $0x18] sm:$0xff]
  %v30 = vld [vmem:[%s0 + $0x20] sm:$0xff]
  %v31 = vld [vmem:[%s0 + $0x28] sm:$0xff]
  %v32 = vld [vmem:[%s0 + $0x30] sm:$0xff]
  %v33 = vld [vmem:[%s0 + $0x38] sm:$0xff]
  %v34 = vld [vmem:[%s0 + $0x40] sm:$0xff]
  %v35 = vld [vmem:[%s0 + $0x48] sm:$0xff]
  %v36 = vld [vmem:[%s0 + $0x50] sm:$0xff]
  %v37 = vld [vmem:[%s0 + $0x58] sm:$0xff]
  %v38 = vld [vmem:[%s0 + $0x60] sm:$0xff]
  %v39 = vld [vmem:[%s0 + $0x68] sm:$0xff]
  %v40 = vld [vmem:[%s0 + $0x70] sm:$0xff]
  %v41 = vld [vmem:[%s0 + $0x78] sm:$0xff]
  %v42 = vld [vmem:[%s1] sm:$0xff]
  %v43 = vld [vmem:[%s1 + $0x8] sm:$0xff]
  %v44 = vld [vmem:[%s1 + $0x10] sm:$0xff]
  %v45 = vld [vmem:[%s1 + $0x18] sm:$0xff]
  %v46 = vld [vmem:[%s1 + $0x20] sm:$0xff]
  %v47 = vld [vmem:[%s1 + $0x28] sm:$0xff]
  %v48 = vld [vmem:[%s1 + $0x30] sm:$0xff]
  %v49 = vld [vmem:[%s1 + $0x38] sm:$0xff]
  %v50 = vld [vmem:[%s1 + $0x40] sm:$0xff]
  %v51 = vld [vmem:[%s1 + $0x48] sm:$0xff]
  %v52 = vld [vmem:[%s1 + $0x50] sm:$0xff]
  %v53 = vld [vmem:[%s1 + $0x58] sm:$0xff]
  %v54 = vld [vmem:[%s1 + $0x60] sm:$0xff]
  %v55 = vld [vmem:[%s1 + $0x68] sm:$0xff]
  %v56 = vld [vmem:[%s1 + $0x70] sm:$0xff]
  %v57 = vld [vmem:[%s1 + $0x78] sm:$0xff]
  %v58 = vld [vmem:[%s1 + $0x80] sm:$0xff]
  %v59 = vld [vmem:[%s1 + $0x88] sm:$0xff]
  %v60 = vld [vmem:[%s1 + $0x90] sm:$0xff]
  %v61 = vld [vmem:[%s1 + $0x98] sm:$0xff]
  %v62 = vld [vmem:[%s1 + $0xa0] sm:$0xff]
  %v63 = vld [vmem:[%s1 + $0xa8] sm:$0xff]
  %v64 = vld [vmem:[%s1 + $0xb0] sm:$0xff]
  %v65 = vld [vmem:[%s1 + $0xb8] sm:$0xff]
  %v66 = vld [vmem:[%s1 + $0xc0] sm:$0xff]
  %v67 = vld [vmem:[%s1 + $0xc8] sm:$0xff]
  %v68 = vld [vmem:[%s1 + $0xd0] sm:$0xff]
  %v69 = vld [vmem:[%s1 + $0xd8] sm:$0xff]
  %v70 = vld [vmem:[%s1 + $0xe0] sm:$0xff]
  %v71 = vld [vmem:[%s1 + $0xe8] sm:$0xff]
  %v72 = vld [vmem:[%s1 + $0xf0] sm:$0xff]
  %v73 = vld [vmem:[%s1 + $0xf8] sm:$0xff]
  %v74 = vld [vmem:[%s2] sm:$0x3]
  %v76 = vlaneseq
  %v77 = vshrl.u32 %v76, 7
  %v78 = vsub.s32 0, %v77
  %v79 = vrot.slane %v74, %v78
  %v80 = vlaneseq
  %v81 = vshrl.u32 %v80, 7
  %v82 = vsub.s32 1, %v81
  %v83 = vrot.slane %v74, %v82
  %86 = vmatprep.subr.mxu0 %v43
  %87 = vmatpush1.msra.mxu0 %v42
  %88 = vmatprep.subr.mxu0 %v45
  %89 = vmatpush1.msra.mxu0 %v44
  %90 = vmatprep.subr.mxu0 %v47
  %91 = vmatpush1.msra.mxu0 %v46
  %92 = vmatprep.subr.mxu0 %v49
  %93 = vmatpush1.msra.mxu0 %v48
  %94 = vmatprep.subr.mxu0 %v51
  %95 = vmatpush1.msra.mxu0 %v50
  %96 = vmatprep.subr.mxu0 %v53
  %97 = vmatpush1.msra.mxu0 %v52
  %98 = vmatprep.subr.mxu0 %v55
  %99 = vmatpush1.msra.mxu0 %v54
  %100 = vmatprep.subr.mxu0 %v57
  %101 = vmatpush1.msra.mxu0 %v56
  %102 = vmatprep.subr.mxu0 %v59
  %103 = vmatpush1.msra.mxu0 %v58
  %104 = vmatprep.subr.mxu0 %v61
  %105 = vmatpush1.msra.mxu0 %v60
  %106 = vmatprep.subr.mxu0 %v63
  %107 = vmatpush1.msra.mxu0 %v62
  %108 = vmatprep.subr.mxu0 %v65
  %109 = vmatpush1.msra.mxu0 %v64
  %110 = vmatprep.subr.mxu0 %v67
  %111 = vmatpush1.msra.mxu0 %v66
  %112 = vmatprep.subr.mxu0 %v69
  %113 = vmatpush1.msra.mxu0 %v68
  %114 = vmatprep.subr.mxu0 %v71
  %115 = vmatpush1.msra.mxu0 %v70
  %116 = vmatprep.subr.mxu0 %v73
  %117 = vmatpush1.msra.mxu0 %v72
  %118 = vmatprep.subr.mxu0 0.0
  %119 = vmatpush1.msra.mxu0 0.0
  %120 = vmatprep.subr.mxu0 0.0
  %121 = vmatpush1.msra.mxu0 0.0
  %122 = vmatprep.subr.mxu0 0.0
  %123 = vmatpush1.msra.mxu0 0.0
  %124 = vmatprep.subr.mxu0 0.0
  %125 = vmatpush1.msra.mxu0 0.0
  %126 = vmatprep.subr.mxu0 0.0
  %127 = vmatpush1.msra.mxu0 0.0
  %128 = vmatprep.subr.mxu0 0.0
  %129 = vmatpush1.msra.mxu0 0.0
  %130 = vmatprep.subr.mxu0 0.0
  %131 = vmatpush1.msra.mxu0 0.0
  %132 = vmatprep.subr.mxu0 0.0
  %133 = vmatpush1.msra.mxu0 0.0
  %134 = vmatprep.subr.mxu0 0.0
  %135 = vmatpush1.msra.mxu0 0.0
  %136 = vmatprep.subr.mxu0 0.0
  %137 = vmatpush1.msra.mxu0 0.0
  %138 = vmatprep.subr.mxu0 0.0
  %139 = vmatpush1.msra.mxu0 0.0
  %140 = vmatprep.subr.mxu0 0.0
  %141 = vmatpush1.msra.mxu0 0.0
  %142 = vmatprep.subr.mxu0 0.0
  %143 = vmatpush1.msra.mxu0 0.0
  %144 = vmatprep.subr.mxu0 0.0
  %145 = vmatpush1.msra.mxu0 0.0
  %146 = vmatprep.subr.mxu0 0.0
  %147 = vmatpush1.msra.mxu0 0.0
  %148 = vmatprep.subr.mxu0 0.0
  %149 = vmatpush1.msra.mxu0 0.0
  %150 = vmatprep.mubr.f32.mxu0 0.0
  %151 = vmatmul.mubr.f32.gmra.mrb[0].mxu0 %v26
  %v152 = vpop.f32.mrb[0].mxu0
  %v153 = vadd.f32 %v79, %v152
  %v154 = vpop.f32.mrb[0].mxu0
  %v155 = vadd.f32 %v83, %v154
  %156 = vmatprep.mubr.f32.mxu0 0.0
  %157 = vmatmul.mubr.f32.gmra.mrb[0].mxu0 %v27
  %v158 = vpop.f32.mrb[0].mxu0
  %v159 = vadd.f32 %v79, %v158
  %v160 = vpop.f32.mrb[0].mxu0
  %v161 = vadd.f32 %v83, %v160
  %162 = vmatprep.mubr.f32.mxu0 0.0
  %163 = vmatmul.mubr.f32.gmra.mrb[0].mxu0 %v28
  %v164 = vpop.f32.mrb[0].mxu0
  %v165 = vadd.f32 %v79, %v164
  %v166 = vpop.f32.mrb[0].mxu0
  %v167 = vadd.f32 %v83, %v166
  %168 = vmatprep.mubr.f32.mxu0 0.0
  %169 = vmatmul.mubr.f32.gmra.mrb[0].mxu0 %v29
  %v170 = vpop.f32.mrb[0].mxu0
  %v171 = vadd.f32 %v79, %v170
  %v172 = vpop.f32.mrb[0].mxu0
  %v173 = vadd.f32 %v83, %v172
  %174 = vmatprep.mubr.f32.mxu0 0.0
  %175 = vmatmul.mubr.f32.gmra.mrb[0].mxu0 %v30
  %v176 = vpop.f32.mrb[0].mxu0
  %v177 = vadd.f32 %v79, %v176
  %v178 = vpop.f32.mrb[0].mxu0
  %v179 = vadd.f32 %v83, %v178
  %180 = vmatprep.mubr.f32.mxu0 0.0
  %181 = vmatmul.mubr.f32.gmra.mrb[0].mxu0 %v31
  %v182 = vpop.f32.mrb[0].mxu0
  %v183 = vadd.f32 %v79, %v182
  %v184 = vpop.f32.mrb[0].mxu0
  %v185 = vadd.f32 %v83, %v184
  %186 = vmatprep.mubr.f32.mxu0 0.0
  %187 = vmatmul.mubr.f32.gmra.mrb[0].mxu0 %v32
  %v188 = vpop.f32.mrb[0].mxu0
  %v189 = vadd.f32 %v79, %v188
  %v190 = vpop.f32.mrb[0].mxu0
  %v191 = vadd.f32 %v83, %v190
  %192 = vmatprep.mubr.f32.mxu0 0.0
  %193 = vmatmul.mubr.f32.gmra.mrb[0].mxu0 %v33
  %v194 = vpop.f32.mrb[0].mxu0
  %v195 = vadd.f32 %v79, %v194
  %v196 = vpop.f32.mrb[0].mxu0
  %v197 = vadd.f32 %v83, %v196
  %198 = vmatprep.mubr.f32.mxu0 0.0
  %199 = vmatmul.mubr.f32.gmra.mrb[0].mxu0 %v34
  %v200 = vpop.f32.mrb[0].mxu0
  %v201 = vadd.f32 %v79, %v200
  %v202 = vpop.f32.mrb[0].mxu0
  %v203 = vadd.f32 %v83, %v202
  %204 = vmatprep.mubr.f32.mxu0 0.0
  %205 = vmatmul.mubr.f32.gmra.mrb[0].mxu0 %v35
  %v206 = vpop.f32.mrb[0].mxu0
  %v207 = vadd.f32 %v79, %v206
  %v208 = vpop.f32.mrb[0].mxu0
  %v209 = vadd.f32 %v83, %v208
  %210 = vmatprep.mubr.f32.mxu0 0.0
  %211 = vmatmul.mubr.f32.gmra.mrb[0].mxu0 %v36
  %v212 = vpop.f32.mrb[0].mxu0
  %v213 = vadd.f32 %v79, %v212
  %v214 = vpop.f32.mrb[0].mxu0
  %v215 = vadd.f32 %v83, %v214
  %216 = vmatprep.mubr.f32.mxu0 0.0
  %217 = vmatmul.mubr.f32.gmra.mrb[0].mxu0 %v37
  %v218 = vpop.f32.mrb[0].mxu0
  %v219 = vadd.f32 %v79, %v218
  %v220 = vpop.f32.mrb[0].mxu0
  %v221 = vadd.f32 %v83, %v220
  %222 = vmatprep.mubr.f32.mxu0 0.0
  %223 = vmatmul.mubr.f32.gmra.mrb[0].mxu0 %v38
  %v224 = vpop.f32.mrb[0].mxu0
  %v225 = vadd.f32 %v79, %v224
  %v226 = vpop.f32.mrb[0].mxu0
  %v227 = vadd.f32 %v83, %v226
  %228 = vmatprep.mubr.f32.mxu0 0.0
  %229 = vmatmul.mubr.f32.gmra.mrb[0].mxu0 %v39
  %v230 = vpop.f32.mrb[0].mxu0
  %v231 = vadd.f32 %v79, %v230
  %v232 = vpop.f32.mrb[0].mxu0
  %v233 = vadd.f32 %v83, %v232
  %234 = vmatprep.mubr.f32.mxu0 0.0
  %235 = vmatmul.mubr.f32.gmra.mrb[0].mxu0 %v40
  %v236 = vpop.f32.mrb[0].mxu0
  %v237 = vadd.f32 %v79, %v236
  %v238 = vpop.f32.mrb[0].mxu0
  %v239 = vadd.f32 %v83, %v238
  %240 = vmatprep.mubr.f32.mxu0 0.0
  %241 = vmatmul.mubr.f32.gmra.mrb[0].mxu0 %v41
  %v242 = vpop.f32.mrb[0].mxu0
  %v243 = vadd.f32 %v79, %v242
  %v244 = vpop.f32.mrb[0].mxu0
  %v245 = vadd.f32 %v83, %v244
  %246 = vdwg.mxu0
  %v247 = vmax.f32 %v153, 0.0
  %v248 = vmax.f32 %v155, 0.0
  %v249 = vmax.f32 %v159, 0.0
  %v250 = vmax.f32 %v161, 0.0
  %v251 = vmax.f32 %v165, 0.0
  %v252 = vmax.f32 %v167, 0.0
  %v253 = vmax.f32 %v171, 0.0
  %v254 = vmax.f32 %v173, 0.0
  %v255 = vmax.f32 %v177, 0.0
  %v256 = vmax.f32 %v179, 0.0
  %v257 = vmax.f32 %v183, 0.0
  %v258 = vmax.f32 %v185, 0.0
  %v259 = vmax.f32 %v189, 0.0
  %v260 = vmax.f32 %v191, 0.0
  %v261 = vmax.f32 %v195, 0.0
  %v262 = vmax.f32 %v197, 0.0
  %v263 = vmax.f32 %v201, 0.0
  %v264 = vmax.f32 %v203, 0.0
  %v265 = vmax.f32 %v207, 0.0
  %v266 = vmax.f32 %v209, 0.0
  %v267 = vmax.f32 %v213, 0.0
  %v268 = vmax.f32 %v215, 0.0
  %v269 = vmax.f32 %v219, 0.0
  %v270 = vmax.f32 %v221, 0.0
  %v271 = vmax.f32 %v225, 0.0
  %v272 = vmax.f32 %v227, 0.0
  %v273 = vmax.f32 %v231, 0.0
  %v274 = vmax.f32 %v233, 0.0
  %v275 = vmax.f32 %v237, 0.0
  %v276 = vmax.f32 %v239, 0.0
  %v277 = vmax.f32 %v243, 0.0
  %v278 = vmax.f32 %v245, 0.0
  %v279 = vmin.f32 %v247, 6.0
  %v280 = vmin.f32 %v248, 6.0
  %v281 = vmin.f32 %v249, 6.0
  %v282 = vmin.f32 %v250, 6.0
  %v283 = vmin.f32 %v251, 6.0
  %v284 = vmin.f32 %v252, 6.0
  %v285 = vmin.f32 %v253, 6.0
  %v286 = vmin.f32 %v254, 6.0
  %v287 = vmin.f32 %v255, 6.0
  %v288 = vmin.f32 %v256, 6.0
  %v289 = vmin.f32 %v257, 6.0
  %v290 = vmin.f32 %v258, 6.0
  %v291 = vmin.f32 %v259, 6.0
  %v292 = vmin.f32 %v260, 6.0
  %v293 = vmin.f32 %v261, 6.0
  %v294 = vmin.f32 %v262, 6.0
  %v295 = vmin.f32 %v263, 6.0
  %v296 = vmin.f32 %v264, 6.0
  %v297 = vmin.f32 %v265, 6.0
  %v298 = vmin.f32 %v266, 6.0
  %v299 = vmin.f32 %v267, 6.0
  %v300 = vmin.f32 %v268, 6.0
  %v301 = vmin.f32 %v269, 6.0
  %v302 = vmin.f32 %v270, 6.0
  %v303 = vmin.f32 %v271, 6.0
  %v304 = vmin.f32 %v272, 6.0
  %v305 = vmin.f32 %v273, 6.0
  %v306 = vmin.f32 %v274, 6.0
  %v307 = vmin.f32 %v275, 6.0
  %v308 = vmin.f32 %v276, 6.0
  %v309 = vmin.f32 %v277, 6.0
  %v310 = vmin.f32 %v278, 6.0
  %343 = vrot.lane.b32.xlu0 %v279, 16
  %v344 = vpop.permute.xlu0 %343
  %345 = vrot.lane.b32.xlu0 %v280, 16
  %v346 = vpop.permute.xlu0 %345
  %347 = vrot.lane.b32.xlu0 %v281, 16
  %v348 = vpop.permute.xlu0 %347
  %349 = vrot.lane.b32.xlu0 %v282, 16
  %v350 = vpop.permute.xlu0 %349
  %351 = vrot.lane.b32.xlu0 %v283, 16
  %v352 = vpop.permute.xlu0 %351
  %353 = vrot.lane.b32.xlu0 %v284, 16
  %v354 = vpop.permute.xlu0 %353
  %355 = vrot.lane.b32.xlu0 %v285, 16
  %v356 = vpop.permute.xlu0 %355
  %357 = vrot.lane.b32.xlu0 %v286, 16
  %v358 = vpop.permute.xlu0 %357
  %359 = vrot.lane.b32.xlu0 %v287, 16
  %v360 = vpop.permute.xlu0 %359
  %361 = vrot.lane.b32.xlu0 %v288, 16
  %v362 = vpop.permute.xlu0 %361
  %363 = vrot.lane.b32.xlu0 %v289, 16
  %v364 = vpop.permute.xlu0 %363
  %365 = vrot.lane.b32.xlu0 %v290, 16
  %v366 = vpop.permute.xlu0 %365
  %367 = vrot.lane.b32.xlu0 %v291, 16
  %v368 = vpop.permute.xlu0 %367
  %369 = vrot.lane.b32.xlu0 %v292, 16
  %v370 = vpop.permute.xlu0 %369
  %371 = vrot.lane.b32.xlu0 %v293, 16
  %v372 = vpop.permute.xlu0 %371
  %373 = vrot.lane.b32.xlu0 %v294, 16
  %v374 = vpop.permute.xlu0 %373
  %375 = vrot.lane.b32.xlu0 %v295, 16
  %v376 = vpop.permute.xlu0 %375
  %377 = vrot.lane.b32.xlu0 %v296, 16
  %v378 = vpop.permute.xlu0 %377
  %379 = vrot.lane.b32.xlu0 %v297, 16
  %v380 = vpop.permute.xlu0 %379
  %381 = vrot.lane.b32.xlu0 %v298, 16
  %v382 = vpop.permute.xlu0 %381
  %383 = vrot.lane.b32.xlu0 %v299, 16
  %v384 = vpop.permute.xlu0 %383
  %385 = vrot.lane.b32.xlu0 %v300, 16
  %v386 = vpop.permute.xlu0 %385
  %387 = vrot.lane.b32.xlu0 %v301, 16
  %v388 = vpop.permute.xlu0 %387
  %389 = vrot.lane.b32.xlu0 %v302, 16
  %v390 = vpop.permute.xlu0 %389
  %391 = vrot.lane.b32.xlu0 %v303, 16
  %v392 = vpop.permute.xlu0 %391
  %393 = vrot.lane.b32.xlu0 %v304, 16
  %v394 = vpop.permute.xlu0 %393
  %395 = vrot.lane.b32.xlu0 %v305, 16
  %v396 = vpop.permute.xlu0 %395
  %397 = vrot.lane.b32.xlu0 %v306, 16
  %v398 = vpop.permute.xlu0 %397
  %399 = vrot.lane.b32.xlu0 %v307, 16
  %v400 = vpop.permute.xlu0 %399
  %401 = vrot.lane.b32.xlu0 %v308, 16
  %v402 = vpop.permute.xlu0 %401
  %403 = vrot.lane.b32.xlu0 %v309, 16
  %v404 = vpop.permute.xlu0 %403
  %405 = vrot.lane.b32.xlu0 %v310, 16
  %v406 = vpop.permute.xlu0 %405
  %vm407 = vcmask 130048
  %v408 = vsel %vm407, %v344, %v346
  %v409 = vsel %vm407, %v348, %v350
  %v410 = vsel %vm407, %v352, %v354
  %v411 = vsel %vm407, %v356, %v358
  %v412 = vsel %vm407, %v360, %v362
  %v413 = vsel %vm407, %v364, %v366
  %v414 = vsel %vm407, %v368, %v370
  %v415 = vsel %vm407, %v372, %v374
  %v416 = vsel %vm407, %v376, %v378
  %v417 = vsel %vm407, %v380, %v382
  %v418 = vsel %vm407, %v384, %v386
  %v419 = vsel %vm407, %v388, %v390
  %v420 = vsel %vm407, %v392, %v394
  %v421 = vsel %vm407, %v396, %v398
  %v422 = vsel %vm407, %v400, %v402
  %v423 = vsel %vm407, %v404, %v406
  %v456 = vsel %vm407, 0.0, %v344
  %v457 = vsel %vm407, 0.0, %v348
  %v458 = vsel %vm407, 0.0, %v352
  %v459 = vsel %vm407, 0.0, %v356
  %v460 = vsel %vm407, 0.0, %v360
  %v461 = vsel %vm407, 0.0, %v364
  %v462 = vsel %vm407, 0.0, %v368
  %v463 = vsel %vm407, 0.0, %v372
  %v464 = vsel %vm407, 0.0, %v376
  %v465 = vsel %vm407, 0.0, %v380
  %v466 = vsel %vm407, 0.0, %v384
  %v467 = vsel %vm407, 0.0, %v388
  %v468 = vsel %vm407, 0.0, %v392
  %v469 = vsel %vm407, 0.0, %v396
  %v470 = vsel %vm407, 0.0, %v400
  %v471 = vsel %vm407, 0.0, %v404
  %v472 = vsel %vm407, %v346, 0.0
  %v473 = vsel %vm407, %v350, 0.0
  %v474 = vsel %vm407, %v354, 0.0
  %v475 = vsel %vm407, %v358, 0.0
  %v476 = vsel %vm407, %v362, 0.0
  %v477 = vsel %vm407, %v366, 0.0
  %v478 = vsel %vm407, %v370, 0.0
  %v479 = vsel %vm407, %v374, 0.0
  %v480 = vsel %vm407, %v378, 0.0
  %v481 = vsel %vm407, %v382, 0.0
  %v482 = vsel %vm407, %v386, 0.0
  %v483 = vsel %vm407, %v390, 0.0
  %v484 = vsel %vm407, %v394, 0.0
  %v485 = vsel %vm407, %v398, 0.0
  %v486 = vsel %vm407, %v402, 0.0
  %v487 = vsel %vm407, %v406, 0.0
  %vm520 = vcmask 1040384
  %v521 = vrot.slane %v456, 7
  %v522 = vrot.slane %v408, 7
  %v523 = vrot.slane %v472, 7
  %v524 = vrot.slane %v457, 7
  %v525 = vsel %vm520, %v521, %v524
  %v526 = vrot.slane %v409, 7
  %v527 = vsel %vm520, %v522, %v526
  %v528 = vrot.slane %v473, 7
  %v529 = vsel %vm520, %v523, %v528
  %v530 = vrot.slane %v458, 7
  %v531 = vrot.slane %v410, 7
  %v532 = vrot.slane %v474, 7
  %v533 = vrot.slane %v459, 7
  %v534 = vsel %vm520, %v530, %v533
  %v535 = vrot.slane %v411, 7
  %v536 = vsel %vm520, %v531, %v535
  %v537 = vrot.slane %v475, 7
  %v538 = vsel %vm520, %v532, %v537
  %v539 = vrot.slane %v460, 7
  %v540 = vrot.slane %v412, 7
  %v541 = vrot.slane %v476, 7
  %v542 = vrot.slane %v461, 7
  %v543 = vsel %vm520, %v539, %v542
  %v544 = vrot.slane %v413, 7
  %v545 = vsel %vm520, %v540, %v544
  %v546 = vrot.slane %v477, 7
  %v547 = vsel %vm520, %v541, %v546
  %v548 = vrot.slane %v462, 7
  %v549 = vrot.slane %v414, 7
  %v550 = vrot.slane %v478, 7
  %v551 = vrot.slane %v463, 7
  %v552 = vsel %vm520, %v548, %v551
  %v553 = vrot.slane %v415, 7
  %v554 = vsel %vm520, %v549, %v553
  %v555 = vrot.slane %v479, 7
  %v556 = vsel %vm520, %v550, %v555
  %v557 = vrot.slane %v464, 7
  %v558 = vrot.slane %v416, 7
  %v559 = vrot.slane %v480, 7
  %v560 = vrot.slane %v465, 7
  %v561 = vsel %vm520, %v557, %v560
  %v562 = vrot.slane %v417, 7
  %v563 = vsel %vm520, %v558, %v562
  %v564 = vrot.slane %v481, 7
  %v565 = vsel %vm520, %v559, %v564
  %v566 = vrot.slane %v466, 7
  %v567 = vrot.slane %v418, 7
  %v568 = vrot.slane %v482, 7
  %v569 = vrot.slane %v467, 7
  %v570 = vsel %vm520, %v566, %v569
  %v571 = vrot.slane %v419, 7
  %v572 = vsel %vm520, %v567, %v571
  %v573 = vrot.slane %v483, 7
  %v574 = vsel %vm520, %v568, %v573
  %v575 = vrot.slane %v468, 7
  %v576 = vrot.slane %v420, 7
  %v577 = vrot.slane %v484, 7
  %v578 = vrot.slane %v469, 7
  %v579 = vsel %vm520, %v575, %v578
  %v580 = vrot.slane %v421, 7
  %v581 = vsel %vm520, %v576, %v580
  %v582 = vrot.slane %v485, 7
  %v583 = vsel %vm520, %v577, %v582
  %v584 = vrot.slane %v470, 7
  %v585 = vrot.slane %v422, 7
  %v586 = vrot.slane %v486, 7
  %v587 = vrot.slane %v471, 7
  %v588 = vsel %vm520, %v584, %v587
  %v589 = vrot.slane %v423, 7
  %v590 = vsel %vm520, %v585, %v589
  %v591 = vrot.slane %v487, 7
  %v592 = vsel %vm520, %v586, %v591
  %v665 = vsel %vm520, 0.0, %v521
  %v666 = vsel %vm520, 0.0, %v522
  %v667 = vsel %vm520, 0.0, %v523
  %v668 = vsel %vm520, 0.0, %v530
  %v669 = vsel %vm520, 0.0, %v531
  %v670 = vsel %vm520, 0.0, %v532
  %v671 = vsel %vm520, 0.0, %v539
  %v672 = vsel %vm520, 0.0, %v540
  %v673 = vsel %vm520, 0.0, %v541
  %v674 = vsel %vm520, 0.0, %v548
  %v675 = vsel %vm520, 0.0, %v549
  %v676 = vsel %vm520, 0.0, %v550
  %v677 = vsel %vm520, 0.0, %v557
  %v678 = vsel %vm520, 0.0, %v558
  %v679 = vsel %vm520, 0.0, %v559
  %v680 = vsel %vm520, 0.0, %v566
  %v681 = vsel %vm520, 0.0, %v567
  %v682 = vsel %vm520, 0.0, %v568
  %v683 = vsel %vm520, 0.0, %v575
  %v684 = vsel %vm520, 0.0, %v576
  %v685 = vsel %vm520, 0.0, %v577
  %v686 = vsel %vm520, 0.0, %v584
  %v687 = vsel %vm520, 0.0, %v585
  %v688 = vsel %vm520, 0.0, %v586
  %v689 = vsel %vm520, %v524, 0.0
  %v690 = vsel %vm520, %v526, 0.0
  %v691 = vsel %vm520, %v528, 0.0
  %v692 = vsel %vm520, %v533, 0.0
  %v693 = vsel %vm520, %v535, 0.0
  %v694 = vsel %vm520, %v537, 0.0
  %v695 = vsel %vm520, %v542, 0.0
  %v696 = vsel %vm520, %v544, 0.0
  %v697 = vsel %vm520, %v546, 0.0
  %v698 = vsel %vm520, %v551, 0.0
  %v699 = vsel %vm520, %v553, 0.0
  %v700 = vsel %vm520, %v555, 0.0
  %v701 = vsel %vm520, %v560, 0.0
  %v702 = vsel %vm520, %v562, 0.0
  %v703 = vsel %vm520, %v564, 0.0
  %v704 = vsel %vm520, %v569, 0.0
  %v705 = vsel %vm520, %v571, 0.0
  %v706 = vsel %vm520, %v573, 0.0
  %v707 = vsel %vm520, %v578, 0.0
  %v708 = vsel %vm520, %v580, 0.0
  %v709 = vsel %vm520, %v582, 0.0
  %v710 = vsel %vm520, %v587, 0.0
  %v711 = vsel %vm520, %v589, 0.0
  %v712 = vsel %vm520, %v591, 0.0
  %v713 = vld [vmem:[%s3] sm:$0xff]
  %v714 = vld [vmem:[%s3 + $0x8] sm:$0xff]
  %v715 = vld [vmem:[%s3 + $0x10] sm:$0x1]
  %v716 = vld [vmem:[%s3 + $0x18] sm:$0x1]
  %v717 = vlaneseq
  %v718 = vshrl.u32 %v717, 7
  %v719 = vsub.s32 0, %v718
  %v720 = vrot.slane %v713, %v719
  %v721 = vlaneseq
  %v722 = vshrl.u32 %v721, 7
  %v723 = vsub.s32 0, %v722
  %v724 = vrot.slane %v714, %v723
  %v725 = vmul.f32 %v665, %v720
  %v726 = vmul.f32 %v666, %v724
  %v727 = vmul.f32 %v525, %v720
  %v728 = vmul.f32 %v527, %v724
  %v729 = vmul.f32 %v668, %v720
  %v730 = vmul.f32 %v669, %v724
  %v731 = vmul.f32 %v534, %v720
  %v732 = vmul.f32 %v536, %v724
  %v733 = vmul.f32 %v671, %v720
  %v734 = vmul.f32 %v672, %v724
  %v735 = vmul.f32 %v543, %v720
  %v736 = vmul.f32 %v545, %v724
  %v737 = vmul.f32 %v674, %v720
  %v738 = vmul.f32 %v675, %v724
  %v739 = vmul.f32 %v552, %v720
  %v740 = vmul.f32 %v554, %v724
  %v741 = vmul.f32 %v677, %v720
  %v742 = vmul.f32 %v678, %v724
  %v743 = vmul.f32 %v561, %v720
  %v744 = vmul.f32 %v563, %v724
  %v745 = vmul.f32 %v680, %v720
  %v746 = vmul.f32 %v681, %v724
  %v747 = vmul.f32 %v570, %v720
  %v748 = vmul.f32 %v572, %v724
  %v749 = vmul.f32 %v683, %v720
  %v750 = vmul.f32 %v684, %v724
  %v751 = vmul.f32 %v579, %v720
  %v752 = vmul.f32 %v581, %v724
  %v753 = vmul.f32 %v686, %v720
  %v754 = vmul.f32 %v687, %v724
  %v755 = vmul.f32 %v588, %v720
  %v756 = vmul.f32 %v590, %v724
  %v757 = vlaneseq
  %v758 = vshrl.u32 %v757, 7
  %v759 = vsub.s32 3, %v758
  %v760 = vrot.slane %v713, %v759
  %v761 = vlaneseq
  %v762 = vshrl.u32 %v761, 7
  %v763 = vsub.s32 3, %v762
  %v764 = vrot.slane %v714, %v763
  %v765 = vmul.f32 %v665, %v760
  %v766 = vmul.f32 %v666, %v764
  %v767 = vmul.f32 %v525, %v760
  %v768 = vmul.f32 %v527, %v764
  %v769 = vmul.f32 %v689, %v760
  %v770 = vmul.f32 %v690, %v764
  %v771 = vmul.f32 %v668, %v760
  %v772 = vmul.f32 %v669, %v764
  %v773 = vmul.f32 %v534, %v760
  %v774 = vmul.f32 %v536, %v764
  %v775 = vmul.f32 %v692, %v760
  %v776 = vmul.f32 %v693, %v764
  %v777 = vmul.f32 %v671, %v760
  %v778 = vmul.f32 %v672, %v764
  %v779 = vmul.f32 %v543, %v760
  %v780 = vmul.f32 %v545, %v764
  %v781 = vmul.f32 %v695, %v760
  %v782 = vmul.f32 %v696, %v764
  %v783 = vmul.f32 %v674, %v760
  %v784 = vmul.f32 %v675, %v764
  %v785 = vmul.f32 %v552, %v760
  %v786 = vmul.f32 %v554, %v764
  %v787 = vmul.f32 %v698, %v760
  %v788 = vmul.f32 %v699, %v764
  %v789 = vmul.f32 %v677, %v760
  %v790 = vmul.f32 %v678, %v764
  %v791 = vmul.f32 %v561, %v760
  %v792 = vmul.f32 %v563, %v764
  %v793 = vmul.f32 %v701, %v760
  %v794 = vmul.f32 %v702, %v764
  %v795 = vmul.f32 %v680, %v760
  %v796 = vmul.f32 %v681, %v764
  %v797 = vmul.f32 %v570, %v760
  %v798 = vmul.f32 %v572, %v764
  %v799 = vmul.f32 %v704, %v760
  %v800 = vmul.f32 %v705, %v764
  %v801 = vmul.f32 %v683, %v760
  %v802 = vmul.f32 %v684, %v764
  %v803 = vmul.f32 %v579, %v760
  %v804 = vmul.f32 %v581, %v764
  %v805 = vmul.f32 %v707, %v760
  %v806 = vmul.f32 %v708, %v764
  %v807 = vmul.f32 %v686, %v760
  %v808 = vmul.f32 %v687, %v764
  %v809 = vmul.f32 %v588, %v760
  %v810 = vmul.f32 %v590, %v764
  %v811 = vmul.f32 %v710, %v760
  %v812 = vmul.f32 %v711, %v764
  %vm861 = vcmask 1046528
  %v862 = vrot.slane %v765, 1
  %v863 = vrot.slane %v767, 1
  %v864 = vsel %vm861, %v862, %v863
  %v865 = vrot.slane %v766, 1
  %v866 = vrot.slane %v768, 1
  %v867 = vsel %vm861, %v865, %v866
  %v868 = vrot.slane %v769, 1
  %v869 = vsel %vm861, %v863, %v868
  %v870 = vrot.slane %v770, 1
  %v871 = vsel %vm861, %v866, %v870
  %v872 = vrot.slane %v771, 1
  %v873 = vrot.slane %v773, 1
  %v874 = vsel %vm861, %v872, %v873
  %v875 = vrot.slane %v772, 1
  %v876 = vrot.slane %v774, 1
  %v877 = vsel %vm861, %v875, %v876
  %v878 = vrot.slane %v775, 1
  %v879 = vsel %vm861, %v873, %v878
  %v880 = vrot.slane %v776, 1
  %v881 = vsel %vm861, %v876, %v880
  %v882 = vrot.slane %v777, 1
  %v883 = vrot.slane %v779, 1
  %v884 = vsel %vm861, %v882, %v883
  %v885 = vrot.slane %v778, 1
  %v886 = vrot.slane %v780, 1
  %v887 = vsel %vm861, %v885, %v886
  %v888 = vrot.slane %v781, 1
  %v889 = vsel %vm861, %v883, %v888
  %v890 = vrot.slane %v782, 1
  %v891 = vsel %vm861, %v886, %v890
  %v892 = vrot.slane %v783, 1
  %v893 = vrot.slane %v785, 1
  %v894 = vsel %vm861, %v892, %v893
  %v895 = vrot.slane %v784, 1
  %v896 = vrot.slane %v786, 1
  %v897 = vsel %vm861, %v895, %v896
  %v898 = vrot.slane %v787, 1
  %v899 = vsel %vm861, %v893, %v898
  %v900 = vrot.slane %v788, 1
  %v901 = vsel %vm861, %v896, %v900
  %v902 = vrot.slane %v789, 1
  %v903 = vrot.slane %v791, 1
  %v904 = vsel %vm861, %v902, %v903
  %v905 = vrot.slane %v790, 1
  %v906 = vrot.slane %v792, 1
  %v907 = vsel %vm861, %v905, %v906
  %v908 = vrot.slane %v793, 1
  %v909 = vsel %vm861, %v903, %v908
  %v910 = vrot.slane %v794, 1
  %v911 = vsel %vm861, %v906, %v910
  %v912 = vrot.slane %v795, 1
  %v913 = vrot.slane %v797, 1
  %v914 = vsel %vm861, %v912, %v913
  %v915 = vrot.slane %v796, 1
  %v916 = vrot.slane %v798, 1
  %v917 = vsel %vm861, %v915, %v916
  %v918 = vrot.slane %v799, 1
  %v919 = vsel %vm861, %v913, %v918
  %v920 = vrot.slane %v800, 1
  %v921 = vsel %vm861, %v916, %v920
  %v922 = vrot.slane %v801, 1
  %v923 = vrot.slane %v803, 1
  %v924 = vsel %vm861, %v922, %v923
  %v925 = vrot.slane %v802, 1
  %v926 = vrot.slane %v804, 1
  %v927 = vsel %vm861, %v925, %v926
  %v928 = vrot.slane %v805, 1
  %v929 = vsel %vm861, %v923, %v928
  %v930 = vrot.slane %v806, 1
  %v931 = vsel %vm861, %v926, %v930
  %v932 = vrot.slane %v807, 1
  %v933 = vrot.slane %v809, 1
  %v934 = vsel %vm861, %v932, %v933
  %v935 = vrot.slane %v808, 1
  %v936 = vrot.slane %v810, 1
  %v937 = vsel %vm861, %v935, %v936
  %v938 = vrot.slane %v811, 1
  %v939 = vsel %vm861, %v933, %v938
  %v940 = vrot.slane %v812, 1
  %v941 = vsel %vm861, %v936, %v940
  %v974 = vadd.f32 %v725, %v864
  %v975 = vadd.f32 %v726, %v867
  %v976 = vadd.f32 %v727, %v869
  %v977 = vadd.f32 %v728, %v871
  %v978 = vadd.f32 %v729, %v874
  %v979 = vadd.f32 %v730, %v877
  %v980 = vadd.f32 %v731, %v879
  %v981 = vadd.f32 %v732, %v881
  %v982 = vadd.f32 %v733, %v884
  %v983 = vadd.f32 %v734, %v887
  %v984 = vadd.f32 %v735, %v889
  %v985 = vadd.f32 %v736, %v891
  %v986 = vadd.f32 %v737, %v894
  %v987 = vadd.f32 %v738, %v897
  %v988 = vadd.f32 %v739, %v899
  %v989 = vadd.f32 %v740, %v901
  %v990 = vadd.f32 %v741, %v904
  %v991 = vadd.f32 %v742, %v907
  %v992 = vadd.f32 %v743, %v909
  %v993 = vadd.f32 %v744, %v911
  %v994 = vadd.f32 %v745, %v914
  %v995 = vadd.f32 %v746, %v917
  %v996 = vadd.f32 %v747, %v919
  %v997 = vadd.f32 %v748, %v921
  %v998 = vadd.f32 %v749, %v924
  %v999 = vadd.f32 %v750, %v927
  %v1000 = vadd.f32 %v751, %v929
  %v1001 = vadd.f32 %v752, %v931
  %v1002 = vadd.f32 %v753, %v934
  %v1003 = vadd.f32 %v754, %v937
  %v1004 = vadd.f32 %v755, %v939
  %v1005 = vadd.f32 %v756, %v941
  %v1006 = vlaneseq
  %v1007 = vshrl.u32 %v1006, 7
  %v1008 = vsub.s32 6, %v1007
  %v1009 = vrot.slane %v713, %v1008
  %v1010 = vlaneseq
  %v1011 = vshrl.u32 %v1010, 7
  %v1012 = vsub.s32 6, %v1011
  %v1013 = vrot.slane %v714, %v1012
  %v1014 = vmul.f32 %v665, %v1009
  %v1015 = vmul.f32 %v666, %v1013
  %v1016 = vmul.f32 %v525, %v1009
  %v1017 = vmul.f32 %v527, %v1013
  %v1018 = vmul.f32 %v689, %v1009
  %v1019 = vmul.f32 %v690, %v1013
  %v1020 = vmul.f32 %v668, %v1009
  %v1021 = vmul.f32 %v669, %v1013
  %v1022 = vmul.f32 %v534, %v1009
  %v1023 = vmul.f32 %v536, %v1013
  %v1024 = vmul.f32 %v692, %v1009
  %v1025 = vmul.f32 %v693, %v1013
  %v1026 = vmul.f32 %v671, %v1009
  %v1027 = vmul.f32 %v672, %v1013
  %v1028 = vmul.f32 %v543, %v1009
  %v1029 = vmul.f32 %v545, %v1013
  %v1030 = vmul.f32 %v695, %v1009
  %v1031 = vmul.f32 %v696, %v1013
  %v1032 = vmul.f32 %v674, %v1009
  %v1033 = vmul.f32 %v675, %v1013
  %v1034 = vmul.f32 %v552, %v1009
  %v1035 = vmul.f32 %v554, %v1013
  %v1036 = vmul.f32 %v698, %v1009
  %v1037 = vmul.f32 %v699, %v1013
  %v1038 = vmul.f32 %v677, %v1009
  %v1039 = vmul.f32 %v678, %v1013
  %v1040 = vmul.f32 %v561, %v1009
  %v1041 = vmul.f32 %v563, %v1013
  %v1042 = vmul.f32 %v701, %v1009
  %v1043 = vmul.f32 %v702, %v1013
  %v1044 = vmul.f32 %v680, %v1009
  %v1045 = vmul.f32 %v681, %v1013
  %v1046 = vmul.f32 %v570, %v1009
  %v1047 = vmul.f32 %v572, %v1013
  %v1048 = vmul.f32 %v704, %v1009
  %v1049 = vmul.f32 %v705, %v1013
  %v1050 = vmul.f32 %v683, %v1009
  %v1051 = vmul.f32 %v684, %v1013
  %v1052 = vmul.f32 %v579, %v1009
  %v1053 = vmul.f32 %v581, %v1013
  %v1054 = vmul.f32 %v707, %v1009
  %v1055 = vmul.f32 %v708, %v1013
  %v1056 = vmul.f32 %v686, %v1009
  %v1057 = vmul.f32 %v687, %v1013
  %v1058 = vmul.f32 %v588, %v1009
  %v1059 = vmul.f32 %v590, %v1013
  %v1060 = vmul.f32 %v710, %v1009
  %v1061 = vmul.f32 %v711, %v1013
  %vm1110 = vcmask 1045504
  %v1111 = vrot.slane %v1014, 2
  %v1112 = vrot.slane %v1016, 2
  %v1113 = vsel %vm1110, %v1111, %v1112
  %v1114 = vrot.slane %v1015, 2
  %v1115 = vrot.slane %v1017, 2
  %v1116 = vsel %vm1110, %v1114, %v1115
  %v1117 = vrot.slane %v1018, 2
  %v1118 = vsel %vm1110, %v1112, %v1117
  %v1119 = vrot.slane %v1019, 2
  %v1120 = vsel %vm1110, %v1115, %v1119
  %v1121 = vrot.slane %v1020, 2
  %v1122 = vrot.slane %v1022, 2
  %v1123 = vsel %vm1110, %v1121, %v1122
  %v1124 = vrot.slane %v1021, 2
  %v1125 = vrot.slane %v1023, 2
  %v1126 = vsel %vm1110, %v1124, %v1125
  %v1127 = vrot.slane %v1024, 2
  %v1128 = vsel %vm1110, %v1122, %v1127
  %v1129 = vrot.slane %v1025, 2
  %v1130 = vsel %vm1110, %v1125, %v1129
  %v1131 = vrot.slane %v1026, 2
  %v1132 = vrot.slane %v1028, 2
  %v1133 = vsel %vm1110, %v1131, %v1132
  %v1134 = vrot.slane %v1027, 2
  %v1135 = vrot.slane %v1029, 2
  %v1136 = vsel %vm1110, %v1134, %v1135
  %v1137 = vrot.slane %v1030, 2
  %v1138 = vsel %vm1110, %v1132, %v1137
  %v1139 = vrot.slane %v1031, 2
  %v1140 = vsel %vm1110, %v1135, %v1139
  %v1141 = vrot.slane %v1032, 2
  %v1142 = vrot.slane %v1034, 2
  %v1143 = vsel %vm1110, %v1141, %v1142
  %v1144 = vrot.slane %v1033, 2
  %v1145 = vrot.slane %v1035, 2
  %v1146 = vsel %vm1110, %v1144, %v1145
  %v1147 = vrot.slane %v1036, 2
  %v1148 = vsel %vm1110, %v1142, %v1147
  %v1149 = vrot.slane %v1037, 2
  %v1150 = vsel %vm1110, %v1145, %v1149
  %v1151 = vrot.slane %v1038, 2
  %v1152 = vrot.slane %v1040, 2
  %v1153 = vsel %vm1110, %v1151, %v1152
  %v1154 = vrot.slane %v1039, 2
  %v1155 = vrot.slane %v1041, 2
  %v1156 = vsel %vm1110, %v1154, %v1155
  %v1157 = vrot.slane %v1042, 2
  %v1158 = vsel %vm1110, %v1152, %v1157
  %v1159 = vrot.slane %v1043, 2
  %v1160 = vsel %vm1110, %v1155, %v1159
  %v1161 = vrot.slane %v1044, 2
  %v1162 = vrot.slane %v1046, 2
  %v1163 = vsel %vm1110, %v1161, %v1162
  %v1164 = vrot.slane %v1045, 2
  %v1165 = vrot.slane %v1047, 2
  %v1166 = vsel %vm1110, %v1164, %v1165
  %v1167 = vrot.slane %v1048, 2
  %v1168 = vsel %vm1110, %v1162, %v1167
  %v1169 = vrot.slane %v1049, 2
  %v1170 = vsel %vm1110, %v1165, %v1169
  %v1171 = vrot.slane %v1050, 2
  %v1172 = vrot.slane %v1052, 2
  %v1173 = vsel %vm1110, %v1171, %v1172
  %v1174 = vrot.slane %v1051, 2
  %v1175 = vrot.slane %v1053, 2
  %v1176 = vsel %vm1110, %v1174, %v1175
  %v1177 = vrot.slane %v1054, 2
  %v1178 = vsel %vm1110, %v1172, %v1177
  %v1179 = vrot.slane %v1055, 2
  %v1180 = vsel %vm1110, %v1175, %v1179
  %v1181 = vrot.slane %v1056, 2
  %v1182 = vrot.slane %v1058, 2
  %v1183 = vsel %vm1110, %v1181, %v1182
  %v1184 = vrot.slane %v1057, 2
  %v1185 = vrot.slane %v1059, 2
  %v1186 = vsel %vm1110, %v1184, %v1185
  %v1187 = vrot.slane %v1060, 2
  %v1188 = vsel %vm1110, %v1182, %v1187
  %v1189 = vrot.slane %v1061, 2
  %v1190 = vsel %vm1110, %v1185, %v1189
  %v1223 = vadd.f32 %v974, %v1113
  %v1224 = vadd.f32 %v975, %v1116
  %v1225 = vadd.f32 %v976, %v1118
  %v1226 = vadd.f32 %v977, %v1120
  %v1227 = vadd.f32 %v978, %v1123
  %v1228 = vadd.f32 %v979, %v1126
  %v1229 = vadd.f32 %v980, %v1128
  %v1230 = vadd.f32 %v981, %v1130
  %v1231 = vadd.f32 %v982, %v1133
  %v1232 = vadd.f32 %v983, %v1136
  %v1233 = vadd.f32 %v984, %v1138
  %v1234 = vadd.f32 %v985, %v1140
  %v1235 = vadd.f32 %v986, %v1143
  %v1236 = vadd.f32 %v987, %v1146
  %v1237 = vadd.f32 %v988, %v1148
  %v1238 = vadd.f32 %v989, %v1150
  %v1239 = vadd.f32 %v990, %v1153
  %v1240 = vadd.f32 %v991, %v1156
  %v1241 = vadd.f32 %v992, %v1158
  %v1242 = vadd.f32 %v993, %v1160
  %v1243 = vadd.f32 %v994, %v1163
  %v1244 = vadd.f32 %v995, %v1166
  %v1245 = vadd.f32 %v996, %v1168
  %v1246 = vadd.f32 %v997, %v1170
  %v1247 = vadd.f32 %v998, %v1173
  %v1248 = vadd.f32 %v999, %v1176
  %v1249 = vadd.f32 %v1000, %v1178
  %v1250 = vadd.f32 %v1001, %v1180
  %v1251 = vadd.f32 %v1002, %v1183
  %v1252 = vadd.f32 %v1003, %v1186
  %v1253 = vadd.f32 %v1004, %v1188
  %v1254 = vadd.f32 %v1005, %v1190
  %v1255 = vlaneseq
  %v1256 = vshrl.u32 %v1255, 7
  %v1257 = vsub.s32 1, %v1256
  %v1258 = vrot.slane %v713, %v1257
  %v1259 = vlaneseq
  %v1260 = vshrl.u32 %v1259, 7
  %v1261 = vsub.s32 1, %v1260
  %v1262 = vrot.slane %v714, %v1261
  %1265 = vrot.lane.b32.xlu0 %v1258, 16
  %v1266 = vpop.permute.xlu0 %1265
  %1267 = vrot.lane.b32.xlu0 %v1262, 16
  %v1268 = vpop.permute.xlu0 %1267
  %v1269 = vsel %vm407, %v1266, %v1268
  %v1273 = vmul.f32 %v665, %v1266
  %v1274 = vmul.f32 %v666, %v1269
  %v1275 = vmul.f32 %v667, %v1268
  %v1276 = vmul.f32 %v525, %v1266
  %v1277 = vmul.f32 %v527, %v1269
  %v1278 = vmul.f32 %v529, %v1268
  %v1279 = vmul.f32 %v668, %v1266
  %v1280 = vmul.f32 %v669, %v1269
  %v1281 = vmul.f32 %v670, %v1268
  %v1282 = vmul.f32 %v534, %v1266
  %v1283 = vmul.f32 %v536, %v1269
  %v1284 = vmul.f32 %v538, %v1268
  %v1285 = vmul.f32 %v671, %v1266
  %v1286 = vmul.f32 %v672, %v1269
  %v1287 = vmul.f32 %v673, %v1268
  %v1288 = vmul.f32 %v543, %v1266
  %v1289 = vmul.f32 %v545, %v1269
  %v1290 = vmul.f32 %v547, %v1268
  %v1291 = vmul.f32 %v674, %v1266
  %v1292 = vmul.f32 %v675, %v1269
  %v1293 = vmul.f32 %v676, %v1268
  %v1294 = vmul.f32 %v552, %v1266
  %v1295 = vmul.f32 %v554, %v1269
  %v1296 = vmul.f32 %v556, %v1268
  %v1297 = vmul.f32 %v677, %v1266
  %v1298 = vmul.f32 %v678, %v1269
  %v1299 = vmul.f32 %v679, %v1268
  %v1300 = vmul.f32 %v561, %v1266
  %v1301 = vmul.f32 %v563, %v1269
  %v1302 = vmul.f32 %v565, %v1268
  %v1303 = vmul.f32 %v680, %v1266
  %v1304 = vmul.f32 %v681, %v1269
  %v1305 = vmul.f32 %v682, %v1268
  %v1306 = vmul.f32 %v570, %v1266
  %v1307 = vmul.f32 %v572, %v1269
  %v1308 = vmul.f32 %v574, %v1268
  %v1309 = vmul.f32 %v683, %v1266
  %v1310 = vmul.f32 %v684, %v1269
  %v1311 = vmul.f32 %v685, %v1268
  %v1312 = vmul.f32 %v579, %v1266
  %v1313 = vmul.f32 %v581, %v1269
  %v1314 = vmul.f32 %v583, %v1268
  %v1315 = vmul.f32 %v686, %v1266
  %v1316 = vmul.f32 %v687, %v1269
  %v1317 = vmul.f32 %v688, %v1268
  %v1318 = vmul.f32 %v588, %v1266
  %v1319 = vmul.f32 %v590, %v1269
  %v1320 = vmul.f32 %v592, %v1268
  %1369 = vrot.lane.b32.xlu0 %v1273, 112
  %v1370 = vpop.permute.xlu0 %1369
  %1371 = vrot.lane.b32.xlu0 %v1274, 112
  %v1372 = vpop.permute.xlu0 %1371
  %1373 = vrot.lane.b32.xlu0 %v1275, 112
  %v1374 = vpop.permute.xlu0 %1373
  %1375 = vrot.lane.b32.xlu0 %v1276, 112
  %v1376 = vpop.permute.xlu0 %1375
  %1377 = vrot.lane.b32.xlu0 %v1277, 112
  %v1378 = vpop.permute.xlu0 %1377
  %1379 = vrot.lane.b32.xlu0 %v1278, 112
  %v1380 = vpop.permute.xlu0 %1379
  %1381 = vrot.lane.b32.xlu0 %v1279, 112
  %v1382 = vpop.permute.xlu0 %1381
  %1383 = vrot.lane.b32.xlu0 %v1280, 112
  %v1384 = vpop.permute.xlu0 %1383
  %1385 = vrot.lane.b32.xlu0 %v1281, 112
  %v1386 = vpop.permute.xlu0 %1385
  %1387 = vrot.lane.b32.xlu0 %v1282, 112
  %v1388 = vpop.permute.xlu0 %1387
  %1389 = vrot.lane.b32.xlu0 %v1283, 112
  %v1390 = vpop.permute.xlu0 %1389
  %1391 = vrot.lane.b32.xlu0 %v1284, 112
  %v1392 = vpop.permute.xlu0 %1391
  %1393 = vrot.lane.b32.xlu0 %v1285, 112
  %v1394 = vpop.permute.xlu0 %1393
  %1395 = vrot.lane.b32.xlu0 %v1286, 112
  %v1396 = vpop.permute.xlu0 %1395
  %1397 = vrot.lane.b32.xlu0 %v1287, 112
  %v1398 = vpop.permute.xlu0 %1397
  %1399 = vrot.lane.b32.xlu0 %v1288, 112
  %v1400 = vpop.permute.xlu0 %1399
  %1401 = vrot.lane.b32.xlu0 %v1289, 112
  %v1402 = vpop.permute.xlu0 %1401
  %1403 = vrot.lane.b32.xlu0 %v1290, 112
  %v1404 = vpop.permute.xlu0 %1403
  %1405 = vrot.lane.b32.xlu0 %v1291, 112
  %v1406 = vpop.permute.xlu0 %1405
  %1407 = vrot.lane.b32.xlu0 %v1292, 112
  %v1408 = vpop.permute.xlu0 %1407
  %1409 = vrot.lane.b32.xlu0 %v1293, 112
  %v1410 = vpop.permute.xlu0 %1409
  %1411 = vrot.lane.b32.xlu0 %v1294, 112
  %v1412 = vpop.permute.xlu0 %1411
  %1413 = vrot.lane.b32.xlu0 %v1295, 112
  %v1414 = vpop.permute.xlu0 %1413
  %1415 = vrot.lane.b32.xlu0 %v1296, 112
  %v1416 = vpop.permute.xlu0 %1415
  %1417 = vrot.lane.b32.xlu0 %v1297, 112
  %v1418 = vpop.permute.xlu0 %1417
  %1419 = vrot.lane.b32.xlu0 %v1298, 112
  %v1420 = vpop.permute.xlu0 %1419
  %1421 = vrot.lane.b32.xlu0 %v1299, 112
  %v1422 = vpop.permute.xlu0 %1421
  %1423 = vrot.lane.b32.xlu0 %v1300, 112
  %v1424 = vpop.permute.xlu0 %1423
  %1425 = vrot.lane.b32.xlu0 %v1301, 112
  %v1426 = vpop.permute.xlu0 %1425
  %1427 = vrot.lane.b32.xlu0 %v1302, 112
  %v1428 = vpop.permute.xlu0 %1427
  %1429 = vrot.lane.b32.xlu0 %v1303, 112
  %v1430 = vpop.permute.xlu0 %1429
  %1431 = vrot.lane.b32.xlu0 %v1304, 112
  %v1432 = vpop.permute.xlu0 %1431
  %1433 = vrot.lane.b32.xlu0 %v1305, 112
  %v1434 = vpop.permute.xlu0 %1433
  %1435 = vrot.lane.b32.xlu0 %v1306, 112
  %v1436 = vpop.permute.xlu0 %1435
  %1437 = vrot.lane.b32.xlu0 %v1307, 112
  %v1438 = vpop.permute.xlu0 %1437
  %1439 = vrot.lane.b32.xlu0 %v1308, 112
  %v1440 = vpop.permute.xlu0 %1439
  %1441 = vrot.lane.b32.xlu0 %v1309, 112
  %v1442 = vpop.permute.xlu0 %1441
  %1443 = vrot.lane.b32.xlu0 %v1310, 112
  %v1444 = vpop.permute.xlu0 %1443
  %1445 = vrot.lane.b32.xlu0 %v1311, 112
  %v1446 = vpop.permute.xlu0 %1445
  %1447 = vrot.lane.b32.xlu0 %v1312, 112
  %v1448 = vpop.permute.xlu0 %1447
  %1449 = vrot.lane.b32.xlu0 %v1313, 112
  %v1450 = vpop.permute.xlu0 %1449
  %1451 = vrot.lane.b32.xlu0 %v1314, 112
  %v1452 = vpop.permute.xlu0 %1451
  %1453 = vrot.lane.b32.xlu0 %v1315, 112
  %v1454 = vpop.permute.xlu0 %1453
  %1455 = vrot.lane.b32.xlu0 %v1316, 112
  %v1456 = vpop.permute.xlu0 %1455
  %1457 = vrot.lane.b32.xlu0 %v1317, 112
  %v1458 = vpop.permute.xlu0 %1457
  %1459 = vrot.lane.b32.xlu0 %v1318, 112
  %v1460 = vpop.permute.xlu0 %1459
  %1461 = vrot.lane.b32.xlu0 %v1319, 112
  %v1462 = vpop.permute.xlu0 %1461
  %1463 = vrot.lane.b32.xlu0 %v1320, 112
  %v1464 = vpop.permute.xlu0 %1463
  %vm1465 = vcmask 916480
  %v1466 = vsel %vm1465, %v1370, %v1372
  %v1467 = vsel %vm1465, %v1372, %v1374
  %v1468 = vsel %vm1465, %v1376, %v1378
  %v1469 = vsel %vm1465, %v1378, %v1380
  %v1470 = vsel %vm1465, %v1382, %v1384
  %v1471 = vsel %vm1465, %v1384, %v1386
  %v1472 = vsel %vm1465, %v1388, %v1390
  %v1473 = vsel %vm1465, %v1390, %v1392
  %v1474 = vsel %vm1465, %v1394, %v1396
  %v1475 = vsel %vm1465, %v1396, %v1398
  %v1476 = vsel %vm1465, %v1400, %v1402
  %v1477 = vsel %vm1465, %v1402, %v1404
  %v1478 = vsel %vm1465, %v1406, %v1408
  %v1479 = vsel %vm1465, %v1408, %v1410
  %v1480 = vsel %vm1465, %v1412, %v1414
  %v1481 = vsel %vm1465, %v1414, %v1416
  %v1482 = vsel %vm1465, %v1418, %v1420
  %v1483 = vsel %vm1465, %v1420, %v1422
  %v1484 = vsel %vm1465, %v1424, %v1426
  %v1485 = vsel %vm1465, %v1426, %v1428
  %v1486 = vsel %vm1465, %v1430, %v1432
  %v1487 = vsel %vm1465, %v1432, %v1434
  %v1488 = vsel %vm1465, %v1436, %v1438
  %v1489 = vsel %vm1465, %v1438, %v1440
  %v1490 = vsel %vm1465, %v1442, %v1444
  %v1491 = vsel %vm1465, %v1444, %v1446
  %v1492 = vsel %vm1465, %v1448, %v1450
  %v1493 = vsel %vm1465, %v1450, %v1452
  %v1494 = vsel %vm1465, %v1454, %v1456
  %v1495 = vsel %vm1465, %v1456, %v1458
  %v1496 = vsel %vm1465, %v1460, %v1462
  %v1497 = vsel %vm1465, %v1462, %v1464
  %v1530 = vadd.f32 %v1223, %v1466
  %v1531 = vadd.f32 %v1224, %v1467
  %v1532 = vadd.f32 %v1225, %v1468
  %v1533 = vadd.f32 %v1226, %v1469
  %v1534 = vadd.f32 %v1227, %v1470
  %v1535 = vadd.f32 %v1228, %v1471
  %v1536 = vadd.f32 %v1229, %v1472
  %v1537 = vadd.f32 %v1230, %v1473
  %v1538 = vadd.f32 %v1231, %v1474
  %v1539 = vadd.f32 %v1232, %v1475
  %v1540 = vadd.f32 %v1233, %v1476
  %v1541 = vadd.f32 %v1234, %v1477
  %v1542 = vadd.f32 %v1235, %v1478
  %v1543 = vadd.f32 %v1236, %v1479
  %v1544 = vadd.f32 %v1237, %v1480
  %v1545 = vadd.f32 %v1238, %v1481
  %v1546 = vadd.f32 %v1239, %v1482
  %v1547 = vadd.f32 %v1240, %v1483
  %v1548 = vadd.f32 %v1241, %v1484
  %v1549 = vadd.f32 %v1242, %v1485
  %v1550 = vadd.f32 %v1243, %v1486
  %v1551 = vadd.f32 %v1244, %v1487
  %v1552 = vadd.f32 %v1245, %v1488
  %v1553 = vadd.f32 %v1246, %v1489
  %v1554 = vadd.f32 %v1247, %v1490
  %v1555 = vadd.f32 %v1248, %v1491
  %v1556 = vadd.f32 %v1249, %v1492
  %v1557 = vadd.f32 %v1250, %v1493
  %v1558 = vadd.f32 %v1251, %v1494
  %v1559 = vadd.f32 %v1252, %v1495
  %v1560 = vadd.f32 %v1253, %v1496
  %v1561 = vadd.f32 %v1254, %v1497
  %v1562 = vlaneseq
  %v1563 = vshrl.u32 %v1562, 7
  %v1564 = vsub.s32 4, %v1563
  %v1565 = vrot.slane %v713, %v1564
  %v1566 = vlaneseq
  %v1567 = vshrl.u32 %v1566, 7
  %v1568 = vsub.s32 4, %v1567
  %v1569 = vrot.slane %v714, %v1568
  %1572 = vrot.lane.b32.xlu0 %v1565, 16
  %v1573 = vpop.permute.xlu0 %1572
  %1574 = vrot.lane.b32.xlu0 %v1569, 16
  %v1575 = vpop.permute.xlu0 %1574
  %v1576 = vsel %vm407, %v1573, %v1575
  %v1580 = vmul.f32 %v665, %v1573
  %v1581 = vmul.f32 %v666, %v1576
  %v1582 = vmul.f32 %v667, %v1575
  %v1583 = vmul.f32 %v525, %v1573
  %v1584 = vmul.f32 %v527, %v1576
  %v1585 = vmul.f32 %v529, %v1575
  %v1586 = vmul.f32 %v689, %v1573
  %v1587 = vmul.f32 %v690, %v1576
  %v1588 = vmul.f32 %v691, %v1575
  %v1589 = vmul.f32 %v668, %v1573
  %v1590 = vmul.f32 %v669, %v1576
  %v1591 = vmul.f32 %v670, %v1575
  %v1592 = vmul.f32 %v534, %v1573
  %v1593 = vmul.f32 %v536, %v1576
  %v1594 = vmul.f32 %v538, %v1575
  %v1595 = vmul.f32 %v692, %v1573
  %v1596 = vmul.f32 %v693, %v1576
  %v1597 = vmul.f32 %v694, %v1575
  %v1598 = vmul.f32 %v671, %v1573
  %v1599 = vmul.f32 %v672, %v1576
  %v1600 = vmul.f32 %v673, %v1575
  %v1601 = vmul.f32 %v543, %v1573
  %v1602 = vmul.f32 %v545, %v1576
  %v1603 = vmul.f32 %v547, %v1575
  %v1604 = vmul.f32 %v695, %v1573
  %v1605 = vmul.f32 %v696, %v1576
  %v1606 = vmul.f32 %v697, %v1575
  %v1607 = vmul.f32 %v674, %v1573
  %v1608 = vmul.f32 %v675, %v1576
  %v1609 = vmul.f32 %v676, %v1575
  %v1610 = vmul.f32 %v552, %v1573
  %v1611 = vmul.f32 %v554, %v1576
  %v1612 = vmul.f32 %v556, %v1575
  %v1613 = vmul.f32 %v698, %v1573
  %v1614 = vmul.f32 %v699, %v1576
  %v1615 = vmul.f32 %v700, %v1575
  %v1616 = vmul.f32 %v677, %v1573
  %v1617 = vmul.f32 %v678, %v1576
  %v1618 = vmul.f32 %v679, %v1575
  %v1619 = vmul.f32 %v561, %v1573
  %v1620 = vmul.f32 %v563, %v1576
  %v1621 = vmul.f32 %v565, %v1575
  %v1622 = vmul.f32 %v701, %v1573
  %v1623 = vmul.f32 %v702, %v1576
  %v1624 = vmul.f32 %v703, %v1575
  %v1625 = vmul.f32 %v680, %v1573
  %v1626 = vmul.f32 %v681, %v1576
  %v1627 = vmul.f32 %v682, %v1575
  %v1628 = vmul.f32 %v570, %v1573
  %v1629 = vmul.f32 %v572, %v1576
  %v1630 = vmul.f32 %v574, %v1575
  %v1631 = vmul.f32 %v704, %v1573
  %v1632 = vmul.f32 %v705, %v1576
  %v1633 = vmul.f32 %v706, %v1575
  %v1634 = vmul.f32 %v683, %v1573
  %v1635 = vmul.f32 %v684, %v1576
  %v1636 = vmul.f32 %v685, %v1575
  %v1637 = vmul.f32 %v579, %v1573
  %v1638 = vmul.f32 %v581, %v1576
  %v1639 = vmul.f32 %v583, %v1575
  %v1640 = vmul.f32 %v707, %v1573
  %v1641 = vmul.f32 %v708, %v1576
  %v1642 = vmul.f32 %v709, %v1575
  %v1643 = vmul.f32 %v686, %v1573
  %v1644 = vmul.f32 %v687, %v1576
  %v1645 = vmul.f32 %v688, %v1575
  %v1646 = vmul.f32 %v588, %v1573
  %v1647 = vmul.f32 %v590, %v1576
  %v1648 = vmul.f32 %v592, %v1575
  %v1649 = vmul.f32 %v710, %v1573
  %v1650 = vmul.f32 %v711, %v1576
  %v1651 = vmul.f32 %v712, %v1575
  %v1724 = vrot.slane %v1580, 1
  %v1725 = vrot.slane %v1583, 1
  %v1726 = vsel %vm861, %v1724, %v1725
  %v1727 = vrot.slane %v1581, 1
  %v1728 = vrot.slane %v1584, 1
  %v1729 = vsel %vm861, %v1727, %v1728
  %v1730 = vrot.slane %v1582, 1
  %v1731 = vrot.slane %v1585, 1
  %v1732 = vsel %vm861, %v1730, %v1731
  %v1733 = vrot.slane %v1586, 1
  %v1734 = vsel %vm861, %v1725, %v1733
  %v1735 = vrot.slane %v1587, 1
  %v1736 = vsel %vm861, %v1728, %v1735
  %v1737 = vrot.slane %v1588, 1
  %v1738 = vsel %vm861, %v1731, %v1737
  %v1739 = vrot.slane %v1589, 1
  %v1740 = vrot.slane %v1592, 1
  %v1741 = vsel %vm861, %v1739, %v1740
  %v1742 = vrot.slane %v1590, 1
  %v1743 = vrot.slane %v1593, 1
  %v1744 = vsel %vm861, %v1742, %v1743
  %v1745 = vrot.slane %v1591, 1
  %v1746 = vrot.slane %v1594, 1
  %v1747 = vsel %vm861, %v1745, %v1746
  %v1748 = vrot.slane %v1595, 1
  %v1749 = vsel %vm861, %v1740, %v1748
  %v1750 = vrot.slane %v1596, 1
  %v1751 = vsel %vm861, %v1743, %v1750
  %v1752 = vrot.slane %v1597, 1
  %v1753 = vsel %vm861, %v1746, %v1752
  %v1754 = vrot.slane %v1598, 1
  %v1755 = vrot.slane %v1601, 1
  %v1756 = vsel %vm861, %v1754, %v1755
  %v1757 = vrot.slane %v1599, 1
  %v1758 = vrot.slane %v1602, 1
  %v1759 = vsel %vm861, %v1757, %v1758
  %v1760 = vrot.slane %v1600, 1
  %v1761 = vrot.slane %v1603, 1
  %v1762 = vsel %vm861, %v1760, %v1761
  %v1763 = vrot.slane %v1604, 1
  %v1764 = vsel %vm861, %v1755, %v1763
  %v1765 = vrot.slane %v1605, 1
  %v1766 = vsel %vm861, %v1758, %v1765
  %v1767 = vrot.slane %v1606, 1
  %v1768 = vsel %vm861, %v1761, %v1767
  %v1769 = vrot.slane %v1607, 1
  %v1770 = vrot.slane %v1610, 1
  %v1771 = vsel %vm861, %v1769, %v1770
  %v1772 = vrot.slane %v1608, 1
  %v1773 = vrot.slane %v1611, 1
  %v1774 = vsel %vm861, %v1772, %v1773
  %v1775 = vrot.slane %v1609, 1
  %v1776 = vrot.slane %v1612, 1
  %v1777 = vsel %vm861, %v1775, %v1776
  %v1778 = vrot.slane %v1613, 1
  %v1779 = vsel %vm861, %v1770, %v1778
  %v1780 = vrot.slane %v1614, 1
  %v1781 = vsel %vm861, %v1773, %v1780
  %v1782 = vrot.slane %v1615, 1
  %v1783 = vsel %vm861, %v1776, %v1782
  %v1784 = vrot.slane %v1616, 1
  %v1785 = vrot.slane %v1619, 1
  %v1786 = vsel %vm861, %v1784, %v1785
  %v1787 = vrot.slane %v1617, 1
  %v1788 = vrot.slane %v1620, 1
  %v1789 = vsel %vm861, %v1787, %v1788
  %v1790 = vrot.slane %v1618, 1
  %v1791 = vrot.slane %v1621, 1
  %v1792 = vsel %vm861, %v1790, %v1791
  %v1793 = vrot.slane %v1622, 1
  %v1794 = vsel %vm861, %v1785, %v1793
  %v1795 = vrot.slane %v1623, 1
  %v1796 = vsel %vm861, %v1788, %v1795
  %v1797 = vrot.slane %v1624, 1
  %v1798 = vsel %vm861, %v1791, %v1797
  %v1799 = vrot.slane %v1625, 1
  %v1800 = vrot.slane %v1628, 1
  %v1801 = vsel %vm861, %v1799, %v1800
  %v1802 = vrot.slane %v1626, 1
  %v1803 = vrot.slane %v1629, 1
  %v1804 = vsel %vm861, %v1802, %v1803
  %v1805 = vrot.slane %v1627, 1
  %v1806 = vrot.slane %v1630, 1
  %v1807 = vsel %vm861, %v1805, %v1806
  %v1808 = vrot.slane %v1631, 1
  %v1809 = vsel %vm861, %v1800, %v1808
  %v1810 = vrot.slane %v1632, 1
  %v1811 = vsel %vm861, %v1803, %v1810
  %v1812 = vrot.slane %v1633, 1
  %v1813 = vsel %vm861, %v1806, %v1812
  %v1814 = vrot.slane %v1634, 1
  %v1815 = vrot.slane %v1637, 1
  %v1816 = vsel %vm861, %v1814, %v1815
  %v1817 = vrot.slane %v1635, 1
  %v1818 = vrot.slane %v1638, 1
  %v1819 = vsel %vm861, %v1817, %v1818
  %v1820 = vrot.slane %v1636, 1
  %v1821 = vrot.slane %v1639, 1
  %v1822 = vsel %vm861, %v1820, %v1821
  %v1823 = vrot.slane %v1640, 1
  %v1824 = vsel %vm861, %v1815, %v1823
  %v1825 = vrot.slane %v1641, 1
  %v1826 = vsel %vm861, %v1818, %v1825
  %v1827 = vrot.slane %v1642, 1
  %v1828 = vsel %vm861, %v1821, %v1827
  %v1829 = vrot.slane %v1643, 1
  %v1830 = vrot.slane %v1646, 1
  %v1831 = vsel %vm861, %v1829, %v1830
  %v1832 = vrot.slane %v1644, 1
  %v1833 = vrot.slane %v1647, 1
  %v1834 = vsel %vm861, %v1832, %v1833
  %v1835 = vrot.slane %v1645, 1
  %v1836 = vrot.slane %v1648, 1
  %v1837 = vsel %vm861, %v1835, %v1836
  %v1838 = vrot.slane %v1649, 1
  %v1839 = vsel %vm861, %v1830, %v1838
  %v1840 = vrot.slane %v1650, 1
  %v1841 = vsel %vm861, %v1833, %v1840
  %v1842 = vrot.slane %v1651, 1
  %v1843 = vsel %vm861, %v1836, %v1842
  %1844 = vrot.lane.b32.xlu0 %v1726, 112
  %v1845 = vpop.permute.xlu0 %1844
  %1846 = vrot.lane.b32.xlu0 %v1729, 112
  %v1847 = vpop.permute.xlu0 %1846
  %1848 = vrot.lane.b32.xlu0 %v1732, 112
  %v1849 = vpop.permute.xlu0 %1848
  %1850 = vrot.lane.b32.xlu0 %v1734, 112
  %v1851 = vpop.permute.xlu0 %1850
  %1852 = vrot.lane.b32.xlu0 %v1736, 112
  %v1853 = vpop.permute.xlu0 %1852
  %1854 = vrot.lane.b32.xlu0 %v1738, 112
  %v1855 = vpop.permute.xlu0 %1854
  %1856 = vrot.lane.b32.xlu0 %v1741, 112
  %v1857 = vpop.permute.xlu0 %1856
  %1858 = vrot.lane.b32.xlu0 %v1744, 112
  %v1859 = vpop.permute.xlu0 %1858
  %1860 = vrot.lane.b32.xlu0 %v1747, 112
  %v1861 = vpop.permute.xlu0 %1860
  %1862 = vrot.lane.b32.xlu0 %v1749, 112
  %v1863 = vpop.permute.xlu0 %1862
  %1864 = vrot.lane.b32.xlu0 %v1751, 112
  %v1865 = vpop.permute.xlu0 %1864
  %1866 = vrot.lane.b32.xlu0 %v1753, 112
  %v1867 = vpop.permute.xlu0 %1866
  %1868 = vrot.lane.b32.xlu0 %v1756, 112
  %v1869 = vpop.permute.xlu0 %1868
  %1870 = vrot.lane.b32.xlu0 %v1759, 112
  %v1871 = vpop.permute.xlu0 %1870
  %1872 = vrot.lane.b32.xlu0 %v1762, 112
  %v1873 = vpop.permute.xlu0 %1872
  %1874 = vrot.lane.b32.xlu0 %v1764, 112
  %v1875 = vpop.permute.xlu0 %1874
  %1876 = vrot.lane.b32.xlu0 %v1766, 112
  %v1877 = vpop.permute.xlu0 %1876
  %1878 = vrot.lane.b32.xlu0 %v1768, 112
  %v1879 = vpop.permute.xlu0 %1878
  %1880 = vrot.lane.b32.xlu0 %v1771, 112
  %v1881 = vpop.permute.xlu0 %1880
  %1882 = vrot.lane.b32.xlu0 %v1774, 112
  %v1883 = vpop.permute.xlu0 %1882
  %1884 = vrot.lane.b32.xlu0 %v1777, 112
  %v1885 = vpop.permute.xlu0 %1884
  %1886 = vrot.lane.b32.xlu0 %v1779, 112
  %v1887 = vpop.permute.xlu0 %1886
  %1888 = vrot.lane.b32.xlu0 %v1781, 112
  %v1889 = vpop.permute.xlu0 %1888
  %1890 = vrot.lane.b32.xlu0 %v1783, 112
  %v1891 = vpop.permute.xlu0 %1890
  %1892 = vrot.lane.b32.xlu0 %v1786, 112
  %v1893 = vpop.permute.xlu0 %1892
  %1894 = vrot.lane.b32.xlu0 %v1789, 112
  %v1895 = vpop.permute.xlu0 %1894
  %1896 = vrot.lane.b32.xlu0 %v1792, 112
  %v1897 = vpop.permute.xlu0 %1896
  %1898 = vrot.lane.b32.xlu0 %v1794, 112
  %v1899 = vpop.permute.xlu0 %1898
  %1900 = vrot.lane.b32.xlu0 %v1796, 112
  %v1901 = vpop.permute.xlu0 %1900
  %1902 = vrot.lane.b32.xlu0 %v1798, 112
  %v1903 = vpop.permute.xlu0 %1902
  %1904 = vrot.lane.b32.xlu0 %v1801, 112
  %v1905 = vpop.permute.xlu0 %1904
  %1906 = vrot.lane.b32.xlu0 %v1804, 112
  %v1907 = vpop.permute.xlu0 %1906
  %1908 = vrot.lane.b32.xlu0 %v1807, 112
  %v1909 = vpop.permute.xlu0 %1908
  %1910 = vrot.lane.b32.xlu0 %v1809, 112
  %v1911 = vpop.permute.xlu0 %1910
  %1912 = vrot.lane.b32.xlu0 %v1811, 112
  %v1913 = vpop.permute.xlu0 %1912
  %1914 = vrot.lane.b32.xlu0 %v1813, 112
  %v1915 = vpop.permute.xlu0 %1914
  %1916 = vrot.lane.b32.xlu0 %v1816, 112
  %v1917 = vpop.permute.xlu0 %1916
  %1918 = vrot.lane.b32.xlu0 %v1819, 112
  %v1919 = vpop.permute.xlu0 %1918
  %1920 = vrot.lane.b32.xlu0 %v1822, 112
  %v1921 = vpop.permute.xlu0 %1920
  %1922 = vrot.lane.b32.xlu0 %v1824, 112
  %v1923 = vpop.permute.xlu0 %1922
  %1924 = vrot.lane.b32.xlu0 %v1826, 112
  %v1925 = vpop.permute.xlu0 %1924
  %1926 = vrot.lane.b32.xlu0 %v1828, 112
  %v1927 = vpop.permute.xlu0 %1926
  %1928 = vrot.lane.b32.xlu0 %v1831, 112
  %v1929 = vpop.permute.xlu0 %1928
  %1930 = vrot.lane.b32.xlu0 %v1834, 112
  %v1931 = vpop.permute.xlu0 %1930
  %1932 = vrot.lane.b32.xlu0 %v1837, 112
  %v1933 = vpop.permute.xlu0 %1932
  %1934 = vrot.lane.b32.xlu0 %v1839, 112
  %v1935 = vpop.permute.xlu0 %1934
  %1936 = vrot.lane.b32.xlu0 %v1841, 112
  %v1937 = vpop.permute.xlu0 %1936
  %1938 = vrot.lane.b32.xlu0 %v1843, 112
  %v1939 = vpop.permute.xlu0 %1938
  %v1940 = vsel %vm1465, %v1845, %v1847
  %v1941 = vsel %vm1465, %v1847, %v1849
  %v1942 = vsel %vm1465, %v1851, %v1853
  %v1943 = vsel %vm1465, %v1853, %v1855
  %v1944 = vsel %vm1465, %v1857, %v1859
  %v1945 = vsel %vm1465, %v1859, %v1861
  %v1946 = vsel %vm1465, %v1863, %v1865
  %v1947 = vsel %vm1465, %v1865, %v1867
  %v1948 = vsel %vm1465, %v1869, %v1871
  %v1949 = vsel %vm1465, %v1871, %v1873
  %v1950 = vsel %vm1465, %v1875, %v1877
  %v1951 = vsel %vm1465, %v1877, %v1879
  %v1952 = vsel %vm1465, %v1881, %v1883
  %v1953 = vsel %vm1465, %v1883, %v1885
  %v1954 = vsel %vm1465, %v1887, %v1889
  %v1955 = vsel %vm1465, %v1889, %v1891
  %v1956 = vsel %vm1465, %v1893, %v1895
  %v1957 = vsel %vm1465, %v1895, %v1897
  %v1958 = vsel %vm1465, %v1899, %v1901
  %v1959 = vsel %vm1465, %v1901, %v1903
  %v1960 = vsel %vm1465, %v1905, %v1907
  %v1961 = vsel %vm1465, %v1907, %v1909
  %v1962 = vsel %vm1465, %v1911, %v1913
  %v1963 = vsel %vm1465, %v1913, %v1915
  %v1964 = vsel %vm1465, %v1917, %v1919
  %v1965 = vsel %vm1465, %v1919, %v1921
  %v1966 = vsel %vm1465, %v1923, %v1925
  %v1967 = vsel %vm1465, %v1925, %v1927
  %v1968 = vsel %vm1465, %v1929, %v1931
  %v1969 = vsel %vm1465, %v1931, %v1933
  %v1970 = vsel %vm1465, %v1935, %v1937
  %v1971 = vsel %vm1465, %v1937, %v1939
  %v2004 = vadd.f32 %v1530, %v1940
  %v2005 = vadd.f32 %v1531, %v1941
  %v2006 = vadd.f32 %v1532, %v1942
  %v2007 = vadd.f32 %v1533, %v1943
  %v2008 = vadd.f32 %v1534, %v1944
  %v2009 = vadd.f32 %v1535, %v1945
  %v2010 = vadd.f32 %v1536, %v1946
  %v2011 = vadd.f32 %v1537, %v1947
  %v2012 = vadd.f32 %v1538, %v1948
  %v2013 = vadd.f32 %v1539, %v1949
  %v2014 = vadd.f32 %v1540, %v1950
  %v2015 = vadd.f32 %v1541, %v1951
  %v2016 = vadd.f32 %v1542, %v1952
  %v2017 = vadd.f32 %v1543, %v1953
  %v2018 = vadd.f32 %v1544, %v1954
  %v2019 = vadd.f32 %v1545, %v1955
  %v2020 = vadd.f32 %v1546, %v1956
  %v2021 = vadd.f32 %v1547, %v1957
  %v2022 = vadd.f32 %v1548, %v1958
  %v2023 = vadd.f32 %v1549, %v1959
  %v2024 = vadd.f32 %v1550, %v1960
  %v2025 = vadd.f32 %v1551, %v1961
  %v2026 = vadd.f32 %v1552, %v1962
  %v2027 = vadd.f32 %v1553, %v1963
  %v2028 = vadd.f32 %v1554, %v1964
  %v2029 = vadd.f32 %v1555, %v1965
  %v2030 = vadd.f32 %v1556, %v1966
  %v2031 = vadd.f32 %v1557, %v1967
  %v2032 = vadd.f32 %v1558, %v1968
  %v2033 = vadd.f32 %v1559, %v1969
  %v2034 = vadd.f32 %v1560, %v1970
  %v2035 = vadd.f32 %v1561, %v1971
  %v2036 = vlaneseq
  %v2037 = vshrl.u32 %v2036, 7
  %v2038 = vsub.s32 7, %v2037
  %v2039 = vrot.slane %v713, %v2038
  %v2040 = vlaneseq
  %v2041 = vshrl.u32 %v2040, 7
  %v2042 = vsub.s32 7, %v2041
  %v2043 = vrot.slane %v714, %v2042
  %2046 = vrot.lane.b32.xlu0 %v2039, 16
  %v2047 = vpop.permute.xlu0 %2046
  %2048 = vrot.lane.b32.xlu0 %v2043, 16
  %v2049 = vpop.permute.xlu0 %2048
  %v2050 = vsel %vm407, %v2047, %v2049
  %v2054 = vmul.f32 %v665, %v2047
  %v2055 = vmul.f32 %v666, %v2050
  %v2056 = vmul.f32 %v667, %v2049
  %v2057 = vmul.f32 %v525, %v2047
  %v2058 = vmul.f32 %v527, %v2050
  %v2059 = vmul.f32 %v529, %v2049
  %v2060 = vmul.f32 %v689, %v2047
  %v2061 = vmul.f32 %v690, %v2050
  %v2062 = vmul.f32 %v691, %v2049
  %v2063 = vmul.f32 %v668, %v2047
  %v2064 = vmul.f32 %v669, %v2050
  %v2065 = vmul.f32 %v670, %v2049
  %v2066 = vmul.f32 %v534, %v2047
  %v2067 = vmul.f32 %v536, %v2050
  %v2068 = vmul.f32 %v538, %v2049
  %v2069 = vmul.f32 %v692, %v2047
  %v2070 = vmul.f32 %v693, %v2050
  %v2071 = vmul.f32 %v694, %v2049
  %v2072 = vmul.f32 %v671, %v2047
  %v2073 = vmul.f32 %v672, %v2050
  %v2074 = vmul.f32 %v673, %v2049
  %v2075 = vmul.f32 %v543, %v2047
  %v2076 = vmul.f32 %v545, %v2050
  %v2077 = vmul.f32 %v547, %v2049
  %v2078 = vmul.f32 %v695, %v2047
  %v2079 = vmul.f32 %v696, %v2050
  %v2080 = vmul.f32 %v697, %v2049
  %v2081 = vmul.f32 %v674, %v2047
  %v2082 = vmul.f32 %v675, %v2050
  %v2083 = vmul.f32 %v676, %v2049
  %v2084 = vmul.f32 %v552, %v2047
  %v2085 = vmul.f32 %v554, %v2050
  %v2086 = vmul.f32 %v556, %v2049
  %v2087 = vmul.f32 %v698, %v2047
  %v2088 = vmul.f32 %v699, %v2050
  %v2089 = vmul.f32 %v700, %v2049
  %v2090 = vmul.f32 %v677, %v2047
  %v2091 = vmul.f32 %v678, %v2050
  %v2092 = vmul.f32 %v679, %v2049
  %v2093 = vmul.f32 %v561, %v2047
  %v2094 = vmul.f32 %v563, %v2050
  %v2095 = vmul.f32 %v565, %v2049
  %v2096 = vmul.f32 %v701, %v2047
  %v2097 = vmul.f32 %v702, %v2050
  %v2098 = vmul.f32 %v703, %v2049
  %v2099 = vmul.f32 %v680, %v2047
  %v2100 = vmul.f32 %v681, %v2050
  %v2101 = vmul.f32 %v682, %v2049
  %v2102 = vmul.f32 %v570, %v2047
  %v2103 = vmul.f32 %v572, %v2050
  %v2104 = vmul.f32 %v574, %v2049
  %v2105 = vmul.f32 %v704, %v2047
  %v2106 = vmul.f32 %v705, %v2050
  %v2107 = vmul.f32 %v706, %v2049
  %v2108 = vmul.f32 %v683, %v2047
  %v2109 = vmul.f32 %v684, %v2050
  %v2110 = vmul.f32 %v685, %v2049
  %v2111 = vmul.f32 %v579, %v2047
  %v2112 = vmul.f32 %v581, %v2050
  %v2113 = vmul.f32 %v583, %v2049
  %v2114 = vmul.f32 %v707, %v2047
  %v2115 = vmul.f32 %v708, %v2050
  %v2116 = vmul.f32 %v709, %v2049
  %v2117 = vmul.f32 %v686, %v2047
  %v2118 = vmul.f32 %v687, %v2050
  %v2119 = vmul.f32 %v688, %v2049
  %v2120 = vmul.f32 %v588, %v2047
  %v2121 = vmul.f32 %v590, %v2050
  %v2122 = vmul.f32 %v592, %v2049
  %v2123 = vmul.f32 %v710, %v2047
  %v2124 = vmul.f32 %v711, %v2050
  %v2125 = vmul.f32 %v712, %v2049
  %v2198 = vrot.slane %v2054, 2
  %v2199 = vrot.slane %v2057, 2
  %v2200 = vsel %vm1110, %v2198, %v2199
  %v2201 = vrot.slane %v2055, 2
  %v2202 = vrot.slane %v2058, 2
  %v2203 = vsel %vm1110, %v2201, %v2202
  %v2204 = vrot.slane %v2056, 2
  %v2205 = vrot.slane %v2059, 2
  %v2206 = vsel %vm1110, %v2204, %v2205
  %v2207 = vrot.slane %v2060, 2
  %v2208 = vsel %vm1110, %v2199, %v2207
  %v2209 = vrot.slane %v2061, 2
  %v2210 = vsel %vm1110, %v2202, %v2209
  %v2211 = vrot.slane %v2062, 2
  %v2212 = vsel %vm1110, %v2205, %v2211
  %v2213 = vrot.slane %v2063, 2
  %v2214 = vrot.slane %v2066, 2
  %v2215 = vsel %vm1110, %v2213, %v2214
  %v2216 = vrot.slane %v2064, 2
  %v2217 = vrot.slane %v2067, 2
  %v2218 = vsel %vm1110, %v2216, %v2217
  %v2219 = vrot.slane %v2065, 2
  %v2220 = vrot.slane %v2068, 2
  %v2221 = vsel %vm1110, %v2219, %v2220
  %v2222 = vrot.slane %v2069, 2
  %v2223 = vsel %vm1110, %v2214, %v2222
  %v2224 = vrot.slane %v2070, 2
  %v2225 = vsel %vm1110, %v2217, %v2224
  %v2226 = vrot.slane %v2071, 2
  %v2227 = vsel %vm1110, %v2220, %v2226
  %v2228 = vrot.slane %v2072, 2
  %v2229 = vrot.slane %v2075, 2
  %v2230 = vsel %vm1110, %v2228, %v2229
  %v2231 = vrot.slane %v2073, 2
  %v2232 = vrot.slane %v2076, 2
  %v2233 = vsel %vm1110, %v2231, %v2232
  %v2234 = vrot.slane %v2074, 2
  %v2235 = vrot.slane %v2077, 2
  %v2236 = vsel %vm1110, %v2234, %v2235
  %v2237 = vrot.slane %v2078, 2
  %v2238 = vsel %vm1110, %v2229, %v2237
  %v2239 = vrot.slane %v2079, 2
  %v2240 = vsel %vm1110, %v2232, %v2239
  %v2241 = vrot.slane %v2080, 2
  %v2242 = vsel %vm1110, %v2235, %v2241
  %v2243 = vrot.slane %v2081, 2
  %v2244 = vrot.slane %v2084, 2
  %v2245 = vsel %vm1110, %v2243, %v2244
  %v2246 = vrot.slane %v2082, 2
  %v2247 = vrot.slane %v2085, 2
  %v2248 = vsel %vm1110, %v2246, %v2247
  %v2249 = vrot.slane %v2083, 2
  %v2250 = vrot.slane %v2086, 2
  %v2251 = vsel %vm1110, %v2249, %v2250
  %v2252 = vrot.slane %v2087, 2
  %v2253 = vsel %vm1110, %v2244, %v2252
  %v2254 = vrot.slane %v2088, 2
  %v2255 = vsel %vm1110, %v2247, %v2254
  %v2256 = vrot.slane %v2089, 2
  %v2257 = vsel %vm1110, %v2250, %v2256
  %v2258 = vrot.slane %v2090, 2
  %v2259 = vrot.slane %v2093, 2
  %v2260 = vsel %vm1110, %v2258, %v2259
  %v2261 = vrot.slane %v2091, 2
  %v2262 = vrot.slane %v2094, 2
  %v2263 = vsel %vm1110, %v2261, %v2262
  %v2264 = vrot.slane %v2092, 2
  %v2265 = vrot.slane %v2095, 2
  %v2266 = vsel %vm1110, %v2264, %v2265
  %v2267 = vrot.slane %v2096, 2
  %v2268 = vsel %vm1110, %v2259, %v2267
  %v2269 = vrot.slane %v2097, 2
  %v2270 = vsel %vm1110, %v2262, %v2269
  %v2271 = vrot.slane %v2098, 2
  %v2272 = vsel %vm1110, %v2265, %v2271
  %v2273 = vrot.slane %v2099, 2
  %v2274 = vrot.slane %v2102, 2
  %v2275 = vsel %vm1110, %v2273, %v2274
  %v2276 = vrot.slane %v2100, 2
  %v2277 = vrot.slane %v2103, 2
  %v2278 = vsel %vm1110, %v2276, %v2277
  %v2279 = vrot.slane %v2101, 2
  %v2280 = vrot.slane %v2104, 2
  %v2281 = vsel %vm1110, %v2279, %v2280
  %v2282 = vrot.slane %v2105, 2
  %v2283 = vsel %vm1110, %v2274, %v2282
  %v2284 = vrot.slane %v2106, 2
  %v2285 = vsel %vm1110, %v2277, %v2284
  %v2286 = vrot.slane %v2107, 2
  %v2287 = vsel %vm1110, %v2280, %v2286
  %v2288 = vrot.slane %v2108, 2
  %v2289 = vrot.slane %v2111, 2
  %v2290 = vsel %vm1110, %v2288, %v2289
  %v2291 = vrot.slane %v2109, 2
  %v2292 = vrot.slane %v2112, 2
  %v2293 = vsel %vm1110, %v2291, %v2292
  %v2294 = vrot.slane %v2110, 2
  %v2295 = vrot.slane %v2113, 2
  %v2296 = vsel %vm1110, %v2294, %v2295
  %v2297 = vrot.slane %v2114, 2
  %v2298 = vsel %vm1110, %v2289, %v2297
  %v2299 = vrot.slane %v2115, 2
  %v2300 = vsel %vm1110, %v2292, %v2299
  %v2301 = vrot.slane %v2116, 2
  %v2302 = vsel %vm1110, %v2295, %v2301
  %v2303 = vrot.slane %v2117, 2
  %v2304 = vrot.slane %v2120, 2
  %v2305 = vsel %vm1110, %v2303, %v2304
  %v2306 = vrot.slane %v2118, 2
  %v2307 = vrot.slane %v2121, 2
  %v2308 = vsel %vm1110, %v2306, %v2307
  %v2309 = vrot.slane %v2119, 2
  %v2310 = vrot.slane %v2122, 2
  %v2311 = vsel %vm1110, %v2309, %v2310
  %v2312 = vrot.slane %v2123, 2
  %v2313 = vsel %vm1110, %v2304, %v2312
  %v2314 = vrot.slane %v2124, 2
  %v2315 = vsel %vm1110, %v2307, %v2314
  %v2316 = vrot.slane %v2125, 2
  %v2317 = vsel %vm1110, %v2310, %v2316
  %2318 = vrot.lane.b32.xlu0 %v2200, 112
  %v2319 = vpop.permute.xlu0 %2318
  %2320 = vrot.lane.b32.xlu0 %v2203, 112
  %v2321 = vpop.permute.xlu0 %2320
  %2322 = vrot.lane.b32.xlu0 %v2206, 112
  %v2323 = vpop.permute.xlu0 %2322
  %2324 = vrot.lane.b32.xlu0 %v2208, 112
  %v2325 = vpop.permute.xlu0 %2324
  %2326 = vrot.lane.b32.xlu0 %v2210, 112
  %v2327 = vpop.permute.xlu0 %2326
  %2328 = vrot.lane.b32.xlu0 %v2212, 112
  %v2329 = vpop.permute.xlu0 %2328
  %2330 = vrot.lane.b32.xlu0 %v2215, 112
  %v2331 = vpop.permute.xlu0 %2330
  %2332 = vrot.lane.b32.xlu0 %v2218, 112
  %v2333 = vpop.permute.xlu0 %2332
  %2334 = vrot.lane.b32.xlu0 %v2221, 112
  %v2335 = vpop.permute.xlu0 %2334
  %2336 = vrot.lane.b32.xlu0 %v2223, 112
  %v2337 = vpop.permute.xlu0 %2336
  %2338 = vrot.lane.b32.xlu0 %v2225, 112
  %v2339 = vpop.permute.xlu0 %2338
  %2340 = vrot.lane.b32.xlu0 %v2227, 112
  %v2341 = vpop.permute.xlu0 %2340
  %2342 = vrot.lane.b32.xlu0 %v2230, 112
  %v2343 = vpop.permute.xlu0 %2342
  %2344 = vrot.lane.b32.xlu0 %v2233, 112
  %v2345 = vpop.permute.xlu0 %2344
  %2346 = vrot.lane.b32.xlu0 %v2236, 112
  %v2347 = vpop.permute.xlu0 %2346
  %2348 = vrot.lane.b32.xlu0 %v2238, 112
  %v2349 = vpop.permute.xlu0 %2348
  %2350 = vrot.lane.b32.xlu0 %v2240, 112
  %v2351 = vpop.permute.xlu0 %2350
  %2352 = vrot.lane.b32.xlu0 %v2242, 112
  %v2353 = vpop.permute.xlu0 %2352
  %2354 = vrot.lane.b32.xlu0 %v2245, 112
  %v2355 = vpop.permute.xlu0 %2354
  %2356 = vrot.lane.b32.xlu0 %v2248, 112
  %v2357 = vpop.permute.xlu0 %2356
  %2358 = vrot.lane.b32.xlu0 %v2251, 112
  %v2359 = vpop.permute.xlu0 %2358
  %2360 = vrot.lane.b32.xlu0 %v2253, 112
  %v2361 = vpop.permute.xlu0 %2360
  %2362 = vrot.lane.b32.xlu0 %v2255, 112
  %v2363 = vpop.permute.xlu0 %2362
  %2364 = vrot.lane.b32.xlu0 %v2257, 112
  %v2365 = vpop.permute.xlu0 %2364
  %2366 = vrot.lane.b32.xlu0 %v2260, 112
  %v2367 = vpop.permute.xlu0 %2366
  %2368 = vrot.lane.b32.xlu0 %v2263, 112
  %v2369 = vpop.permute.xlu0 %2368
  %2370 = vrot.lane.b32.xlu0 %v2266, 112
  %v2371 = vpop.permute.xlu0 %2370
  %2372 = vrot.lane.b32.xlu0 %v2268, 112
  %v2373 = vpop.permute.xlu0 %2372
  %2374 = vrot.lane.b32.xlu0 %v2270, 112
  %v2375 = vpop.permute.xlu0 %2374
  %2376 = vrot.lane.b32.xlu0 %v2272, 112
  %v2377 = vpop.permute.xlu0 %2376
  %2378 = vrot.lane.b32.xlu0 %v2275, 112
  %v2379 = vpop.permute.xlu0 %2378
  %2380 = vrot.lane.b32.xlu0 %v2278, 112
  %v2381 = vpop.permute.xlu0 %2380
  %2382 = vrot.lane.b32.xlu0 %v2281, 112
  %v2383 = vpop.permute.xlu0 %2382
  %2384 = vrot.lane.b32.xlu0 %v2283, 112
  %v2385 = vpop.permute.xlu0 %2384
  %2386 = vrot.lane.b32.xlu0 %v2285, 112
  %v2387 = vpop.permute.xlu0 %2386
  %2388 = vrot.lane.b32.xlu0 %v2287, 112
  %v2389 = vpop.permute.xlu0 %2388
  %2390 = vrot.lane.b32.xlu0 %v2290, 112
  %v2391 = vpop.permute.xlu0 %2390
  %2392 = vrot.lane.b32.xlu0 %v2293, 112
  %v2393 = vpop.permute.xlu0 %2392
  %2394 = vrot.lane.b32.xlu0 %v2296, 112
  %v2395 = vpop.permute.xlu0 %2394
  %2396 = vrot.lane.b32.xlu0 %v2298, 112
  %v2397 = vpop.permute.xlu0 %2396
  %2398 = vrot.lane.b32.xlu0 %v2300, 112
  %v2399 = vpop.permute.xlu0 %2398
  %2400 = vrot.lane.b32.xlu0 %v2302, 112
  %v2401 = vpop.permute.xlu0 %2400
  %2402 = vrot.lane.b32.xlu0 %v2305, 112
  %v2403 = vpop.permute.xlu0 %2402
  %2404 = vrot.lane.b32.xlu0 %v2308, 112
  %v2405 = vpop.permute.xlu0 %2404
  %2406 = vrot.lane.b32.xlu0 %v2311, 112
  %v2407 = vpop.permute.xlu0 %2406
  %2408 = vrot.lane.b32.xlu0 %v2313, 112
  %v2409 = vpop.permute.xlu0 %2408
  %2410 = vrot.lane.b32.xlu0 %v2315, 112
  %v2411 = vpop.permute.xlu0 %2410
  %2412 = vrot.lane.b32.xlu0 %v2317, 112
  %v2413 = vpop.permute.xlu0 %2412
  %v2414 = vsel %vm1465, %v2319, %v2321
  %v2415 = vsel %vm1465, %v2321, %v2323
  %v2416 = vsel %vm1465, %v2325, %v2327
  %v2417 = vsel %vm1465, %v2327, %v2329
  %v2418 = vsel %vm1465, %v2331, %v2333
  %v2419 = vsel %vm1465, %v2333, %v2335
  %v2420 = vsel %vm1465, %v2337, %v2339
  %v2421 = vsel %vm1465, %v2339, %v2341
  %v2422 = vsel %vm1465, %v2343, %v2345
  %v2423 = vsel %vm1465, %v2345, %v2347
  %v2424 = vsel %vm1465, %v2349, %v2351
  %v2425 = vsel %vm1465, %v2351, %v2353
  %v2426 = vsel %vm1465, %v2355, %v2357
  %v2427 = vsel %vm1465, %v2357, %v2359
  %v2428 = vsel %vm1465, %v2361, %v2363
  %v2429 = vsel %vm1465, %v2363, %v2365
  %v2430 = vsel %vm1465, %v2367, %v2369
  %v2431 = vsel %vm1465, %v2369, %v2371
  %v2432 = vsel %vm1465, %v2373, %v2375
  %v2433 = vsel %vm1465, %v2375, %v2377
  %v2434 = vsel %vm1465, %v2379, %v2381
  %v2435 = vsel %vm1465, %v2381, %v2383
  %v2436 = vsel %vm1465, %v2385, %v2387
  %v2437 = vsel %vm1465, %v2387, %v2389
  %v2438 = vsel %vm1465, %v2391, %v2393
  %v2439 = vsel %vm1465, %v2393, %v2395
  %v2440 = vsel %vm1465, %v2397, %v2399
  %v2441 = vsel %vm1465, %v2399, %v2401
  %v2442 = vsel %vm1465, %v2403, %v2405
  %v2443 = vsel %vm1465, %v2405, %v2407
  %v2444 = vsel %vm1465, %v2409, %v2411
  %v2445 = vsel %vm1465, %v2411, %v2413
  %v2478 = vadd.f32 %v2004, %v2414
  %v2479 = vadd.f32 %v2005, %v2415
  %v2480 = vadd.f32 %v2006, %v2416
  %v2481 = vadd.f32 %v2007, %v2417
  %v2482 = vadd.f32 %v2008, %v2418
  %v2483 = vadd.f32 %v2009, %v2419
  %v2484 = vadd.f32 %v2010, %v2420
  %v2485 = vadd.f32 %v2011, %v2421
  %v2486 = vadd.f32 %v2012, %v2422
  %v2487 = vadd.f32 %v2013, %v2423
  %v2488 = vadd.f32 %v2014, %v2424
  %v2489 = vadd.f32 %v2015, %v2425
  %v2490 = vadd.f32 %v2016, %v2426
  %v2491 = vadd.f32 %v2017, %v2427
  %v2492 = vadd.f32 %v2018, %v2428
  %v2493 = vadd.f32 %v2019, %v2429
  %v2494 = vadd.f32 %v2020, %v2430
  %v2495 = vadd.f32 %v2021, %v2431
  %v2496 = vadd.f32 %v2022, %v2432
  %v2497 = vadd.f32 %v2023, %v2433
  %v2498 = vadd.f32 %v2024, %v2434
  %v2499 = vadd.f32 %v2025, %v2435
  %v2500 = vadd.f32 %v2026, %v2436
  %v2501 = vadd.f32 %v2027, %v2437
  %v2502 = vadd.f32 %v2028, %v2438
  %v2503 = vadd.f32 %v2029, %v2439
  %v2504 = vadd.f32 %v2030, %v2440
  %v2505 = vadd.f32 %v2031, %v2441
  %v2506 = vadd.f32 %v2032, %v2442
  %v2507 = vadd.f32 %v2033, %v2443
  %v2508 = vadd.f32 %v2034, %v2444
  %v2509 = vadd.f32 %v2035, %v2445
  %v2510 = vlaneseq
  %v2511 = vshrl.u32 %v2510, 7
  %v2512 = vsub.s32 2, %v2511
  %v2513 = vrot.slane %v713, %v2512
  %v2514 = vlaneseq
  %v2515 = vshrl.u32 %v2514, 7
  %v2516 = vsub.s32 2, %v2515
  %v2517 = vrot.slane %v714, %v2516
  %2520 = vrot.lane.b32.xlu0 %v2513, 32
  %v2521 = vpop.permute.xlu0 %2520
  %2522 = vrot.lane.b32.xlu0 %v2517, 32
  %v2523 = vpop.permute.xlu0 %2522
  %vm2524 = vcmask 261120
  %v2525 = vsel %vm2524, %v2521, %v2523
  %v2529 = vmul.f32 %v665, %v2521
  %v2530 = vmul.f32 %v666, %v2525
  %v2531 = vmul.f32 %v667, %v2523
  %v2532 = vmul.f32 %v525, %v2521
  %v2533 = vmul.f32 %v527, %v2525
  %v2534 = vmul.f32 %v529, %v2523
  %v2535 = vmul.f32 %v668, %v2521
  %v2536 = vmul.f32 %v669, %v2525
  %v2537 = vmul.f32 %v670, %v2523
  %v2538 = vmul.f32 %v534, %v2521
  %v2539 = vmul.f32 %v536, %v2525
  %v2540 = vmul.f32 %v538, %v2523
  %v2541 = vmul.f32 %v671, %v2521
  %v2542 = vmul.f32 %v672, %v2525
  %v2543 = vmul.f32 %v673, %v2523
  %v2544 = vmul.f32 %v543, %v2521
  %v2545 = vmul.f32 %v545, %v2525
  %v2546 = vmul.f32 %v547, %v2523
  %v2547 = vmul.f32 %v674, %v2521
  %v2548 = vmul.f32 %v675, %v2525
  %v2549 = vmul.f32 %v676, %v2523
  %v2550 = vmul.f32 %v552, %v2521
  %v2551 = vmul.f32 %v554, %v2525
  %v2552 = vmul.f32 %v556, %v2523
  %v2553 = vmul.f32 %v677, %v2521
  %v2554 = vmul.f32 %v678, %v2525
  %v2555 = vmul.f32 %v679, %v2523
  %v2556 = vmul.f32 %v561, %v2521
  %v2557 = vmul.f32 %v563, %v2525
  %v2558 = vmul.f32 %v565, %v2523
  %v2559 = vmul.f32 %v680, %v2521
  %v2560 = vmul.f32 %v681, %v2525
  %v2561 = vmul.f32 %v682, %v2523
  %v2562 = vmul.f32 %v570, %v2521
  %v2563 = vmul.f32 %v572, %v2525
  %v2564 = vmul.f32 %v574, %v2523
  %v2565 = vmul.f32 %v683, %v2521
  %v2566 = vmul.f32 %v684, %v2525
  %v2567 = vmul.f32 %v685, %v2523
  %v2568 = vmul.f32 %v579, %v2521
  %v2569 = vmul.f32 %v581, %v2525
  %v2570 = vmul.f32 %v583, %v2523
  %v2571 = vmul.f32 %v686, %v2521
  %v2572 = vmul.f32 %v687, %v2525
  %v2573 = vmul.f32 %v688, %v2523
  %v2574 = vmul.f32 %v588, %v2521
  %v2575 = vmul.f32 %v590, %v2525
  %v2576 = vmul.f32 %v592, %v2523
  %2625 = vrot.lane.b32.xlu0 %v2529, 96
  %v2626 = vpop.permute.xlu0 %2625
  %2627 = vrot.lane.b32.xlu0 %v2530, 96
  %v2628 = vpop.permute.xlu0 %2627
  %2629 = vrot.lane.b32.xlu0 %v2531, 96
  %v2630 = vpop.permute.xlu0 %2629
  %2631 = vrot.lane.b32.xlu0 %v2532, 96
  %v2632 = vpop.permute.xlu0 %2631
  %2633 = vrot.lane.b32.xlu0 %v2533, 96
  %v2634 = vpop.permute.xlu0 %2633
  %2635 = vrot.lane.b32.xlu0 %v2534, 96
  %v2636 = vpop.permute.xlu0 %2635
  %2637 = vrot.lane.b32.xlu0 %v2535, 96
  %v2638 = vpop.permute.xlu0 %2637
  %2639 = vrot.lane.b32.xlu0 %v2536, 96
  %v2640 = vpop.permute.xlu0 %2639
  %2641 = vrot.lane.b32.xlu0 %v2537, 96
  %v2642 = vpop.permute.xlu0 %2641
  %2643 = vrot.lane.b32.xlu0 %v2538, 96
  %v2644 = vpop.permute.xlu0 %2643
  %2645 = vrot.lane.b32.xlu0 %v2539, 96
  %v2646 = vpop.permute.xlu0 %2645
  %2647 = vrot.lane.b32.xlu0 %v2540, 96
  %v2648 = vpop.permute.xlu0 %2647
  %2649 = vrot.lane.b32.xlu0 %v2541, 96
  %v2650 = vpop.permute.xlu0 %2649
  %2651 = vrot.lane.b32.xlu0 %v2542, 96
  %v2652 = vpop.permute.xlu0 %2651
  %2653 = vrot.lane.b32.xlu0 %v2543, 96
  %v2654 = vpop.permute.xlu0 %2653
  %2655 = vrot.lane.b32.xlu0 %v2544, 96
  %v2656 = vpop.permute.xlu0 %2655
  %2657 = vrot.lane.b32.xlu0 %v2545, 96
  %v2658 = vpop.permute.xlu0 %2657
  %2659 = vrot.lane.b32.xlu0 %v2546, 96
  %v2660 = vpop.permute.xlu0 %2659
  %2661 = vrot.lane.b32.xlu0 %v2547, 96
  %v2662 = vpop.permute.xlu0 %2661
  %2663 = vrot.lane.b32.xlu0 %v2548, 96
  %v2664 = vpop.permute.xlu0 %2663
  %2665 = vrot.lane.b32.xlu0 %v2549, 96
  %v2666 = vpop.permute.xlu0 %2665
  %2667 = vrot.lane.b32.xlu0 %v2550, 96
  %v2668 = vpop.permute.xlu0 %2667
  %2669 = vrot.lane.b32.xlu0 %v2551, 96
  %v2670 = vpop.permute.xlu0 %2669
  %2671 = vrot.lane.b32.xlu0 %v2552, 96
  %v2672 = vpop.permute.xlu0 %2671
  %2673 = vrot.lane.b32.xlu0 %v2553, 96
  %v2674 = vpop.permute.xlu0 %2673
  %2675 = vrot.lane.b32.xlu0 %v2554, 96
  %v2676 = vpop.permute.xlu0 %2675
  %2677 = vrot.lane.b32.xlu0 %v2555, 96
  %v2678 = vpop.permute.xlu0 %2677
  %2679 = vrot.lane.b32.xlu0 %v2556, 96
  %v2680 = vpop.permute.xlu0 %2679
  %2681 = vrot.lane.b32.xlu0 %v2557, 96
  %v2682 = vpop.permute.xlu0 %2681
  %2683 = vrot.lane.b32.xlu0 %v2558, 96
  %v2684 = vpop.permute.xlu0 %2683
  %2685 = vrot.lane.b32.xlu0 %v2559, 96
  %v2686 = vpop.permute.xlu0 %2685
  %2687 = vrot.lane.b32.xlu0 %v2560, 96
  %v2688 = vpop.permute.xlu0 %2687
  %2689 = vrot.lane.b32.xlu0 %v2561, 96
  %v2690 = vpop.permute.xlu0 %2689
  %2691 = vrot.lane.b32.xlu0 %v2562, 96
  %v2692 = vpop.permute.xlu0 %2691
  %2693 = vrot.lane.b32.xlu0 %v2563, 96
  %v2694 = vpop.permute.xlu0 %2693
  %2695 = vrot.lane.b32.xlu0 %v2564, 96
  %v2696 = vpop.permute.xlu0 %2695
  %2697 = vrot.lane.b32.xlu0 %v2565, 96
  %v2698 = vpop.permute.xlu0 %2697
  %2699 = vrot.lane.b32.xlu0 %v2566, 96
  %v2700 = vpop.permute.xlu0 %2699
  %2701 = vrot.lane.b32.xlu0 %v2567, 96
  %v2702 = vpop.permute.xlu0 %2701
  %2703 = vrot.lane.b32.xlu0 %v2568, 96
  %v2704 = vpop.permute.xlu0 %2703
  %2705 = vrot.lane.b32.xlu0 %v2569, 96
  %v2706 = vpop.permute.xlu0 %2705
  %2707 = vrot.lane.b32.xlu0 %v2570, 96
  %v2708 = vpop.permute.xlu0 %2707
  %2709 = vrot.lane.b32.xlu0 %v2571, 96
  %v2710 = vpop.permute.xlu0 %2709
  %2711 = vrot.lane.b32.xlu0 %v2572, 96
  %v2712 = vpop.permute.xlu0 %2711
  %2713 = vrot.lane.b32.xlu0 %v2573, 96
  %v2714 = vpop.permute.xlu0 %2713
  %2715 = vrot.lane.b32.xlu0 %v2574, 96
  %v2716 = vpop.permute.xlu0 %2715
  %2717 = vrot.lane.b32.xlu0 %v2575, 96
  %v2718 = vpop.permute.xlu0 %2717
  %2719 = vrot.lane.b32.xlu0 %v2576, 96
  %v2720 = vpop.permute.xlu0 %2719
  %vm2721 = vcmask 785408
  %v2722 = vsel %vm2721, %v2626, %v2628
  %v2723 = vsel %vm2721, %v2628, %v2630
  %v2724 = vsel %vm2721, %v2632, %v2634
  %v2725 = vsel %vm2721, %v2634, %v2636
  %v2726 = vsel %vm2721, %v2638, %v2640
  %v2727 = vsel %vm2721, %v2640, %v2642
  %v2728 = vsel %vm2721, %v2644, %v2646
  %v2729 = vsel %vm2721, %v2646, %v2648
  %v2730 = vsel %vm2721, %v2650, %v2652
  %v2731 = vsel %vm2721, %v2652, %v2654
  %v2732 = vsel %vm2721, %v2656, %v2658
  %v2733 = vsel %vm2721, %v2658, %v2660
  %v2734 = vsel %vm2721, %v2662, %v2664
  %v2735 = vsel %vm2721, %v2664, %v2666
  %v2736 = vsel %vm2721, %v2668, %v2670
  %v2737 = vsel %vm2721, %v2670, %v2672
  %v2738 = vsel %vm2721, %v2674, %v2676
  %v2739 = vsel %vm2721, %v2676, %v2678
  %v2740 = vsel %vm2721, %v2680, %v2682
  %v2741 = vsel %vm2721, %v2682, %v2684
  %v2742 = vsel %vm2721, %v2686, %v2688
  %v2743 = vsel %vm2721, %v2688, %v2690
  %v2744 = vsel %vm2721, %v2692, %v2694
  %v2745 = vsel %vm2721, %v2694, %v2696
  %v2746 = vsel %vm2721, %v2698, %v2700
  %v2747 = vsel %vm2721, %v2700, %v2702
  %v2748 = vsel %vm2721, %v2704, %v2706
  %v2749 = vsel %vm2721, %v2706, %v2708
  %v2750 = vsel %vm2721, %v2710, %v2712
  %v2751 = vsel %vm2721, %v2712, %v2714
  %v2752 = vsel %vm2721, %v2716, %v2718
  %v2753 = vsel %vm2721, %v2718, %v2720
  %v2786 = vadd.f32 %v2478, %v2722
  %v2787 = vadd.f32 %v2479, %v2723
  %v2788 = vadd.f32 %v2480, %v2724
  %v2789 = vadd.f32 %v2481, %v2725
  %v2790 = vadd.f32 %v2482, %v2726
  %v2791 = vadd.f32 %v2483, %v2727
  %v2792 = vadd.f32 %v2484, %v2728
  %v2793 = vadd.f32 %v2485, %v2729
  %v2794 = vadd.f32 %v2486, %v2730
  %v2795 = vadd.f32 %v2487, %v2731
  %v2796 = vadd.f32 %v2488, %v2732
  %v2797 = vadd.f32 %v2489, %v2733
  %v2798 = vadd.f32 %v2490, %v2734
  %v2799 = vadd.f32 %v2491, %v2735
  %v2800 = vadd.f32 %v2492, %v2736
  %v2801 = vadd.f32 %v2493, %v2737
  %v2802 = vadd.f32 %v2494, %v2738
  %v2803 = vadd.f32 %v2495, %v2739
  %v2804 = vadd.f32 %v2496, %v2740
  %v2805 = vadd.f32 %v2497, %v2741
  %v2806 = vadd.f32 %v2498, %v2742
  %v2807 = vadd.f32 %v2499, %v2743
  %v2808 = vadd.f32 %v2500, %v2744
  %v2809 = vadd.f32 %v2501, %v2745
  %v2810 = vadd.f32 %v2502, %v2746
  %v2811 = vadd.f32 %v2503, %v2747
  %v2812 = vadd.f32 %v2504, %v2748
  %v2813 = vadd.f32 %v2505, %v2749
  %v2814 = vadd.f32 %v2506, %v2750
  %v2815 = vadd.f32 %v2507, %v2751
  %v2816 = vadd.f32 %v2508, %v2752
  %v2817 = vadd.f32 %v2509, %v2753
  %v2818 = vlaneseq
  %v2819 = vshrl.u32 %v2818, 7
  %v2820 = vsub.s32 5, %v2819
  %v2821 = vrot.slane %v713, %v2820
  %v2822 = vlaneseq
  %v2823 = vshrl.u32 %v2822, 7
  %v2824 = vsub.s32 5, %v2823
  %v2825 = vrot.slane %v714, %v2824
  %2828 = vrot.lane.b32.xlu0 %v2821, 32
  %v2829 = vpop.permute.xlu0 %2828
  %2830 = vrot.lane.b32.xlu0 %v2825, 32
  %v2831 = vpop.permute.xlu0 %2830
  %v2832 = vsel %vm2524, %v2829, %v2831
  %v2836 = vmul.f32 %v665, %v2829
  %v2837 = vmul.f32 %v666, %v2832
  %v2838 = vmul.f32 %v667, %v2831
  %v2839 = vmul.f32 %v525, %v2829
  %v2840 = vmul.f32 %v527, %v2832
  %v2841 = vmul.f32 %v529, %v2831
  %v2842 = vmul.f32 %v689, %v2829
  %v2843 = vmul.f32 %v690, %v2832
  %v2844 = vmul.f32 %v691, %v2831
  %v2845 = vmul.f32 %v668, %v2829
  %v2846 = vmul.f32 %v669, %v2832
  %v2847 = vmul.f32 %v670, %v2831
  %v2848 = vmul.f32 %v534, %v2829
  %v2849 = vmul.f32 %v536, %v2832
  %v2850 = vmul.f32 %v538, %v2831
  %v2851 = vmul.f32 %v692, %v2829
  %v2852 = vmul.f32 %v693, %v2832
  %v2853 = vmul.f32 %v694, %v2831
  %v2854 = vmul.f32 %v671, %v2829
  %v2855 = vmul.f32 %v672, %v2832
  %v2856 = vmul.f32 %v673, %v2831
  %v2857 = vmul.f32 %v543, %v2829
  %v2858 = vmul.f32 %v545, %v2832
  %v2859 = vmul.f32 %v547, %v2831
  %v2860 = vmul.f32 %v695, %v2829
  %v2861 = vmul.f32 %v696, %v2832
  %v2862 = vmul.f32 %v697, %v2831
  %v2863 = vmul.f32 %v674, %v2829
  %v2864 = vmul.f32 %v675, %v2832
  %v2865 = vmul.f32 %v676, %v2831
  %v2866 = vmul.f32 %v552, %v2829
  %v2867 = vmul.f32 %v554, %v2832
  %v2868 = vmul.f32 %v556, %v2831
  %v2869 = vmul.f32 %v698, %v2829
  %v2870 = vmul.f32 %v699, %v2832
  %v2871 = vmul.f32 %v700, %v2831
  %v2872 = vmul.f32 %v677, %v2829
  %v2873 = vmul.f32 %v678, %v2832
  %v2874 = vmul.f32 %v679, %v2831
  %v2875 = vmul.f32 %v561, %v2829
  %v2876 = vmul.f32 %v563, %v2832
  %v2877 = vmul.f32 %v565, %v2831
  %v2878 = vmul.f32 %v701, %v2829
  %v2879 = vmul.f32 %v702, %v2832
  %v2880 = vmul.f32 %v703, %v2831
  %v2881 = vmul.f32 %v680, %v2829
  %v2882 = vmul.f32 %v681, %v2832
  %v2883 = vmul.f32 %v682, %v2831
  %v2884 = vmul.f32 %v570, %v2829
  %v2885 = vmul.f32 %v572, %v2832
  %v2886 = vmul.f32 %v574, %v2831
  %v2887 = vmul.f32 %v704, %v2829
  %v2888 = vmul.f32 %v705, %v2832
  %v2889 = vmul.f32 %v706, %v2831
  %v2890 = vmul.f32 %v683, %v2829
  %v2891 = vmul.f32 %v684, %v2832
  %v2892 = vmul.f32 %v685, %v2831
  %v2893 = vmul.f32 %v579, %v2829
  %v2894 = vmul.f32 %v581, %v2832
  %v2895 = vmul.f32 %v583, %v2831
  %v2896 = vmul.f32 %v707, %v2829
  %v2897 = vmul.f32 %v708, %v2832
  %v2898 = vmul.f32 %v709, %v2831
  %v2899 = vmul.f32 %v686, %v2829
  %v2900 = vmul.f32 %v687, %v2832
  %v2901 = vmul.f32 %v688, %v2831
  %v2902 = vmul.f32 %v588, %v2829
  %v2903 = vmul.f32 %v590, %v2832
  %v2904 = vmul.f32 %v592, %v2831
  %v2905 = vmul.f32 %v710, %v2829
  %v2906 = vmul.f32 %v711, %v2832
  %v2907 = vmul.f32 %v712, %v2831
  %v2980 = vrot.slane %v2836, 1
  %v2981 = vrot.slane %v2839, 1
  %v2982 = vsel %vm861, %v2980, %v2981
  %v2983 = vrot.slane %v2837, 1
  %v2984 = vrot.slane %v2840, 1
  %v2985 = vsel %vm861, %v2983, %v2984
  %v2986 = vrot.slane %v2838, 1
  %v2987 = vrot.slane %v2841, 1
  %v2988 = vsel %vm861, %v2986, %v2987
  %v2989 = vrot.slane %v2842, 1
  %v2990 = vsel %vm861, %v2981, %v2989
  %v2991 = vrot.slane %v2843, 1
  %v2992 = vsel %vm861, %v2984, %v2991
  %v2993 = vrot.slane %v2844, 1
  %v2994 = vsel %vm861, %v2987, %v2993
  %v2995 = vrot.slane %v2845, 1
  %v2996 = vrot.slane %v2848, 1
  %v2997 = vsel %vm861, %v2995, %v2996
  %v2998 = vrot.slane %v2846, 1
  %v2999 = vrot.slane %v2849, 1
  %v3000 = vsel %vm861, %v2998, %v2999
  %v3001 = vrot.slane %v2847, 1
  %v3002 = vrot.slane %v2850, 1
  %v3003 = vsel %vm861, %v3001, %v3002
  %v3004 = vrot.slane %v2851, 1
  %v3005 = vsel %vm861, %v2996, %v3004
  %v3006 = vrot.slane %v2852, 1
  %v3007 = vsel %vm861, %v2999, %v3006
  %v3008 = vrot.slane %v2853, 1
  %v3009 = vsel %vm861, %v3002, %v3008
  %v3010 = vrot.slane %v2854, 1
  %v3011 = vrot.slane %v2857, 1
  %v3012 = vsel %vm861, %v3010, %v3011
  %v3013 = vrot.slane %v2855, 1
  %v3014 = vrot.slane %v2858, 1
  %v3015 = vsel %vm861, %v3013, %v3014
  %v3016 = vrot.slane %v2856, 1
  %v3017 = vrot.slane %v2859, 1
  %v3018 = vsel %vm861, %v3016, %v3017
  %v3019 = vrot.slane %v2860, 1
  %v3020 = vsel %vm861, %v3011, %v3019
  %v3021 = vrot.slane %v2861, 1
  %v3022 = vsel %vm861, %v3014, %v3021
  %v3023 = vrot.slane %v2862, 1
  %v3024 = vsel %vm861, %v3017, %v3023
  %v3025 = vrot.slane %v2863, 1
  %v3026 = vrot.slane %v2866, 1
  %v3027 = vsel %vm861, %v3025, %v3026
  %v3028 = vrot.slane %v2864, 1
  %v3029 = vrot.slane %v2867, 1
  %v3030 = vsel %vm861, %v3028, %v3029
  %v3031 = vrot.slane %v2865, 1
  %v3032 = vrot.slane %v2868, 1
  %v3033 = vsel %vm861, %v3031, %v3032
  %v3034 = vrot.slane %v2869, 1
  %v3035 = vsel %vm861, %v3026, %v3034
  %v3036 = vrot.slane %v2870, 1
  %v3037 = vsel %vm861, %v3029, %v3036
  %v3038 = vrot.slane %v2871, 1
  %v3039 = vsel %vm861, %v3032, %v3038
  %v3040 = vrot.slane %v2872, 1
  %v3041 = vrot.slane %v2875, 1
  %v3042 = vsel %vm861, %v3040, %v3041
  %v3043 = vrot.slane %v2873, 1
  %v3044 = vrot.slane %v2876, 1
  %v3045 = vsel %vm861, %v3043, %v3044
  %v3046 = vrot.slane %v2874, 1
  %v3047 = vrot.slane %v2877, 1
  %v3048 = vsel %vm861, %v3046, %v3047
  %v3049 = vrot.slane %v2878, 1
  %v3050 = vsel %vm861, %v3041, %v3049
  %v3051 = vrot.slane %v2879, 1
  %v3052 = vsel %vm861, %v3044, %v3051
  %v3053 = vrot.slane %v2880, 1
  %v3054 = vsel %vm861, %v3047, %v3053
  %v3055 = vrot.slane %v2881, 1
  %v3056 = vrot.slane %v2884, 1
  %v3057 = vsel %vm861, %v3055, %v3056
  %v3058 = vrot.slane %v2882, 1
  %v3059 = vrot.slane %v2885, 1
  %v3060 = vsel %vm861, %v3058, %v3059
  %v3061 = vrot.slane %v2883, 1
  %v3062 = vrot.slane %v2886, 1
  %v3063 = vsel %vm861, %v3061, %v3062
  %v3064 = vrot.slane %v2887, 1
  %v3065 = vsel %vm861, %v3056, %v3064
  %v3066 = vrot.slane %v2888, 1
  %v3067 = vsel %vm861, %v3059, %v3066
  %v3068 = vrot.slane %v2889, 1
  %v3069 = vsel %vm861, %v3062, %v3068
  %v3070 = vrot.slane %v2890, 1
  %v3071 = vrot.slane %v2893, 1
  %v3072 = vsel %vm861, %v3070, %v3071
  %v3073 = vrot.slane %v2891, 1
  %v3074 = vrot.slane %v2894, 1
  %v3075 = vsel %vm861, %v3073, %v3074
  %v3076 = vrot.slane %v2892, 1
  %v3077 = vrot.slane %v2895, 1
  %v3078 = vsel %vm861, %v3076, %v3077
  %v3079 = vrot.slane %v2896, 1
  %v3080 = vsel %vm861, %v3071, %v3079
  %v3081 = vrot.slane %v2897, 1
  %v3082 = vsel %vm861, %v3074, %v3081
  %v3083 = vrot.slane %v2898, 1
  %v3084 = vsel %vm861, %v3077, %v3083
  %v3085 = vrot.slane %v2899, 1
  %v3086 = vrot.slane %v2902, 1
  %v3087 = vsel %vm861, %v3085, %v3086
  %v3088 = vrot.slane %v2900, 1
  %v3089 = vrot.slane %v2903, 1
  %v3090 = vsel %vm861, %v3088, %v3089
  %v3091 = vrot.slane %v2901, 1
  %v3092 = vrot.slane %v2904, 1
  %v3093 = vsel %vm861, %v3091, %v3092
  %v3094 = vrot.slane %v2905, 1
  %v3095 = vsel %vm861, %v3086, %v3094
  %v3096 = vrot.slane %v2906, 1
  %v3097 = vsel %vm861, %v3089, %v3096
  %v3098 = vrot.slane %v2907, 1
  %v3099 = vsel %vm861, %v3092, %v3098
  %3100 = vrot.lane.b32.xlu0 %v2982, 96
  %v3101 = vpop.permute.xlu0 %3100
  %3102 = vrot.lane.b32.xlu0 %v2985, 96
  %v3103 = vpop.permute.xlu0 %3102
  %3104 = vrot.lane.b32.xlu0 %v2988, 96
  %v3105 = vpop.permute.xlu0 %3104
  %3106 = vrot.lane.b32.xlu0 %v2990, 96
  %v3107 = vpop.permute.xlu0 %3106
  %3108 = vrot.lane.b32.xlu0 %v2992, 96
  %v3109 = vpop.permute.xlu0 %3108
  %3110 = vrot.lane.b32.xlu0 %v2994, 96
  %v3111 = vpop.permute.xlu0 %3110
  %3112 = vrot.lane.b32.xlu0 %v2997, 96
  %v3113 = vpop.permute.xlu0 %3112
  %3114 = vrot.lane.b32.xlu0 %v3000, 96
  %v3115 = vpop.permute.xlu0 %3114
  %3116 = vrot.lane.b32.xlu0 %v3003, 96
  %v3117 = vpop.permute.xlu0 %3116
  %3118 = vrot.lane.b32.xlu0 %v3005, 96
  %v3119 = vpop.permute.xlu0 %3118
  %3120 = vrot.lane.b32.xlu0 %v3007, 96
  %v3121 = vpop.permute.xlu0 %3120
  %3122 = vrot.lane.b32.xlu0 %v3009, 96
  %v3123 = vpop.permute.xlu0 %3122
  %3124 = vrot.lane.b32.xlu0 %v3012, 96
  %v3125 = vpop.permute.xlu0 %3124
  %3126 = vrot.lane.b32.xlu0 %v3015, 96
  %v3127 = vpop.permute.xlu0 %3126
  %3128 = vrot.lane.b32.xlu0 %v3018, 96
  %v3129 = vpop.permute.xlu0 %3128
  %3130 = vrot.lane.b32.xlu0 %v3020, 96
  %v3131 = vpop.permute.xlu0 %3130
  %3132 = vrot.lane.b32.xlu0 %v3022, 96
  %v3133 = vpop.permute.xlu0 %3132
  %3134 = vrot.lane.b32.xlu0 %v3024, 96
  %v3135 = vpop.permute.xlu0 %3134
  %3136 = vrot.lane.b32.xlu0 %v3027, 96
  %v3137 = vpop.permute.xlu0 %3136
  %3138 = vrot.lane.b32.xlu0 %v3030, 96
  %v3139 = vpop.permute.xlu0 %3138
  %3140 = vrot.lane.b32.xlu0 %v3033, 96
  %v3141 = vpop.permute.xlu0 %3140
  %3142 = vrot.lane.b32.xlu0 %v3035, 96
  %v3143 = vpop.permute.xlu0 %3142
  %3144 = vrot.lane.b32.xlu0 %v3037, 96
  %v3145 = vpop.permute.xlu0 %3144
  %3146 = vrot.lane.b32.xlu0 %v3039, 96
  %v3147 = vpop.permute.xlu0 %3146
  %3148 = vrot.lane.b32.xlu0 %v3042, 96
  %v3149 = vpop.permute.xlu0 %3148
  %3150 = vrot.lane.b32.xlu0 %v3045, 96
  %v3151 = vpop.permute.xlu0 %3150
  %3152 = vrot.lane.b32.xlu0 %v3048, 96
  %v3153 = vpop.permute.xlu0 %3152
  %3154 = vrot.lane.b32.xlu0 %v3050, 96
  %v3155 = vpop.permute.xlu0 %3154
  %3156 = vrot.lane.b32.xlu0 %v3052, 96
  %v3157 = vpop.permute.xlu0 %3156
  %3158 = vrot.lane.b32.xlu0 %v3054, 96
  %v3159 = vpop.permute.xlu0 %3158
  %3160 = vrot.lane.b32.xlu0 %v3057, 96
  %v3161 = vpop.permute.xlu0 %3160
  %3162 = vrot.lane.b32.xlu0 %v3060, 96
  %v3163 = vpop.permute.xlu0 %3162
  %3164 = vrot.lane.b32.xlu0 %v3063, 96
  %v3165 = vpop.permute.xlu0 %3164
  %3166 = vrot.lane.b32.xlu0 %v3065, 96
  %v3167 = vpop.permute.xlu0 %3166
  %3168 = vrot.lane.b32.xlu0 %v3067, 96
  %v3169 = vpop.permute.xlu0 %3168
  %3170 = vrot.lane.b32.xlu0 %v3069, 96
  %v3171 = vpop.permute.xlu0 %3170
  %3172 = vrot.lane.b32.xlu0 %v3072, 96
  %v3173 = vpop.permute.xlu0 %3172
  %3174 = vrot.lane.b32.xlu0 %v3075, 96
  %v3175 = vpop.permute.xlu0 %3174
  %3176 = vrot.lane.b32.xlu0 %v3078, 96
  %v3177 = vpop.permute.xlu0 %3176
  %3178 = vrot.lane.b32.xlu0 %v3080, 96
  %v3179 = vpop.permute.xlu0 %3178
  %3180 = vrot.lane.b32.xlu0 %v3082, 96
  %v3181 = vpop.permute.xlu0 %3180
  %3182 = vrot.lane.b32.xlu0 %v3084, 96
  %v3183 = vpop.permute.xlu0 %3182
  %3184 = vrot.lane.b32.xlu0 %v3087, 96
  %v3185 = vpop.permute.xlu0 %3184
  %3186 = vrot.lane.b32.xlu0 %v3090, 96
  %v3187 = vpop.permute.xlu0 %3186
  %3188 = vrot.lane.b32.xlu0 %v3093, 96
  %v3189 = vpop.permute.xlu0 %3188
  %3190 = vrot.lane.b32.xlu0 %v3095, 96
  %v3191 = vpop.permute.xlu0 %3190
  %3192 = vrot.lane.b32.xlu0 %v3097, 96
  %v3193 = vpop.permute.xlu0 %3192
  %3194 = vrot.lane.b32.xlu0 %v3099, 96
  %v3195 = vpop.permute.xlu0 %3194
  %v3196 = vsel %vm2721, %v3101, %v3103
  %v3197 = vsel %vm2721, %v3103, %v3105
  %v3198 = vsel %vm2721, %v3107, %v3109
  %v3199 = vsel %vm2721, %v3109, %v3111
  %v3200 = vsel %vm2721, %v3113, %v3115
  %v3201 = vsel %vm2721, %v3115, %v3117
  %v3202 = vsel %vm2721, %v3119, %v3121
  %v3203 = vsel %vm2721, %v3121, %v3123
  %v3204 = vsel %vm2721, %v3125, %v3127
  %v3205 = vsel %vm2721, %v3127, %v3129
  %v3206 = vsel %vm2721, %v3131, %v3133
  %v3207 = vsel %vm2721, %v3133, %v3135
  %v3208 = vsel %vm2721, %v3137, %v3139
  %v3209 = vsel %vm2721, %v3139, %v3141
  %v3210 = vsel %vm2721, %v3143, %v3145
  %v3211 = vsel %vm2721, %v3145, %v3147
  %v3212 = vsel %vm2721, %v3149, %v3151
  %v3213 = vsel %vm2721, %v3151, %v3153
  %v3214 = vsel %vm2721, %v3155, %v3157
  %v3215 = vsel %vm2721, %v3157, %v3159
  %v3216 = vsel %vm2721, %v3161, %v3163
  %v3217 = vsel %vm2721, %v3163, %v3165
  %v3218 = vsel %vm2721, %v3167, %v3169
  %v3219 = vsel %vm2721, %v3169, %v3171
  %v3220 = vsel %vm2721, %v3173, %v3175
  %v3221 = vsel %vm2721, %v3175, %v3177
  %v3222 = vsel %vm2721, %v3179, %v3181
  %v3223 = vsel %vm2721, %v3181, %v3183
  %v3224 = vsel %vm2721, %v3185, %v3187
  %v3225 = vsel %vm2721, %v3187, %v3189
  %v3226 = vsel %vm2721, %v3191, %v3193
  %v3227 = vsel %vm2721, %v3193, %v3195
  %v3260 = vadd.f32 %v2786, %v3196
  %v3261 = vadd.f32 %v2787, %v3197
  %v3262 = vadd.f32 %v2788, %v3198
  %v3263 = vadd.f32 %v2789, %v3199
  %v3264 = vadd.f32 %v2790, %v3200
  %v3265 = vadd.f32 %v2791, %v3201
  %v3266 = vadd.f32 %v2792, %v3202
  %v3267 = vadd.f32 %v2793, %v3203
  %v3268 = vadd.f32 %v2794, %v3204
  %v3269 = vadd.f32 %v2795, %v3205
  %v3270 = vadd.f32 %v2796, %v3206
  %v3271 = vadd.f32 %v2797, %v3207
  %v3272 = vadd.f32 %v2798, %v3208
  %v3273 = vadd.f32 %v2799, %v3209
  %v3274 = vadd.f32 %v2800, %v3210
  %v3275 = vadd.f32 %v2801, %v3211
  %v3276 = vadd.f32 %v2802, %v3212
  %v3277 = vadd.f32 %v2803, %v3213
  %v3278 = vadd.f32 %v2804, %v3214
  %v3279 = vadd.f32 %v2805, %v3215
  %v3280 = vadd.f32 %v2806, %v3216
  %v3281 = vadd.f32 %v2807, %v3217
  %v3282 = vadd.f32 %v2808, %v3218
  %v3283 = vadd.f32 %v2809, %v3219
  %v3284 = vadd.f32 %v2810, %v3220
  %v3285 = vadd.f32 %v2811, %v3221
  %v3286 = vadd.f32 %v2812, %v3222
  %v3287 = vadd.f32 %v2813, %v3223
  %v3288 = vadd.f32 %v2814, %v3224
  %v3289 = vadd.f32 %v2815, %v3225
  %v3290 = vadd.f32 %v2816, %v3226
  %v3291 = vadd.f32 %v2817, %v3227
  %v3292 = vlaneseq
  %v3293 = vshrl.u32 %v3292, 7
  %v3294 = vsub.s32 0, %v3293
  %v3295 = vrot.slane %v715, %v3294
  %v3296 = vlaneseq
  %v3297 = vshrl.u32 %v3296, 7
  %v3298 = vsub.s32 0, %v3297
  %v3299 = vrot.slane %v716, %v3298
  %3302 = vrot.lane.b32.xlu0 %v3295, 32
  %v3303 = vpop.permute.xlu0 %3302
  %3304 = vrot.lane.b32.xlu0 %v3299, 32
  %v3305 = vpop.permute.xlu0 %3304
  %v3306 = vsel %vm2524, %v3303, %v3305
  %v3310 = vmul.f32 %v665, %v3303
  %v3311 = vmul.f32 %v666, %v3306
  %v3312 = vmul.f32 %v667, %v3305
  %v3313 = vmul.f32 %v525, %v3303
  %v3314 = vmul.f32 %v527, %v3306
  %v3315 = vmul.f32 %v529, %v3305
  %v3316 = vmul.f32 %v689, %v3303
  %v3317 = vmul.f32 %v690, %v3306
  %v3318 = vmul.f32 %v691, %v3305
  %v3319 = vmul.f32 %v668, %v3303
  %v3320 = vmul.f32 %v669, %v3306
  %v3321 = vmul.f32 %v670, %v3305
  %v3322 = vmul.f32 %v534, %v3303
  %v3323 = vmul.f32 %v536, %v3306
  %v3324 = vmul.f32 %v538, %v3305
  %v3325 = vmul.f32 %v692, %v3303
  %v3326 = vmul.f32 %v693, %v3306
  %v3327 = vmul.f32 %v694, %v3305
  %v3328 = vmul.f32 %v671, %v3303
  %v3329 = vmul.f32 %v672, %v3306
  %v3330 = vmul.f32 %v673, %v3305
  %v3331 = vmul.f32 %v543, %v3303
  %v3332 = vmul.f32 %v545, %v3306
  %v3333 = vmul.f32 %v547, %v3305
  %v3334 = vmul.f32 %v695, %v3303
  %v3335 = vmul.f32 %v696, %v3306
  %v3336 = vmul.f32 %v697, %v3305
  %v3337 = vmul.f32 %v674, %v3303
  %v3338 = vmul.f32 %v675, %v3306
  %v3339 = vmul.f32 %v676, %v3305
  %v3340 = vmul.f32 %v552, %v3303
  %v3341 = vmul.f32 %v554, %v3306
  %v3342 = vmul.f32 %v556, %v3305
  %v3343 = vmul.f32 %v698, %v3303
  %v3344 = vmul.f32 %v699, %v3306
  %v3345 = vmul.f32 %v700, %v3305
  %v3346 = vmul.f32 %v677, %v3303
  %v3347 = vmul.f32 %v678, %v3306
  %v3348 = vmul.f32 %v679, %v3305
  %v3349 = vmul.f32 %v561, %v3303
  %v3350 = vmul.f32 %v563, %v3306
  %v3351 = vmul.f32 %v565, %v3305
  %v3352 = vmul.f32 %v701, %v3303
  %v3353 = vmul.f32 %v702, %v3306
  %v3354 = vmul.f32 %v703, %v3305
  %v3355 = vmul.f32 %v680, %v3303
  %v3356 = vmul.f32 %v681, %v3306
  %v3357 = vmul.f32 %v682, %v3305
  %v3358 = vmul.f32 %v570, %v3303
  %v3359 = vmul.f32 %v572, %v3306
  %v3360 = vmul.f32 %v574, %v3305
  %v3361 = vmul.f32 %v704, %v3303
  %v3362 = vmul.f32 %v705, %v3306
  %v3363 = vmul.f32 %v706, %v3305
  %v3364 = vmul.f32 %v683, %v3303
  %v3365 = vmul.f32 %v684, %v3306
  %v3366 = vmul.f32 %v685, %v3305
  %v3367 = vmul.f32 %v579, %v3303
  %v3368 = vmul.f32 %v581, %v3306
  %v3369 = vmul.f32 %v583, %v3305
  %v3370 = vmul.f32 %v707, %v3303
  %v3371 = vmul.f32 %v708, %v3306
  %v3372 = vmul.f32 %v709, %v3305
  %v3373 = vmul.f32 %v686, %v3303
  %v3374 = vmul.f32 %v687, %v3306
  %v3375 = vmul.f32 %v688, %v3305
  %v3376 = vmul.f32 %v588, %v3303
  %v3377 = vmul.f32 %v590, %v3306
  %v3378 = vmul.f32 %v592, %v3305
  %v3379 = vmul.f32 %v710, %v3303
  %v3380 = vmul.f32 %v711, %v3306
  %v3381 = vmul.f32 %v712, %v3305
  %v3454 = vrot.slane %v3310, 2
  %v3455 = vrot.slane %v3313, 2
  %v3456 = vsel %vm1110, %v3454, %v3455
  %v3457 = vrot.slane %v3311, 2
  %v3458 = vrot.slane %v3314, 2
  %v3459 = vsel %vm1110, %v3457, %v3458
  %v3460 = vrot.slane %v3312, 2
  %v3461 = vrot.slane %v3315, 2
  %v3462 = vsel %vm1110, %v3460, %v3461
  %v3463 = vrot.slane %v3316, 2
  %v3464 = vsel %vm1110, %v3455, %v3463
  %v3465 = vrot.slane %v3317, 2
  %v3466 = vsel %vm1110, %v3458, %v3465
  %v3467 = vrot.slane %v3318, 2
  %v3468 = vsel %vm1110, %v3461, %v3467
  %v3469 = vrot.slane %v3319, 2
  %v3470 = vrot.slane %v3322, 2
  %v3471 = vsel %vm1110, %v3469, %v3470
  %v3472 = vrot.slane %v3320, 2
  %v3473 = vrot.slane %v3323, 2
  %v3474 = vsel %vm1110, %v3472, %v3473
  %v3475 = vrot.slane %v3321, 2
  %v3476 = vrot.slane %v3324, 2
  %v3477 = vsel %vm1110, %v3475, %v3476
  %v3478 = vrot.slane %v3325, 2
  %v3479 = vsel %vm1110, %v3470, %v3478
  %v3480 = vrot.slane %v3326, 2
  %v3481 = vsel %vm1110, %v3473, %v3480
  %v3482 = vrot.slane %v3327, 2
  %v3483 = vsel %vm1110, %v3476, %v3482
  %v3484 = vrot.slane %v3328, 2
  %v3485 = vrot.slane %v3331, 2
  %v3486 = vsel %vm1110, %v3484, %v3485
  %v3487 = vrot.slane %v3329, 2
  %v3488 = vrot.slane %v3332, 2
  %v3489 = vsel %vm1110, %v3487, %v3488
  %v3490 = vrot.slane %v3330, 2
  %v3491 = vrot.slane %v3333, 2
  %v3492 = vsel %vm1110, %v3490, %v3491
  %v3493 = vrot.slane %v3334, 2
  %v3494 = vsel %vm1110, %v3485, %v3493
  %v3495 = vrot.slane %v3335, 2
  %v3496 = vsel %vm1110, %v3488, %v3495
  %v3497 = vrot.slane %v3336, 2
  %v3498 = vsel %vm1110, %v3491, %v3497
  %v3499 = vrot.slane %v3337, 2
  %v3500 = vrot.slane %v3340, 2
  %v3501 = vsel %vm1110, %v3499, %v3500
  %v3502 = vrot.slane %v3338, 2
  %v3503 = vrot.slane %v3341, 2
  %v3504 = vsel %vm1110, %v3502, %v3503
  %v3505 = vrot.slane %v3339, 2
  %v3506 = vrot.slane %v3342, 2
  %v3507 = vsel %vm1110, %v3505, %v3506
  %v3508 = vrot.slane %v3343, 2
  %v3509 = vsel %vm1110, %v3500, %v3508
  %v3510 = vrot.slane %v3344, 2
  %v3511 = vsel %vm1110, %v3503, %v3510
  %v3512 = vrot.slane %v3345, 2
  %v3513 = vsel %vm1110, %v3506, %v3512
  %v3514 = vrot.slane %v3346, 2
  %v3515 = vrot.slane %v3349, 2
  %v3516 = vsel %vm1110, %v3514, %v3515
  %v3517 = vrot.slane %v3347, 2
  %v3518 = vrot.slane %v3350, 2
  %v3519 = vsel %vm1110, %v3517, %v3518
  %v3520 = vrot.slane %v3348, 2
  %v3521 = vrot.slane %v3351, 2
  %v3522 = vsel %vm1110, %v3520, %v3521
  %v3523 = vrot.slane %v3352, 2
  %v3524 = vsel %vm1110, %v3515, %v3523
  %v3525 = vrot.slane %v3353, 2
  %v3526 = vsel %vm1110, %v3518, %v3525
  %v3527 = vrot.slane %v3354, 2
  %v3528 = vsel %vm1110, %v3521, %v3527
  %v3529 = vrot.slane %v3355, 2
  %v3530 = vrot.slane %v3358, 2
  %v3531 = vsel %vm1110, %v3529, %v3530
  %v3532 = vrot.slane %v3356, 2
  %v3533 = vrot.slane %v3359, 2
  %v3534 = vsel %vm1110, %v3532, %v3533
  %v3535 = vrot.slane %v3357, 2
  %v3536 = vrot.slane %v3360, 2
  %v3537 = vsel %vm1110, %v3535, %v3536
  %v3538 = vrot.slane %v3361, 2
  %v3539 = vsel %vm1110, %v3530, %v3538
  %v3540 = vrot.slane %v3362, 2
  %v3541 = vsel %vm1110, %v3533, %v3540
  %v3542 = vrot.slane %v3363, 2
  %v3543 = vsel %vm1110, %v3536, %v3542
  %v3544 = vrot.slane %v3364, 2
  %v3545 = vrot.slane %v3367, 2
  %v3546 = vsel %vm1110, %v3544, %v3545
  %v3547 = vrot.slane %v3365, 2
  %v3548 = vrot.slane %v3368, 2
  %v3549 = vsel %vm1110, %v3547, %v3548
  %v3550 = vrot.slane %v3366, 2
  %v3551 = vrot.slane %v3369, 2
  %v3552 = vsel %vm1110, %v3550, %v3551
  %v3553 = vrot.slane %v3370, 2
  %v3554 = vsel %vm1110, %v3545, %v3553
  %v3555 = vrot.slane %v3371, 2
  %v3556 = vsel %vm1110, %v3548, %v3555
  %v3557 = vrot.slane %v3372, 2
  %v3558 = vsel %vm1110, %v3551, %v3557
  %v3559 = vrot.slane %v3373, 2
  %v3560 = vrot.slane %v3376, 2
  %v3561 = vsel %vm1110, %v3559, %v3560
  %v3562 = vrot.slane %v3374, 2
  %v3563 = vrot.slane %v3377, 2
  %v3564 = vsel %vm1110, %v3562, %v3563
  %v3565 = vrot.slane %v3375, 2
  %v3566 = vrot.slane %v3378, 2
  %v3567 = vsel %vm1110, %v3565, %v3566
  %v3568 = vrot.slane %v3379, 2
  %v3569 = vsel %vm1110, %v3560, %v3568
  %v3570 = vrot.slane %v3380, 2
  %v3571 = vsel %vm1110, %v3563, %v3570
  %v3572 = vrot.slane %v3381, 2
  %v3573 = vsel %vm1110, %v3566, %v3572
  %3574 = vrot.lane.b32.xlu0 %v3456, 96
  %v3575 = vpop.permute.xlu0 %3574
  %3576 = vrot.lane.b32.xlu0 %v3459, 96
  %v3577 = vpop.permute.xlu0 %3576
  %3578 = vrot.lane.b32.xlu0 %v3462, 96
  %v3579 = vpop.permute.xlu0 %3578
  %3580 = vrot.lane.b32.xlu0 %v3464, 96
  %v3581 = vpop.permute.xlu0 %3580
  %3582 = vrot.lane.b32.xlu0 %v3466, 96
  %v3583 = vpop.permute.xlu0 %3582
  %3584 = vrot.lane.b32.xlu0 %v3468, 96
  %v3585 = vpop.permute.xlu0 %3584
  %3586 = vrot.lane.b32.xlu0 %v3471, 96
  %v3587 = vpop.permute.xlu0 %3586
  %3588 = vrot.lane.b32.xlu0 %v3474, 96
  %v3589 = vpop.permute.xlu0 %3588
  %3590 = vrot.lane.b32.xlu0 %v3477, 96
  %v3591 = vpop.permute.xlu0 %3590
  %3592 = vrot.lane.b32.xlu0 %v3479, 96
  %v3593 = vpop.permute.xlu0 %3592
  %3594 = vrot.lane.b32.xlu0 %v3481, 96
  %v3595 = vpop.permute.xlu0 %3594
  %3596 = vrot.lane.b32.xlu0 %v3483, 96
  %v3597 = vpop.permute.xlu0 %3596
  %3598 = vrot.lane.b32.xlu0 %v3486, 96
  %v3599 = vpop.permute.xlu0 %3598
  %3600 = vrot.lane.b32.xlu0 %v3489, 96
  %v3601 = vpop.permute.xlu0 %3600
  %3602 = vrot.lane.b32.xlu0 %v3492, 96
  %v3603 = vpop.permute.xlu0 %3602
  %3604 = vrot.lane.b32.xlu0 %v3494, 96
  %v3605 = vpop.permute.xlu0 %3604
  %3606 = vrot.lane.b32.xlu0 %v3496, 96
  %v3607 = vpop.permute.xlu0 %3606
  %3608 = vrot.lane.b32.xlu0 %v3498, 96
  %v3609 = vpop.permute.xlu0 %3608
  %3610 = vrot.lane.b32.xlu0 %v3501, 96
  %v3611 = vpop.permute.xlu0 %3610
  %3612 = vrot.lane.b32.xlu0 %v3504, 96
  %v3613 = vpop.permute.xlu0 %3612
  %3614 = vrot.lane.b32.xlu0 %v3507, 96
  %v3615 = vpop.permute.xlu0 %3614
  %3616 = vrot.lane.b32.xlu0 %v3509, 96
  %v3617 = vpop.permute.xlu0 %3616
  %3618 = vrot.lane.b32.xlu0 %v3511, 96
  %v3619 = vpop.permute.xlu0 %3618
  %3620 = vrot.lane.b32.xlu0 %v3513, 96
  %v3621 = vpop.permute.xlu0 %3620
  %3622 = vrot.lane.b32.xlu0 %v3516, 96
  %v3623 = vpop.permute.xlu0 %3622
  %3624 = vrot.lane.b32.xlu0 %v3519, 96
  %v3625 = vpop.permute.xlu0 %3624
  %3626 = vrot.lane.b32.xlu0 %v3522, 96
  %v3627 = vpop.permute.xlu0 %3626
  %3628 = vrot.lane.b32.xlu0 %v3524, 96
  %v3629 = vpop.permute.xlu0 %3628
  %3630 = vrot.lane.b32.xlu0 %v3526, 96
  %v3631 = vpop.permute.xlu0 %3630
  %3632 = vrot.lane.b32.xlu0 %v3528, 96
  %v3633 = vpop.permute.xlu0 %3632
  %3634 = vrot.lane.b32.xlu0 %v3531, 96
  %v3635 = vpop.permute.xlu0 %3634
  %3636 = vrot.lane.b32.xlu0 %v3534, 96
  %v3637 = vpop.permute.xlu0 %3636
  %3638 = vrot.lane.b32.xlu0 %v3537, 96
  %v3639 = vpop.permute.xlu0 %3638
  %3640 = vrot.lane.b32.xlu0 %v3539, 96
  %v3641 = vpop.permute.xlu0 %3640
  %3642 = vrot.lane.b32.xlu0 %v3541, 96
  %v3643 = vpop.permute.xlu0 %3642
  %3644 = vrot.lane.b32.xlu0 %v3543, 96
  %v3645 = vpop.permute.xlu0 %3644
  %3646 = vrot.lane.b32.xlu0 %v3546, 96
  %v3647 = vpop.permute.xlu0 %3646
  %3648 = vrot.lane.b32.xlu0 %v3549, 96
  %v3649 = vpop.permute.xlu0 %3648
  %3650 = vrot.lane.b32.xlu0 %v3552, 96
  %v3651 = vpop.permute.xlu0 %3650
  %3652 = vrot.lane.b32.xlu0 %v3554, 96
  %v3653 = vpop.permute.xlu0 %3652
  %3654 = vrot.lane.b32.xlu0 %v3556, 96
  %v3655 = vpop.permute.xlu0 %3654
  %3656 = vrot.lane.b32.xlu0 %v3558, 96
  %v3657 = vpop.permute.xlu0 %3656
  %3658 = vrot.lane.b32.xlu0 %v3561, 96
  %v3659 = vpop.permute.xlu0 %3658
  %3660 = vrot.lane.b32.xlu0 %v3564, 96
  %v3661 = vpop.permute.xlu0 %3660
  %3662 = vrot.lane.b32.xlu0 %v3567, 96
  %v3663 = vpop.permute.xlu0 %3662
  %3664 = vrot.lane.b32.xlu0 %v3569, 96
  %v3665 = vpop.permute.xlu0 %3664
  %3666 = vrot.lane.b32.xlu0 %v3571, 96
  %v3667 = vpop.permute.xlu0 %3666
  %3668 = vrot.lane.b32.xlu0 %v3573, 96
  %v3669 = vpop.permute.xlu0 %3668
  %v3670 = vsel %vm2721, %v3575, %v3577
  %v3671 = vsel %vm2721, %v3577, %v3579
  %v3672 = vsel %vm2721, %v3581, %v3583
  %v3673 = vsel %vm2721, %v3583, %v3585
  %v3674 = vsel %vm2721, %v3587, %v3589
  %v3675 = vsel %vm2721, %v3589, %v3591
  %v3676 = vsel %vm2721, %v3593, %v3595
  %v3677 = vsel %vm2721, %v3595, %v3597
  %v3678 = vsel %vm2721, %v3599, %v3601
  %v3679 = vsel %vm2721, %v3601, %v3603
  %v3680 = vsel %vm2721, %v3605, %v3607
  %v3681 = vsel %vm2721, %v3607, %v3609
  %v3682 = vsel %vm2721, %v3611, %v3613
  %v3683 = vsel %vm2721, %v3613, %v3615
  %v3684 = vsel %vm2721, %v3617, %v3619
  %v3685 = vsel %vm2721, %v3619, %v3621
  %v3686 = vsel %vm2721, %v3623, %v3625
  %v3687 = vsel %vm2721, %v3625, %v3627
  %v3688 = vsel %vm2721, %v3629, %v3631
  %v3689 = vsel %vm2721, %v3631, %v3633
  %v3690 = vsel %vm2721, %v3635, %v3637
  %v3691 = vsel %vm2721, %v3637, %v3639
  %v3692 = vsel %vm2721, %v3641, %v3643
  %v3693 = vsel %vm2721, %v3643, %v3645
  %v3694 = vsel %vm2721, %v3647, %v3649
  %v3695 = vsel %vm2721, %v3649, %v3651
  %v3696 = vsel %vm2721, %v3653, %v3655
  %v3697 = vsel %vm2721, %v3655, %v3657
  %v3698 = vsel %vm2721, %v3659, %v3661
  %v3699 = vsel %vm2721, %v3661, %v3663
  %v3700 = vsel %vm2721, %v3665, %v3667
  %v3701 = vsel %vm2721, %v3667, %v3669
  %v3734 = vadd.f32 %v3260, %v3670
  %v3735 = vadd.f32 %v3261, %v3671
  %v3736 = vadd.f32 %v3262, %v3672
  %v3737 = vadd.f32 %v3263, %v3673
  %v3738 = vadd.f32 %v3264, %v3674
  %v3739 = vadd.f32 %v3265, %v3675
  %v3740 = vadd.f32 %v3266, %v3676
  %v3741 = vadd.f32 %v3267, %v3677
  %v3742 = vadd.f32 %v3268, %v3678
  %v3743 = vadd.f32 %v3269, %v3679
  %v3744 = vadd.f32 %v3270, %v3680
  %v3745 = vadd.f32 %v3271, %v3681
  %v3746 = vadd.f32 %v3272, %v3682
  %v3747 = vadd.f32 %v3273, %v3683
  %v3748 = vadd.f32 %v3274, %v3684
  %v3749 = vadd.f32 %v3275, %v3685
  %v3750 = vadd.f32 %v3276, %v3686
  %v3751 = vadd.f32 %v3277, %v3687
  %v3752 = vadd.f32 %v3278, %v3688
  %v3753 = vadd.f32 %v3279, %v3689
  %v3754 = vadd.f32 %v3280, %v3690
  %v3755 = vadd.f32 %v3281, %v3691
  %v3756 = vadd.f32 %v3282, %v3692
  %v3757 = vadd.f32 %v3283, %v3693
  %v3758 = vadd.f32 %v3284, %v3694
  %v3759 = vadd.f32 %v3285, %v3695
  %v3760 = vadd.f32 %v3286, %v3696
  %v3761 = vadd.f32 %v3287, %v3697
  %v3762 = vadd.f32 %v3288, %v3698
  %v3763 = vadd.f32 %v3289, %v3699
  %v3764 = vadd.f32 %v3290, %v3700
  %v3765 = vadd.f32 %v3291, %v3701
  %v3766 = vld [vmem:[%s4] sm:$0x3]
  %v3768 = vlaneseq
  %v3769 = vshrl.u32 %v3768, 7
  %v3770 = vsub.s32 0, %v3769
  %v3771 = vrot.slane %v3766, %v3770
  %v3772 = vlaneseq
  %v3773 = vshrl.u32 %v3772, 7
  %v3774 = vsub.s32 1, %v3773
  %v3775 = vrot.slane %v3766, %v3774
  %v3778 = vadd.f32 %v3734, %v3771
  %v3779 = vadd.f32 %v3735, %v3775
  %v3780 = vadd.f32 %v3736, %v3771
  %v3781 = vadd.f32 %v3737, %v3775
  %v3782 = vadd.f32 %v3738, %v3771
  %v3783 = vadd.f32 %v3739, %v3775
  %v3784 = vadd.f32 %v3740, %v3771
  %v3785 = vadd.f32 %v3741, %v3775
  %v3786 = vadd.f32 %v3742, %v3771
  %v3787 = vadd.f32 %v3743, %v3775
  %v3788 = vadd.f32 %v3744, %v3771
  %v3789 = vadd.f32 %v3745, %v3775
  %v3790 = vadd.f32 %v3746, %v3771
  %v3791 = vadd.f32 %v3747, %v3775
  %v3792 = vadd.f32 %v3748, %v3771
  %v3793 = vadd.f32 %v3749, %v3775
  %v3794 = vadd.f32 %v3750, %v3771
  %v3795 = vadd.f32 %v3751, %v3775
  %v3796 = vadd.f32 %v3752, %v3771
  %v3797 = vadd.f32 %v3753, %v3775
  %v3798 = vadd.f32 %v3754, %v3771
  %v3799 = vadd.f32 %v3755, %v3775
  %v3800 = vadd.f32 %v3756, %v3771
  %v3801 = vadd.f32 %v3757, %v3775
  %v3802 = vadd.f32 %v3758, %v3771
  %v3803 = vadd.f32 %v3759, %v3775
  %v3804 = vadd.f32 %v3760, %v3771
  %v3805 = vadd.f32 %v3761, %v3775
  %v3806 = vadd.f32 %v3762, %v3771
  %v3807 = vadd.f32 %v3763, %v3775
  %v3808 = vadd.f32 %v3764, %v3771
  %v3809 = vadd.f32 %v3765, %v3775
  %v3810 = vmax.f32 %v3778, 0.0
  %v3811 = vmax.f32 %v3779, 0.0
  %v3812 = vmax.f32 %v3780, 0.0
  %v3813 = vmax.f32 %v3781, 0.0
  %v3814 = vmax.f32 %v3782, 0.0
  %v3815 = vmax.f32 %v3783, 0.0
  %v3816 = vmax.f32 %v3784, 0.0
  %v3817 = vmax.f32 %v3785, 0.0
  %v3818 = vmax.f32 %v3786, 0.0
  %v3819 = vmax.f32 %v3787, 0.0
  %v3820 = vmax.f32 %v3788, 0.0
  %v3821 = vmax.f32 %v3789, 0.0
  %v3822 = vmax.f32 %v3790, 0.0
  %v3823 = vmax.f32 %v3791, 0.0
  %v3824 = vmax.f32 %v3792, 0.0
  %v3825 = vmax.f32 %v3793, 0.0
  %v3826 = vmax.f32 %v3794, 0.0
  %v3827 = vmax.f32 %v3795, 0.0
  %v3828 = vmax.f32 %v3796, 0.0
  %v3829 = vmax.f32 %v3797, 0.0
  %v3830 = vmax.f32 %v3798, 0.0
  %v3831 = vmax.f32 %v3799, 0.0
  %v3832 = vmax.f32 %v3800, 0.0
  %v3833 = vmax.f32 %v3801, 0.0
  %v3834 = vmax.f32 %v3802, 0.0
  %v3835 = vmax.f32 %v3803, 0.0
  %v3836 = vmax.f32 %v3804, 0.0
  %v3837 = vmax.f32 %v3805, 0.0
  %v3838 = vmax.f32 %v3806, 0.0
  %v3839 = vmax.f32 %v3807, 0.0
  %v3840 = vmax.f32 %v3808, 0.0
  %v3841 = vmax.f32 %v3809, 0.0
  %v3842 = vmin.f32 %v3810, 6.0
  %v3843 = vmin.f32 %v3811, 6.0
  %v3844 = vmin.f32 %v3812, 6.0
  %v3845 = vmin.f32 %v3813, 6.0
  %v3846 = vmin.f32 %v3814, 6.0
  %v3847 = vmin.f32 %v3815, 6.0
  %v3848 = vmin.f32 %v3816, 6.0
  %v3849 = vmin.f32 %v3817, 6.0
  %v3850 = vmin.f32 %v3818, 6.0
  %v3851 = vmin.f32 %v3819, 6.0
  %v3852 = vmin.f32 %v3820, 6.0
  %v3853 = vmin.f32 %v3821, 6.0
  %v3854 = vmin.f32 %v3822, 6.0
  %v3855 = vmin.f32 %v3823, 6.0
  %v3856 = vmin.f32 %v3824, 6.0
  %v3857 = vmin.f32 %v3825, 6.0
  %v3858 = vmin.f32 %v3826, 6.0
  %v3859 = vmin.f32 %v3827, 6.0
  %v3860 = vmin.f32 %v3828, 6.0
  %v3861 = vmin.f32 %v3829, 6.0
  %v3862 = vmin.f32 %v3830, 6.0
  %v3863 = vmin.f32 %v3831, 6.0
  %v3864 = vmin.f32 %v3832, 6.0
  %v3865 = vmin.f32 %v3833, 6.0
  %v3866 = vmin.f32 %v3834, 6.0
  %v3867 = vmin.f32 %v3835, 6.0
  %v3868 = vmin.f32 %v3836, 6.0
  %v3869 = vmin.f32 %v3837, 6.0
  %v3870 = vmin.f32 %v3838, 6.0
  %v3871 = vmin.f32 %v3839, 6.0
  %v3872 = vmin.f32 %v3840, 6.0
  %v3873 = vmin.f32 %v3841, 6.0
  %v3874 = vld [vmem:[%s5] sm:$0xff]
  %v3875 = vld [vmem:[%s5 + $0x8] sm:$0xff]
  %v3876 = vld [vmem:[%s5 + $0x10] sm:$0xff]
  %v3877 = vld [vmem:[%s5 + $0x18] sm:$0xff]
  %v3878 = vld [vmem:[%s5 + $0x20] sm:$0xff]
  %v3879 = vld [vmem:[%s5 + $0x28] sm:$0xff]
  %v3880 = vld [vmem:[%s5 + $0x30] sm:$0xff]
  %v3881 = vld [vmem:[%s5 + $0x38] sm:$0xff]
  %v3882 = vld [vmem:[%s5 + $0x40] sm:$0xff]
  %v3883 = vld [vmem:[%s5 + $0x48] sm:$0xff]
  %v3884 = vld [vmem:[%s5 + $0x50] sm:$0xff]
  %v3885 = vld [vmem:[%s5 + $0x58] sm:$0xff]
  %v3886 = vld [vmem:[%s5 + $0x60] sm:$0xff]
  %v3887 = vld [vmem:[%s5 + $0x68] sm:$0xff]
  %v3888 = vld [vmem:[%s5 + $0x70] sm:$0xff]
  %v3889 = vld [vmem:[%s5 + $0x78] sm:$0xff]
  %v3890 = vld [vmem:[%s5 + $0x80] sm:$0xff]
  %v3891 = vld [vmem:[%s5 + $0x88] sm:$0xff]
  %v3892 = vld [vmem:[%s5 + $0x90] sm:$0xff]
  %v3893 = vld [vmem:[%s5 + $0x98] sm:$0xff]
  %v3894 = vld [vmem:[%s5 + $0xa0] sm:$0xff]
  %v3895 = vld [vmem:[%s5 + $0xa8] sm:$0xff]
  %v3896 = vld [vmem:[%s5 + $0xb0] sm:$0xff]
  %v3897 = vld [vmem:[%s5 + $0xb8] sm:$0xff]
  %v3898 = vld [vmem:[%s5 + $0xc0] sm:$0xff]
  %v3899 = vld [vmem:[%s5 + $0xc8] sm:$0xff]
  %v3900 = vld [vmem:[%s5 + $0xd0] sm:$0xff]
  %v3901 = vld [vmem:[%s5 + $0xd8] sm:$0xff]
  %v3902 = vld [vmem:[%s5 + $0xe0] sm:$0xff]
  %v3903 = vld [vmem:[%s5 + $0xe8] sm:$0xff]
  %v3904 = vld [vmem:[%s5 + $0xf0] sm:$0xff]
  %v3905 = vld [vmem:[%s5 + $0xf8] sm:$0xff]
  %v3906 = vld [vmem:[%s6] sm:$0x1]
  %v3908 = vlaneseq
  %v3909 = vshrl.u32 %v3908, 7
  %v3910 = vsub.s32 0, %v3909
  %v3911 = vrot.slane %v3906, %v3910
  %3913 = vmatprep.subr.mxu0 0.0
  %3914 = vmatpush1.msra.mxu0 %v3874
  %3915 = vmatprep.subr.mxu0 0.0
  %3916 = vmatpush1.msra.mxu0 %v3875
  %3917 = vmatprep.subr.mxu0 0.0
  %3918 = vmatpush1.msra.mxu0 %v3876
  %3919 = vmatprep.subr.mxu0 0.0
  %3920 = vmatpush1.msra.mxu0 %v3877
  %3921 = vmatprep.subr.mxu0 0.0
  %3922 = vmatpush1.msra.mxu0 %v3878
  %3923 = vmatprep.subr.mxu0 0.0
  %3924 = vmatpush1.msra.mxu0 %v3879
  %3925 = vmatprep.subr.mxu0 0.0
  %3926 = vmatpush1.msra.mxu0 %v3880
  %3927 = vmatprep.subr.mxu0 0.0
  %3928 = vmatpush1.msra.mxu0 %v3881
  %3929 = vmatprep.subr.mxu0 0.0
  %3930 = vmatpush1.msra.mxu0 %v3882
  %3931 = vmatprep.subr.mxu0 0.0
  %3932 = vmatpush1.msra.mxu0 %v3883
  %3933 = vmatprep.subr.mxu0 0.0
  %3934 = vmatpush1.msra.mxu0 %v3884
  %3935 = vmatprep.subr.mxu0 0.0
  %3936 = vmatpush1.msra.mxu0 %v3885
  %3937 = vmatprep.subr.mxu0 0.0
  %3938 = vmatpush1.msra.mxu0 %v3886
  %3939 = vmatprep.subr.mxu0 0.0
  %3940 = vmatpush1.msra.mxu0 %v3887
  %3941 = vmatprep.subr.mxu0 0.0
  %3942 = vmatpush1.msra.mxu0 %v3888
  %3943 = vmatprep.subr.mxu0 0.0
  %3944 = vmatpush1.msra.mxu0 %v3889
  %3945 = vmatprep.subr.mxu0 0.0
  %3946 = vmatpush1.msra.mxu0 %v3890
  %3947 = vmatprep.subr.mxu0 0.0
  %3948 = vmatpush1.msra.mxu0 %v3891
  %3949 = vmatprep.subr.mxu0 0.0
  %3950 = vmatpush1.msra.mxu0 %v3892
  %3951 = vmatprep.subr.mxu0 0.0
  %3952 = vmatpush1.msra.mxu0 %v3893
  %3953 = vmatprep.subr.mxu0 0.0
  %3954 = vmatpush1.msra.mxu0 %v3894
  %3955 = vmatprep.subr.mxu0 0.0
  %3956 = vmatpush1.msra.mxu0 %v3895
  %3957 = vmatprep.subr.mxu0 0.0
  %3958 = vmatpush1.msra.mxu0 %v3896
  %3959 = vmatprep.subr.mxu0 0.0
  %3960 = vmatpush1.msra.mxu0 %v3897
  %3961 = vmatprep.subr.mxu0 0.0
  %3962 = vmatpush1.msra.mxu0 %v3898
  %3963 = vmatprep.subr.mxu0 0.0
  %3964 = vmatpush1.msra.mxu0 %v3899
  %3965 = vmatprep.subr.mxu0 0.0
  %3966 = vmatpush1.msra.mxu0 %v3900
  %3967 = vmatprep.subr.mxu0 0.0
  %3968 = vmatpush1.msra.mxu0 %v3901
  %3969 = vmatprep.subr.mxu0 0.0
  %3970 = vmatpush1.msra.mxu0 %v3902
  %3971 = vmatprep.subr.mxu0 0.0
  %3972 = vmatpush1.msra.mxu0 %v3903
  %3973 = vmatprep.subr.mxu0 0.0
  %3974 = vmatpush1.msra.mxu0 %v3904
  %3975 = vmatprep.subr.mxu0 0.0
  %3976 = vmatpush1.msra.mxu0 %v3905
  %3977 = vmatprep.mubr.f32.mxu0 %v3843
  %3978 = vmatmul.mubr.f32.gmra.mrb[0].mxu0 %v3842
  %v3979 = vpop.f32.mrb[0].mxu0
  %v3980 = vadd.f32 %v3911, %v3979
  %v3981 = vpop.f32.mrb[0].mxu0
  %3982 = vmatprep.mubr.f32.mxu0 %v3845
  %3983 = vmatmul.mubr.f32.gmra.mrb[0].mxu0 %v3844
  %v3984 = vpop.f32.mrb[0].mxu0
  %v3985 = vadd.f32 %v3911, %v3984
  %v3986 = vpop.f32.mrb[0].mxu0
  %3987 = vmatprep.mubr.f32.mxu0 %v3847
  %3988 = vmatmul.mubr.f32.gmra.mrb[0].mxu0 %v3846
  %v3989 = vpop.f32.mrb[0].mxu0
  %v3990 = vadd.f32 %v3911, %v3989
  %v3991 = vpop.f32.mrb[0].mxu0
  %3992 = vmatprep.mubr.f32.mxu0 %v3849
  %3993 = vmatmul.mubr.f32.gmra.mrb[0].mxu0 %v3848
  %v3994 = vpop.f32.mrb[0].mxu0
  %v3995 = vadd.f32 %v3911, %v3994
  %v3996 = vpop.f32.mrb[0].mxu0
  %3997 = vmatprep.mubr.f32.mxu0 %v3851
  %3998 = vmatmul.mubr.f32.gmra.mrb[0].mxu0 %v3850
  %v3999 = vpop.f32.mrb[0].mxu0
  %v4000 = vadd.f32 %v3911, %v3999
  %v4001 = vpop.f32.mrb[0].mxu0
  %4002 = vmatprep.mubr.f32.mxu0 %v3853
  %4003 = vmatmul.mubr.f32.gmra.mrb[0].mxu0 %v3852
  %v4004 = vpop.f32.mrb[0].mxu0
  %v4005 = vadd.f32 %v3911, %v4004
  %v4006 = vpop.f32.mrb[0].mxu0
  %4007 = vmatprep.mubr.f32.mxu0 %v3855
  %4008 = vmatmul.mubr.f32.gmra.mrb[0].mxu0 %v3854
  %v4009 = vpop.f32.mrb[0].mxu0
  %v4010 = vadd.f32 %v3911, %v4009
  %v4011 = vpop.f32.mrb[0].mxu0
  %4012 = vmatprep.mubr.f32.mxu0 %v3857
  %4013 = vmatmul.mubr.f32.gmra.mrb[0].mxu0 %v3856
  %v4014 = vpop.f32.mrb[0].mxu0
  %v4015 = vadd.f32 %v3911, %v4014
  %v4016 = vpop.f32.mrb[0].mxu0
  %4017 = vmatprep.mubr.f32.mxu0 %v3859
  %4018 = vmatmul.mubr.f32.gmra.mrb[0].mxu0 %v3858
  %v4019 = vpop.f32.mrb[0].mxu0
  %v4020 = vadd.f32 %v3911, %v4019
  %v4021 = vpop.f32.mrb[0].mxu0
  %4022 = vmatprep.mubr.f32.mxu0 %v3861
  %4023 = vmatmul.mubr.f32.gmra.mrb[0].mxu0 %v3860
  %v4024 = vpop.f32.mrb[0].mxu0
  %v4025 = vadd.f32 %v3911, %v4024
  %v4026 = vpop.f32.mrb[0].mxu0
  %4027 = vmatprep.mubr.f32.mxu0 %v3863
  %4028 = vmatmul.mubr.f32.gmra.mrb[0].mxu0 %v3862
  %v4029 = vpop.f32.mrb[0].mxu0
  %v4030 = vadd.f32 %v3911, %v4029
  %v4031 = vpop.f32.mrb[0].mxu0
  %4032 = vmatprep.mubr.f32.mxu0 %v3865
  %4033 = vmatmul.mubr.f32.gmra.mrb[0].mxu0 %v3864
  %v4034 = vpop.f32.mrb[0].mxu0
  %v4035 = vadd.f32 %v3911, %v4034
  %v4036 = vpop.f32.mrb[0].mxu0
  %4037 = vmatprep.mubr.f32.mxu0 %v3867
  %4038 = vmatmul.mubr.f32.gmra.mrb[0].mxu0 %v3866
  %v4039 = vpop.f32.mrb[0].mxu0
  %v4040 = vadd.f32 %v3911, %v4039
  %v4041 = vpop.f32.mrb[0].mxu0
  %4042 = vmatprep.mubr.f32.mxu0 %v3869
  %4043 = vmatmul.mubr.f32.gmra.mrb[0].mxu0 %v3868
  %v4044 = vpop.f32.mrb[0].mxu0
  %v4045 = vadd.f32 %v3911, %v4044
  %v4046 = vpop.f32.mrb[0].mxu0
  %4047 = vmatprep.mubr.f32.mxu0 %v3871
  %4048 = vmatmul.mubr.f32.gmra.mrb[0].mxu0 %v3870
  %v4049 = vpop.f32.mrb[0].mxu0
  %v4050 = vadd.f32 %v3911, %v4049
  %v4051 = vpop.f32.mrb[0].mxu0
  %4052 = vmatprep.mubr.f32.mxu0 %v3873
  %4053 = vmatmul.mubr.f32.gmra.mrb[0].mxu0 %v3872
  %v4054 = vpop.f32.mrb[0].mxu0
  %v4055 = vadd.f32 %v3911, %v4054
  %v4056 = vpop.f32.mrb[0].mxu0
  %4057 = vdwg.mxu0
  %v4058 = vadd.f32 %v3980, %v26
  %v4059 = vadd.f32 %v3985, %v27
  %v4060 = vadd.f32 %v3990, %v28
  %v4061 = vadd.f32 %v3995, %v29
  %v4062 = vadd.f32 %v4000, %v30
  %v4063 = vadd.f32 %v4005, %v31
  %v4064 = vadd.f32 %v4010, %v32
  %v4065 = vadd.f32 %v4015, %v33
  %v4066 = vadd.f32 %v4020, %v34
  %v4067 = vadd.f32 %v4025, %v35
  %v4068 = vadd.f32 %v4030, %v36
  %v4069 = vadd.f32 %v4035, %v37
  %v4070 = vadd.f32 %v4040, %v38
  %v4071 = vadd.f32 %v4045, %v39
  %v4072 = vadd.f32 %v4050, %v40
  %v4073 = vadd.f32 %v4055, %v41
  %4074 = vst [vmem:[%s7] sm:$0xff] %v4058
  %4075 = vst [vmem:[%s7 + $0x8] sm:$0xff] %v4059
  %4076 = vst [vmem:[%s7 + $0x10] sm:$0xff] %v4060
  %4077 = vst [vmem:[%s7 + $0x18] sm:$0xff] %v4061
  %4078 = vst [vmem:[%s7 + $0x20] sm:$0xff] %v4062
  %4079 = vst [vmem:[%s7 + $0x28] sm:$0xff] %v4063
  %4080 = vst [vmem:[%s7 + $0x30] sm:$0xff] %v4064
  %4081 = vst [vmem:[%s7 + $0x38] sm:$0xff] %v4065
  %4082 = vst [vmem:[%s7 + $0x40] sm:$0xff] %v4066
  %4083 = vst [vmem:[%s7 + $0x48] sm:$0xff] %v4067
  %4084 = vst [vmem:[%s7 + $0x50] sm:$0xff] %v4068
  %4085 = vst [vmem:[%s7 + $0x58] sm:$0xff] %v4069
  %4086 = vst [vmem:[%s7 + $0x60] sm:$0xff] %v4070
  %4087 = vst [vmem:[%s7 + $0x68] sm:$0xff] %v4071
  %4088 = vst [vmem:[%s7 + $0x70] sm:$0xff] %v4072
  %4089 = vst [vmem:[%s7 + $0x78] sm:$0xff] %v4073
  // Predicated region
  $region30: #{inverted_residual_pallas.1} parent=0 // pred_check
    _
  $region31: #{inverted_residual_pallas.1} parent=0 // pred_check_branch
    %4091 = sbr.rel (0) target = $region33
  $region32: #{inverted_residual_pallas.1} parent=0 // pred_region
    _
  $region33: #{inverted_residual_pallas.1} parent=0 // pred_fallthru
    _
  // Predicated region
  $region34: #{inverted_residual_pallas.1} parent=0 // pred_check
    _
  $region35: #{inverted_residual_pallas.1} parent=0 // pred_check_branch
    %4093 = sbr.rel (0) target = $region37
  $region36: #{inverted_residual_pallas.1} parent=0 // pred_region
    _
  $region37: #{inverted_residual_pallas.1} parent=0 // pred_fallthru
    _

</llo_original>
